<compile_context>
chip_gen: v5e
topology: v5e:2x2
jax: 0.10.0
libtpu: 0.0.40
codegen_flags: <defaults>
</compile_context>

<pallas_src>
import functools

import jax
import jax.numpy as jnp
from jax import lax
from jax.experimental import pallas as pl
from jax.experimental.pallas import tpu as pltpu


def _round_up(x, m):
    return (x + m - 1) // m * m


# ---------------------------------------------------------------------------
# Embedding helpers (plain JAX).
# TODO(synk): exact layers.get_spatial_embedding / layers.get_timestep_embedding
# were not provided in the spec; standard sinusoidal stand-ins are used here.
# ---------------------------------------------------------------------------
def get_spatial_embedding(x, y, omega, s):
    # x, y: (B, 1, H, W) coordinate maps -> (B, 1, H, W) embedding
    return s * (jnp.sin(omega * x) + jnp.sin(omega * y))


def get_timestep_embedding(t, dim):
    # t: (B,) -> (B, dim) standard sinusoidal timestep embedding
    half = max(dim // 2, 1)
    freqs = jnp.exp(-jnp.log(10000.0) *
                    jnp.arange(half, dtype=jnp.float32) / float(half))
    args = t.astype(jnp.float32)[:, None] * freqs[None, :]
    emb = jnp.concatenate([jnp.sin(args), jnp.cos(args)], axis=-1)
    if emb.shape[-1] < dim:
        emb = jnp.pad(emb, ((0, 0), (0, dim - emb.shape[-1])))
    return emb[:, :dim]


def avg_pool_2x2_nhwc(x):
    B, H, W, C = x.shape
    return x.reshape(B, H // 2, 2, W // 2, 2, C).mean(axis=(2, 4))


def _avg_pool_2x2_nchw(x):
    B, C, H, W = x.shape
    return x.reshape(B, C, H // 2, 2, W // 2, 2).mean(axis=(3, 5))


def _vmem_limit_bytes():
    # Raise the default scoped-VMEM cap; leave headroom (v7x: 64 MiB per core).
    try:
        cap = int(pltpu.get_tpu_info().vmem_capacity_bytes)
    except Exception:  # pragma: no cover - conservative fallback
        cap = 128 * 1024 * 1024
    return int(min(cap * 3 // 4, 100 * 1024 * 1024))


# ---------------------------------------------------------------------------
# Fused per-level kernel:
#   conv3x3 stride-2 (as a dense 2x2 conv over space-to-depth rows) + bias
#   + LeakyReLU(0.1), then conv3x3 stride-1 pad-1 + bias + LeakyReLU(0.1).
# Activations are 2-D (rows = flattened spatial, lanes = channels); up to Bt
# images are row-stacked per grid step (pitch ROWS, with zero gaps) so every
# MXU dot streams (Bt-1)*ROWS + Nw rows against one pushed weight.
# ---------------------------------------------------------------------------
def _level_kernel(x_ref, w1_ref, b1_ref, w2_ref, b2_ref, o_ref, buf_ref,
                  *, Bt, ROWS, Nw, Ws, C1, LP, Mtot):
    total = LP + Bt * ROWS

    # Zero only the halo/pad row bands of the scratch (the [LP, LP+Mtot) compute
    # rows are fully rewritten below).  Done every step so the kernel stays
    # correct when the "parallel" grid axis is sharded across TensorCores
    # (each core owns a separate, uninitialised scratch).
    ZT = max(LP, (LP + Mtot) // 8 * 8)          # 8-aligned start of trailing pad
    buf_ref[:LP, :] = jnp.zeros((LP, C1), buf_ref.dtype)
    buf_ref[ZT:, :] = jnp.zeros((total - ZT, C1), buf_ref.dtype)

    xflat = x_ref[0]                            # (Bt*ROWS, 4*Cin), bf16

    # ---- conv1: stride-2 3x3 conv == dense 2x2 conv over space-to-depth rows.
    acc1 = jnp.zeros((Mtot, C1), jnp.float32)
    t = 0
    for dy in range(2):
        for dx in range(2):
            shift = dy * Ws + dx
            acc1 = acc1 + jnp.dot(xflat[shift:shift + Mtot, :], w1_ref[t],
                                  preferred_element_type=jnp.float32)
            t += 1
    acc1 = acc1 + b1_ref[...]
    acc1 = jnp.where(acc1 >= 0.0, acc1, 0.1 * acc1)           # LeakyReLU(0.1)

    # ---- single masked staging store: zero the garbage wide-grid column
    # (ox == Wo) and the inter-image gap rows, so conv2 needs NO per-tap masks
    # (those zeros are exactly the horizontal/vertical halos conv2 expects).
    r = lax.broadcasted_iota(jnp.int32, (Mtot, 1), 0)
    local = r % ROWS
    valid = (local < Nw) & ((local % Ws) != (Ws - 1))
    buf_ref[LP:LP + Mtot, :] = jnp.where(valid, acc1, 0.0).astype(buf_ref.dtype)

    # ---- conv2: 3x3 stride-1 pad-1 via constant row shifts; pure chain of 9
    # dots with no interleaved VPU selects.
    acc2 = jnp.zeros((Mtot, C1), jnp.float32)
    t = 0
    for dy in range(3):
        for dx in range(3):
            shift = (dy - 1) * Ws + (dx - 1)
            acc2 = acc2 + jnp.dot(buf_ref[LP + shift:LP + shift + Mtot, :],
                                  w2_ref[t], preferred_element_type=jnp.float32)
            t += 1
    acc2 = acc2 + b2_ref[...]
    acc2 = jnp.where(acc2 >= 0.0, acc2, 0.1 * acc2)

    # ---- un-stack the valid per-image rows into the output block.
    for b in range(Bt):
        o_ref[0, b] = acc2[b * ROWS:b * ROWS + Nw, :].astype(o_ref.dtype)


def _pick_batch_blocking(B, per_image_bytes):
    """(Bg, Bt) with Bg*Bt == B: keep a >=2 'parallel' grid extent when possible
    (v7x has 2 TensorCores) and stack the rest per step, capped by a VMEM budget."""
    if B >= 4 and B % 2 == 0:
        Bg, Bt = 2, B // 2
    else:
        Bg, Bt = B, 1
    budget = 24 * 1024 * 1024
    while Bt > 1 and per_image_bytes * Bt > budget:
        nt = Bt // 2
        while nt > 1 and B % nt != 0:
            nt -= 1
        Bt = max(nt, 1)
        Bg = B // Bt
    return Bg, Bt


def _fused_level(z, w1_s2d, b1, w2_flat, b2):
    """z: (B, H, W, Cin) NHWC f32 (embeddings already added).
    Returns (B, H//2, W//2, C1) NHWC f32."""
    B, H, W, Cin = z.shape
    assert H % 2 == 0 and W % 2 == 0, "even spatial dims required"
    Ho, Wo = H // 2, W // 2
    Hs, Ws = Ho + 1, Wo + 1
    Nw = Ho * Ws                        # wide-grid rows per image (incl. halo column)
    K1 = 4 * Cin
    C1 = w2_flat.shape[-1]

    ROWS = _round_up(Nw + Ws + 1, 8)    # per-image row pitch (>= Ws+1 zero-gap rows)
    LP = _round_up(Ws + 1, 8)           # leading zero rows in the conv2 scratch

    per_image = (2 * ROWS * K1 * 2 + 2 * Nw * C1 * 4
                 + ROWS * C1 * 2 + 2 * ROWS * C1 * 4)
    Bg, Bt = _pick_batch_blocking(B, per_image)
    Mtot = (Bt - 1) * ROWS + Nw

    # pad-by-1 + space-to-depth (stays channels-last), cast activations to bf16,
    # pad each image to the ROWS pitch, and stack Bt images per grid step.
    zp = jnp.pad(z, ((0, 0), (1, 1), (1, 1), (0, 0)))           # (B, H+2, W+2, Cin)
    xs = zp.reshape(B, Hs, 2, Ws, 2, Cin).transpose(0, 1, 3, 2, 4, 5)
    xs = xs.reshape(B, Hs * Ws, K1)
    xs = jnp.pad(xs, ((0, 0), (0, ROWS - Hs * Ws), (0, 0))).astype(jnp.bfloat16)
    xs = xs.reshape(Bg, Bt * ROWS, K1)

    kern = functools.partial(_level_kernel, Bt=Bt, ROWS=ROWS, Nw=Nw, Ws=Ws,
                             C1=C1, LP=LP, Mtot=Mtot)
    out = pl.pallas_call(
        kern,
        out_shape=jax.ShapeDtypeStruct((Bg, Bt, Nw, C1), jnp.float32),
        grid=(Bg,),
        in_specs=[
            pl.BlockSpec((1, Bt * ROWS, K1), lambda g: (g, 0, 0)),
            pl.BlockSpec((4, K1, C1), lambda g: (0, 0, 0)),     # weights: constant
            pl.BlockSpec((1, C1), lambda g: (0, 0)),            # index_maps, stay
            pl.BlockSpec((9, C1, C1), lambda g: (0, 0, 0)),     # VMEM-resident
            pl.BlockSpec((1, C1), lambda g: (0, 0)),
        ],
        out_specs=pl.BlockSpec((1, Bt, Nw, C1), lambda g: (g, 0, 0, 0)),
        scratch_shapes=[pltpu.VMEM((LP + Bt * ROWS, C1), jnp.bfloat16)],
        compiler_params=pltpu.CompilerParams(
            dimension_semantics=("parallel",),
            vmem_limit_bytes=_vmem_limit_bytes(),
        ),
    )(xs, w1_s2d, b1, w2_flat, b2)

    # drop the wide-grid halo column; stay channels-last (no NCHW round trip)
    out = out.reshape(B, Ho, Ws, C1)[:, :, :Wo, :]
    return out


# ---------------------------------------------------------------------------
# Module wrapper
# ---------------------------------------------------------------------------
class FeatureExtractorPallas:
    def __init__(self, key, num_channels, feature_nums,
                 spatial_embed_omega=4.0, spatial_embed_s=0.5):
        self.omega = spatial_embed_omega
        self.s = spatial_embed_s
        self.levels = []       # kernel-layout params (weights bf16, biases f32)
        self.raw_params = []   # HWIO f32 params (for the pure-JAX reference)
        ch_i = num_channels
        for ch_o in feature_nums:
            key, k1, k2, k3, k4 = jax.random.split(key, 5)
            bnd1 = 1.0 / float((ch_i * 9) ** 0.5)      # PyTorch Conv2d default init bound
            w1 = jax.random.uniform(k1, (3, 3, ch_i, ch_o), jnp.float32, -bnd1, bnd1)
            b1 = jax.random.uniform(k2, (1, ch_o), jnp.float32, -bnd1, bnd1)
            bnd2 = 1.0 / float((ch_o * 9) ** 0.5)
            w2 = jax.random.uniform(k3, (3, 3, ch_o, ch_o), jnp.float32, -bnd2, bnd2)
            b2 = jax.random.uniform(k4, (1, ch_o), jnp.float32, -bnd2, bnd2)

            # Fold the stride-2 3x3 weight into a dense 2x2 conv over the
            # space-to-depth input: W[(dY,dX), (py,px,c), co] = w1[2dY+py, 2dX+px, c, co]
            w1_s2d = jnp.zeros((2, 2, 2, 2, ch_i, ch_o), jnp.float32)
            for dy in range(3):
                for dx in range(3):
                    w1_s2d = w1_s2d.at[dy // 2, dx // 2, dy % 2, dx % 2].set(w1[dy, dx])
            w1_s2d = w1_s2d.reshape(4, 4 * ch_i, ch_o)
            w2_flat = w2.reshape(9, ch_o, ch_o)

            self.levels.append((w1_s2d.astype(jnp.bfloat16), b1,
                                w2_flat.astype(jnp.bfloat16), b2))
            self.raw_params.append((w1, b1, w2, b2))
            ch_i = ch_o

    def __call__(self, f, x, y, t):
        # f: (B, C0, H, W) NCHW; x, y: (B, 1, H, W); t: (B,).  Returns NCHW features.
        results = []
        semb = jnp.transpose(get_spatial_embedding(x, y, self.omega, self.s),
                             (0, 2, 3, 1))                     # (B, H, W, 1)
        f = jnp.transpose(f, (0, 2, 3, 1))                     # channels-last chain
        for (w1_s2d, b1, w2_flat, b2) in self.levels:
            cin = f.shape[-1]
            temb = get_timestep_embedding(t, cin)              # (B, Cin)
            # TODO(synk): fold the semb/temb adds into the kernel prologue to save
            # one more HBM pass (needs an s2d'd semb operand + pad-validity mask).
            z = f + semb + temb[:, None, None, :]
            f = _fused_level(z, w1_s2d, b1, w2_flat, b2)       # (B, H/2, W/2, C1)
            results.append(jnp.transpose(f, (0, 3, 1, 2)))     # NCHW for API parity
            semb = avg_pool_2x2_nhwc(semb)
        return results


# ---------------------------------------------------------------------------
# Pure-JAX reference (for in-script correctness check)
# ---------------------------------------------------------------------------
def _reference_forward(module, f, x, y, t):
    results = []
    semb = get_spatial_embedding(x, y, module.omega, module.s)
    for (w1, b1, w2, b2) in module.raw_params:
        cin = f.shape[1]
        temb = get_timestep_embedding(t, cin)
        z = f + semb + temb[:, :, None, None]
        a = lax.conv_general_dilated(z, w1, window_strides=(2, 2),
                                     padding=((1, 1), (1, 1)),
                                     dimension_numbers=("NCHW", "HWIO", "NCHW"))
        a = a + b1.reshape(1, -1, 1, 1)
        a = jnp.where(a >= 0.0, a, 0.1 * a)
        a = lax.conv_general_dilated(a, w2, window_strides=(1, 1),
                                     padding=((1, 1), (1, 1)),
                                     dimension_numbers=("NCHW", "HWIO", "NCHW"))
        a = a + b2.reshape(1, -1, 1, 1)
        a = jnp.where(a >= 0.0, a, 0.1 * a)
        f = a
        results.append(f)
        semb = _avg_pool_2x2_nchw(semb)
    return results


if __name__ == "__main__":
    key = jax.random.PRNGKey(0)
    B, C0, H, W = 2, 4, 16, 16
    feature_nums = [32, 64]

    k1, kp = jax.random.split(key, 2)
    f = jax.random.normal(k1, (B, C0, H, W), jnp.float32)
    ys, xs = jnp.meshgrid(jnp.linspace(-1.0, 1.0, H),
                          jnp.linspace(-1.0, 1.0, W), indexing="ij")
    x = jnp.broadcast_to(xs[None, None], (B, 1, H, W)).astype(jnp.float32)
    y = jnp.broadcast_to(ys[None, None], (B, 1, H, W)).astype(jnp.float32)
    t = jnp.arange(B, dtype=jnp.float32) + 1.0

    module = FeatureExtractorPallas(kp, num_channels=C0, feature_nums=feature_nums,
                                    spatial_embed_omega=4.0, spatial_embed_s=0.5)
    fwd = jax.jit(module.__call__)
    outs = jax.block_until_ready(fwd(f, x, y, t))

    assert len(outs) == len(feature_nums)
    assert outs[0].shape == (B, feature_nums[0], H // 2, W // 2), outs[0].shape
    assert outs[1].shape == (B, feature_nums[1], H // 4, W // 4), outs[1].shape
    for o in outs:
        assert bool(jnp.all(jnp.isfinite(o)))

    # correctness vs. a pure-JAX conv reference (tolerance covers bf16 MXU inputs)
    refs = _reference_forward(module, f, x, y, t)
    for o, r in zip(outs, refs):
        err = float(jnp.max(jnp.abs(o - r)))
        assert err < 5e-2, f"mismatch vs reference: {err}"

    print("KERNEL_OK")
</pallas_src>

<mosaic_0001>
module attributes {stable_mosaic.version = 11 : i64} {
  func.func @_level_kernel(%arg0: i32, %arg1: memref<1x88x16xbf16, #tpu.memory_space<vmem>>, %arg2: memref<4x16x32xbf16, #tpu.memory_space<vmem>>, %arg3: memref<1x32xf32, #tpu.memory_space<vmem>>, %arg4: memref<9x32x32xbf16, #tpu.memory_space<vmem>>, %arg5: memref<1x32xf32, #tpu.memory_space<vmem>>, %arg6: memref<1x1x72x32xf32, #tpu.memory_space<vmem>>, %arg7: memref<104x32xbf16, #tpu.memory_space<vmem>>) attributes {dimension_semantics = [#tpu.dimension_semantics<parallel>], iteration_bounds = array<i64: 2>, scalar_prefetch = 0 : i64, scratch_operands = 1 : i64, tpu.core_type = #tpu.core_type<tc>, window_params = [{transform_indices = @transform_0, window_bounds = array<i64: 1, 88, 16>}, {pipeline_mode = #tpu.pipeline_mode<synchronous>, transform_indices = @transform_1, window_bounds = array<i64: 4, 16, 32>}, {pipeline_mode = #tpu.pipeline_mode<synchronous>, transform_indices = @transform_2, window_bounds = array<i64: 1, 32>}, {pipeline_mode = #tpu.pipeline_mode<synchronous>, transform_indices = @transform_3, window_bounds = array<i64: 9, 32, 32>}, {pipeline_mode = #tpu.pipeline_mode<synchronous>, transform_indices = @transform_4, window_bounds = array<i64: 1, 32>}, {transform_indices = @transform_5, window_bounds = array<i64: 1, 1, 72, 32>}]} {
    %cst = arith.constant 0.000000e+00 : bf16
    %0 = vector.broadcast %cst : bf16 to vector<16x32xbf16>
    %c0 = arith.constant 0 : index
    %c0_0 = arith.constant 0 : index
    %1 = vector.load %arg7[%c0, %c0_0] : memref<104x32xbf16, #tpu.memory_space<vmem>>, vector<16x32xbf16>
    tpu.vector_store %arg7[%c0, %c0_0], %0 {strides = array<i32>} : memref<104x32xbf16, #tpu.memory_space<vmem>>, vector<16x32xbf16>,
    %cst_1 = arith.constant 0.000000e+00 : bf16
    %2 = vector.broadcast %cst_1 : bf16 to vector<16x32xbf16>
    %c88 = arith.constant 88 : index
    %c0_2 = arith.constant 0 : index
    %3 = vector.load %arg7[%c88, %c0_2] : memref<104x32xbf16, #tpu.memory_space<vmem>>, vector<16x32xbf16>
    tpu.vector_store %arg7[%c88, %c0_2], %2 {strides = array<i32>} : memref<104x32xbf16, #tpu.memory_space<vmem>>, vector<16x32xbf16>,
    %c0_3 = arith.constant 0 : index
    %c0_4 = arith.constant 0 : index
    %c0_5 = arith.constant 0 : index
    %4 = vector.load %arg1[%c0_3, %c0_4, %c0_5] : memref<1x88x16xbf16, #tpu.memory_space<vmem>>, vector<1x88x16xbf16>
    %5 = vector.shape_cast %4 : vector<1x88x16xbf16> to vector<88x16xbf16>
    %cst_6 = arith.constant 0.000000e+00 : f32
    %6 = vector.broadcast %cst_6 : f32 to vector<72x32xf32>
    %7 = vector.extract_strided_slice %5 {offsets = [0, 0], sizes = [72, 16], strides = [1, 1]} : vector<88x16xbf16> to vector<72x16xbf16>
    %c0_7 = arith.constant 0 : index
    %c0_8 = arith.constant 0 : index
    %c0_9 = arith.constant 0 : index
    %8 = vector.load %arg2[%c0_7, %c0_8, %c0_9] : memref<4x16x32xbf16, #tpu.memory_space<vmem>>, vector<1x16x32xbf16>
    %9 = vector.shape_cast %8 : vector<1x16x32xbf16> to vector<16x32xbf16>
    %cst_10 = arith.constant dense<0.000000e+00> : vector<72x32xf32>
    %10 = tpu.matmul %7, %9, %cst_10 {dimension_numbers = #tpu.dot_dimension_numbers<[1], [0], [0], [1], [0, 0, 1, 1], [], []>} : vector<72x16xbf16>, vector<16x32xbf16>, vector<72x32xf32> -> vector<72x32xf32>
    %11 = arith.addf %6, %10 : vector<72x32xf32>
    %12 = vector.extract_strided_slice %5 {offsets = [1, 0], sizes = [72, 16], strides = [1, 1]} : vector<88x16xbf16> to vector<72x16xbf16>
    %c1 = arith.constant 1 : index
    %c0_11 = arith.constant 0 : index
    %c0_12 = arith.constant 0 : index
    %13 = vector.load %arg2[%c1, %c0_11, %c0_12] : memref<4x16x32xbf16, #tpu.memory_space<vmem>>, vector<1x16x32xbf16>
    %14 = vector.shape_cast %13 : vector<1x16x32xbf16> to vector<16x32xbf16>
    %cst_13 = arith.constant dense<0.000000e+00> : vector<72x32xf32>
    %15 = tpu.matmul %12, %14, %cst_13 {dimension_numbers = #tpu.dot_dimension_numbers<[1], [0], [0], [1], [0, 0, 1, 1], [], []>} : vector<72x16xbf16>, vector<16x32xbf16>, vector<72x32xf32> -> vector<72x32xf32>
    %16 = arith.addf %11, %15 : vector<72x32xf32>
    %17 = vector.extract_strided_slice %5 {offsets = [9, 0], sizes = [72, 16], strides = [1, 1]} : vector<88x16xbf16> to vector<72x16xbf16>
    %c2 = arith.constant 2 : index
    %c0_14 = arith.constant 0 : index
    %c0_15 = arith.constant 0 : index
    %18 = vector.load %arg2[%c2, %c0_14, %c0_15] : memref<4x16x32xbf16, #tpu.memory_space<vmem>>, vector<1x16x32xbf16>
    %19 = vector.shape_cast %18 : vector<1x16x32xbf16> to vector<16x32xbf16>
    %cst_16 = arith.constant dense<0.000000e+00> : vector<72x32xf32>
    %20 = tpu.matmul %17, %19, %cst_16 {dimension_numbers = #tpu.dot_dimension_numbers<[1], [0], [0], [1], [0, 0, 1, 1], [], []>} : vector<72x16xbf16>, vector<16x32xbf16>, vector<72x32xf32> -> vector<72x32xf32>
    %21 = arith.addf %16, %20 : vector<72x32xf32>
    %22 = vector.extract_strided_slice %5 {offsets = [10, 0], sizes = [72, 16], strides = [1, 1]} : vector<88x16xbf16> to vector<72x16xbf16>
    %c3 = arith.constant 3 : index
    %c0_17 = arith.constant 0 : index
    %c0_18 = arith.constant 0 : index
    %23 = vector.load %arg2[%c3, %c0_17, %c0_18] : memref<4x16x32xbf16, #tpu.memory_space<vmem>>, vector<1x16x32xbf16>
    %24 = vector.shape_cast %23 : vector<1x16x32xbf16> to vector<16x32xbf16>
    %cst_19 = arith.constant dense<0.000000e+00> : vector<72x32xf32>
    %25 = tpu.matmul %22, %24, %cst_19 {dimension_numbers = #tpu.dot_dimension_numbers<[1], [0], [0], [1], [0, 0, 1, 1], [], []>} : vector<72x16xbf16>, vector<16x32xbf16>, vector<72x32xf32> -> vector<72x32xf32>
    %26 = arith.addf %21, %25 : vector<72x32xf32>
    %c0_20 = arith.constant 0 : index
    %c0_21 = arith.constant 0 : index
    %27 = vector.load %arg3[%c0_20, %c0_21] : memref<1x32xf32, #tpu.memory_space<vmem>>, vector<1x32xf32>
    %28 = vector.broadcast %27 : vector<1x32xf32> to vector<72x32xf32>
    %29 = arith.addf %26, %28 : vector<72x32xf32>
    %cst_22 = arith.constant 0.000000e+00 : f32
    %30 = vector.broadcast %cst_22 : f32 to vector<72x32xf32>
    %31 = arith.cmpf oge, %29, %30 : vector<72x32xf32>
    %cst_23 = arith.constant 1.000000e-01 : f32
    %32 = vector.broadcast %cst_23 : f32 to vector<72x32xf32>
    %33 = arith.mulf %32, %29 : vector<72x32xf32>
    %34 = arith.select %31, %29, %33 : vector<72x32xi1>, vector<72x32xf32>
    %35 = tpu.iota {dimensions = array<i32: 0>} : vector<72x1xi32>
    %c88_i32 = arith.constant 88 : i32
    %c0_i32 = arith.constant 0 : i32
    %36 = arith.cmpi eq, %c88_i32, %c0_i32 : i32
    %c1_i32 = arith.constant 1 : i32
    %37 = arith.select %36, %c1_i32, %c88_i32 : i32
    %38 = vector.broadcast %37 : i32 to vector<72x1xi32>
    %39 = arith.remsi %35, %38 : vector<72x1xi32>
    %c0_i32_24 = arith.constant 0 : i32
    %40 = vector.broadcast %c0_i32_24 : i32 to vector<72x1xi32>
    %41 = arith.cmpi ne, %39, %40 : vector<72x1xi32>
    %c0_i32_25 = arith.constant 0 : i32
    %42 = vector.broadcast %c0_i32_25 : i32 to vector<72x1xi32>
    %43 = arith.cmpi slt, %39, %42 : vector<72x1xi32>
    %c0_i32_26 = arith.constant 0 : i32
    %44 = arith.cmpi slt, %37, %c0_i32_26 : i32
    %45 = vector.broadcast %44 : i1 to vector<72x1xi1>
    %46 = vector.broadcast %45 : vector<72x1xi1> to vector<72x1xi1>
    %47 = arith.xori %43, %46 : vector<72x1xi1>
    %48 = arith.andi %47, %41 : vector<72x1xi1>
    %49 = vector.broadcast %37 : i32 to vector<72x1xi32>
    %50 = arith.addi %39, %49 : vector<72x1xi32>
    %51 = arith.select %48, %50, %39 : vector<72x1xi1>, vector<72x1xi32>
    %c72_i32 = arith.constant 72 : i32
    %52 = vector.broadcast %c72_i32 : i32 to vector<72x1xi32>
    %53 = arith.cmpi slt, %51, %52 : vector<72x1xi32>
    %c9_i32 = arith.constant 9 : i32
    %c0_i32_27 = arith.constant 0 : i32
    %54 = arith.cmpi eq, %c9_i32, %c0_i32_27 : i32
    %c1_i32_28 = arith.constant 1 : i32
    %55 = arith.select %54, %c1_i32_28, %c9_i32 : i32
    %56 = vector.broadcast %55 : i32 to vector<72x1xi32>
    %57 = arith.remsi %51, %56 : vector<72x1xi32>
    %c0_i32_29 = arith.constant 0 : i32
    %58 = vector.broadcast %c0_i32_29 : i32 to vector<72x1xi32>
    %59 = arith.cmpi ne, %57, %58 : vector<72x1xi32>
    %c0_i32_30 = arith.constant 0 : i32
    %60 = vector.broadcast %c0_i32_30 : i32 to vector<72x1xi32>
    %61 = arith.cmpi slt, %57, %60 : vector<72x1xi32>
    %c0_i32_31 = arith.constant 0 : i32
    %62 = arith.cmpi slt, %55, %c0_i32_31 : i32
    %63 = vector.broadcast %62 : i1 to vector<72x1xi1>
    %64 = vector.broadcast %63 : vector<72x1xi1> to vector<72x1xi1>
    %65 = arith.xori %61, %64 : vector<72x1xi1>
    %66 = arith.andi %65, %59 : vector<72x1xi1>
    %67 = vector.broadcast %55 : i32 to vector<72x1xi32>
    %68 = arith.addi %57, %67 : vector<72x1xi32>
    %69 = arith.select %66, %68, %57 : vector<72x1xi1>, vector<72x1xi32>
    %c8_i32 = arith.constant 8 : i32
    %70 = vector.broadcast %c8_i32 : i32 to vector<72x1xi32>
    %71 = arith.cmpi ne, %69, %70 : vector<72x1xi32>
    %72 = arith.andi %53, %71 : vector<72x1xi1>
    %cst_32 = arith.constant 0.000000e+00 : f32
    %73 = vector.shape_cast %72 : vector<72x1xi1> to vector<72x1xi1>
    %74 = vector.broadcast %73 : vector<72x1xi1> to vector<72x32xi1>
    %75 = vector.broadcast %cst_32 : f32 to vector<72x32xf32>
    %76 = arith.select %74, %34, %75 : vector<72x32xi1>, vector<72x32xf32>
    %77 = arith.truncf %76 : vector<72x32xf32> to vector<72x32xbf16>
    %c16 = arith.constant 16 : index
    %c0_33 = arith.constant 0 : index
    %78 = vector.load %arg7[%c16, %c0_33] : memref<104x32xbf16, #tpu.memory_space<vmem>>, vector<72x32xbf16>
    tpu.vector_store %arg7[%c16, %c0_33], %77 {strides = array<i32>} : memref<104x32xbf16, #tpu.memory_space<vmem>>, vector<72x32xbf16>,
    %cst_34 = arith.constant 0.000000e+00 : f32
    %79 = vector.broadcast %cst_34 : f32 to vector<72x32xf32>
    %c6 = arith.constant 6 : index
    %c0_35 = arith.constant 0 : index
    %80 = vector.load %arg7[%c6, %c0_35] : memref<104x32xbf16, #tpu.memory_space<vmem>>, vector<72x32xbf16>
    %c0_36 = arith.constant 0 : index
    %c0_37 = arith.constant 0 : index
    %c0_38 = arith.constant 0 : index
    %81 = vector.load %arg4[%c0_36, %c0_37, %c0_38] : memref<9x32x32xbf16, #tpu.memory_space<vmem>>, vector<1x32x32xbf16>
    %82 = vector.shape_cast %81 : vector<1x32x32xbf16> to vector<32x32xbf16>
    %cst_39 = arith.constant dense<0.000000e+00> : vector<72x32xf32>
    %83 = tpu.matmul %80, %82, %cst_39 {dimension_numbers = #tpu.dot_dimension_numbers<[1], [0], [0], [1], [0, 0, 1, 1], [], []>} : vector<72x32xbf16>, vector<32x32xbf16>, vector<72x32xf32> -> vector<72x32xf32>
    %84 = arith.addf %79, %83 : vector<72x32xf32>
    %c7 = arith.constant 7 : index
    %c0_40 = arith.constant 0 : index
    %85 = vector.load %arg7[%c7, %c0_40] : memref<104x32xbf16, #tpu.memory_space<vmem>>, vector<72x32xbf16>
    %c1_41 = arith.constant 1 : index
    %c0_42 = arith.constant 0 : index
    %c0_43 = arith.constant 0 : index
    %86 = vector.load %arg4[%c1_41, %c0_42, %c0_43] : memref<9x32x32xbf16, #tpu.memory_space<vmem>>, vector<1x32x32xbf16>
    %87 = vector.shape_cast %86 : vector<1x32x32xbf16> to vector<32x32xbf16>
    %cst_44 = arith.constant dense<0.000000e+00> : vector<72x32xf32>
    %88 = tpu.matmul %85, %87, %cst_44 {dimension_numbers = #tpu.dot_dimension_numbers<[1], [0], [0], [1], [0, 0, 1, 1], [], []>} : vector<72x32xbf16>, vector<32x32xbf16>, vector<72x32xf32> -> vector<72x32xf32>
    %89 = arith.addf %84, %88 : vector<72x32xf32>
    %c8 = arith.constant 8 : index
    %c0_45 = arith.constant 0 : index
    %90 = vector.load %arg7[%c8, %c0_45] : memref<104x32xbf16, #tpu.memory_space<vmem>>, vector<72x32xbf16>
    %c2_46 = arith.constant 2 : index
    %c0_47 = arith.constant 0 : index
    %c0_48 = arith.constant 0 : index
    %91 = vector.load %arg4[%c2_46, %c0_47, %c0_48] : memref<9x32x32xbf16, #tpu.memory_space<vmem>>, vector<1x32x32xbf16>
    %92 = vector.shape_cast %91 : vector<1x32x32xbf16> to vector<32x32xbf16>
    %cst_49 = arith.constant dense<0.000000e+00> : vector<72x32xf32>
    %93 = tpu.matmul %90, %92, %cst_49 {dimension_numbers = #tpu.dot_dimension_numbers<[1], [0], [0], [1], [0, 0, 1, 1], [], []>} : vector<72x32xbf16>, vector<32x32xbf16>, vector<72x32xf32> -> vector<72x32xf32>
    %94 = arith.addf %89, %93 : vector<72x32xf32>
    %c15 = arith.constant 15 : index
    %c0_50 = arith.constant 0 : index
    %95 = vector.load %arg7[%c15, %c0_50] : memref<104x32xbf16, #tpu.memory_space<vmem>>, vector<72x32xbf16>
    %c3_51 = arith.constant 3 : index
    %c0_52 = arith.constant 0 : index
    %c0_53 = arith.constant 0 : index
    %96 = vector.load %arg4[%c3_51, %c0_52, %c0_53] : memref<9x32x32xbf16, #tpu.memory_space<vmem>>, vector<1x32x32xbf16>
    %97 = vector.shape_cast %96 : vector<1x32x32xbf16> to vector<32x32xbf16>
    %cst_54 = arith.constant dense<0.000000e+00> : vector<72x32xf32>
    %98 = tpu.matmul %95, %97, %cst_54 {dimension_numbers = #tpu.dot_dimension_numbers<[1], [0], [0], [1], [0, 0, 1, 1], [], []>} : vector<72x32xbf16>, vector<32x32xbf16>, vector<72x32xf32> -> vector<72x32xf32>
    %99 = arith.addf %94, %98 : vector<72x32xf32>
    %c16_55 = arith.constant 16 : index
    %c0_56 = arith.constant 0 : index
    %100 = vector.load %arg7[%c16_55, %c0_56] : memref<104x32xbf16, #tpu.memory_space<vmem>>, vector<72x32xbf16>
    %c4 = arith.constant 4 : index
    %c0_57 = arith.constant 0 : index
    %c0_58 = arith.constant 0 : index
    %101 = vector.load %arg4[%c4, %c0_57, %c0_58] : memref<9x32x32xbf16, #tpu.memory_space<vmem>>, vector<1x32x32xbf16>
    %102 = vector.shape_cast %101 : vector<1x32x32xbf16> to vector<32x32xbf16>
    %cst_59 = arith.constant dense<0.000000e+00> : vector<72x32xf32>
    %103 = tpu.matmul %100, %102, %cst_59 {dimension_numbers = #tpu.dot_dimension_numbers<[1], [0], [0], [1], [0, 0, 1, 1], [], []>} : vector<72x32xbf16>, vector<32x32xbf16>, vector<72x32xf32> -> vector<72x32xf32>
    %104 = arith.addf %99, %103 : vector<72x32xf32>
    %c17 = arith.constant 17 : index
    %c0_60 = arith.constant 0 : index
    %105 = vector.load %arg7[%c17, %c0_60] : memref<104x32xbf16, #tpu.memory_space<vmem>>, vector<72x32xbf16>
    %c5 = arith.constant 5 : index
    %c0_61 = arith.constant 0 : index
    %c0_62 = arith.constant 0 : index
    %106 = vector.load %arg4[%c5, %c0_61, %c0_62] : memref<9x32x32xbf16, #tpu.memory_space<vmem>>, vector<1x32x32xbf16>
    %107 = vector.shape_cast %106 : vector<1x32x32xbf16> to vector<32x32xbf16>
    %cst_63 = arith.constant dense<0.000000e+00> : vector<72x32xf32>
    %108 = tpu.matmul %105, %107, %cst_63 {dimension_numbers = #tpu.dot_dimension_numbers<[1], [0], [0], [1], [0, 0, 1, 1], [], []>} : vector<72x32xbf16>, vector<32x32xbf16>, vector<72x32xf32> -> vector<72x32xf32>
    %109 = arith.addf %104, %108 : vector<72x32xf32>
    %c24 = arith.constant 24 : index
    %c0_64 = arith.constant 0 : index
    %110 = vector.load %arg7[%c24, %c0_64] : memref<104x32xbf16, #tpu.memory_space<vmem>>, vector<72x32xbf16>
    %c6_65 = arith.constant 6 : index
    %c0_66 = arith.constant 0 : index
    %c0_67 = arith.constant 0 : index
    %111 = vector.load %arg4[%c6_65, %c0_66, %c0_67] : memref<9x32x32xbf16, #tpu.memory_space<vmem>>, vector<1x32x32xbf16>
    %112 = vector.shape_cast %111 : vector<1x32x32xbf16> to vector<32x32xbf16>
    %cst_68 = arith.constant dense<0.000000e+00> : vector<72x32xf32>
    %113 = tpu.matmul %110, %112, %cst_68 {dimension_numbers = #tpu.dot_dimension_numbers<[1], [0], [0], [1], [0, 0, 1, 1], [], []>} : vector<72x32xbf16>, vector<32x32xbf16>, vector<72x32xf32> -> vector<72x32xf32>
    %114 = arith.addf %109, %113 : vector<72x32xf32>
    %c25 = arith.constant 25 : index
    %c0_69 = arith.constant 0 : index
    %115 = vector.load %arg7[%c25, %c0_69] : memref<104x32xbf16, #tpu.memory_space<vmem>>, vector<72x32xbf16>
    %c7_70 = arith.constant 7 : index
    %c0_71 = arith.constant 0 : index
    %c0_72 = arith.constant 0 : index
    %116 = vector.load %arg4[%c7_70, %c0_71, %c0_72] : memref<9x32x32xbf16, #tpu.memory_space<vmem>>, vector<1x32x32xbf16>
    %117 = vector.shape_cast %116 : vector<1x32x32xbf16> to vector<32x32xbf16>
    %cst_73 = arith.constant dense<0.000000e+00> : vector<72x32xf32>
    %118 = tpu.matmul %115, %117, %cst_73 {dimension_numbers = #tpu.dot_dimension_numbers<[1], [0], [0], [1], [0, 0, 1, 1], [], []>} : vector<72x32xbf16>, vector<32x32xbf16>, vector<72x32xf32> -> vector<72x32xf32>
    %119 = arith.addf %114, %118 : vector<72x32xf32>
    %c26 = arith.constant 26 : index
    %c0_74 = arith.constant 0 : index
    %120 = vector.load %arg7[%c26, %c0_74] : memref<104x32xbf16, #tpu.memory_space<vmem>>, vector<72x32xbf16>
    %c8_75 = arith.constant 8 : index
    %c0_76 = arith.constant 0 : index
    %c0_77 = arith.constant 0 : index
    %121 = vector.load %arg4[%c8_75, %c0_76, %c0_77] : memref<9x32x32xbf16, #tpu.memory_space<vmem>>, vector<1x32x32xbf16>
    %122 = vector.shape_cast %121 : vector<1x32x32xbf16> to vector<32x32xbf16>
    %cst_78 = arith.constant dense<0.000000e+00> : vector<72x32xf32>
    %123 = tpu.matmul %120, %122, %cst_78 {dimension_numbers = #tpu.dot_dimension_numbers<[1], [0], [0], [1], [0, 0, 1, 1], [], []>} : vector<72x32xbf16>, vector<32x32xbf16>, vector<72x32xf32> -> vector<72x32xf32>
    %124 = arith.addf %119, %123 : vector<72x32xf32>
    %c0_79 = arith.constant 0 : index
    %c0_80 = arith.constant 0 : index
    %125 = vector.load %arg5[%c0_79, %c0_80] : memref<1x32xf32, #tpu.memory_space<vmem>>, vector<1x32xf32>
    %126 = vector.broadcast %125 : vector<1x32xf32> to vector<72x32xf32>
    %127 = arith.addf %124, %126 : vector<72x32xf32>
    %cst_81 = arith.constant 0.000000e+00 : f32
    %128 = vector.broadcast %cst_81 : f32 to vector<72x32xf32>
    %129 = arith.cmpf oge, %127, %128 : vector<72x32xf32>
    %cst_82 = arith.constant 1.000000e-01 : f32
    %130 = vector.broadcast %cst_82 : f32 to vector<72x32xf32>
    %131 = arith.mulf %130, %127 : vector<72x32xf32>
    %132 = arith.select %129, %127, %131 : vector<72x32xi1>, vector<72x32xf32>
    %c0_83 = arith.constant 0 : index
    %c0_84 = arith.constant 0 : index
    %c0_85 = arith.constant 0 : index
    %c0_86 = arith.constant 0 : index
    %133 = vector.load %arg6[%c0_83, %c0_84, %c0_85, %c0_86] : memref<1x1x72x32xf32, #tpu.memory_space<vmem>>, vector<1x1x72x32xf32>
    %134 = vector.shape_cast %133 : vector<1x1x72x32xf32> to vector<72x32xf32>
    %135 = vector.shape_cast %132 : vector<72x32xf32> to vector<1x1x72x32xf32>
    tpu.vector_store %arg6[%c0_83, %c0_84, %c0_85, %c0_86], %135 {strides = array<i32>} : memref<1x1x72x32xf32, #tpu.memory_space<vmem>>, vector<1x1x72x32xf32>,
    return
  }
  func.func @transform_0(%arg0: i32) -> (i32, i32, i32) {
    %c0_i32 = arith.constant 0 : i32
    %c0_i32_0 = arith.constant 0 : i32
    %c0_i32_1 = arith.constant 0 : i32
    return %arg0, %c0_i32, %c0_i32_0 : i32, i32, i32
  }
  func.func @transform_1(%arg0: i32) -> (i32, i32, i32) {
    %c0_i32 = arith.constant 0 : i32
    %c0_i32_0 = arith.constant 0 : i32
    %c0_i32_1 = arith.constant 0 : i32
    %c0_i32_2 = arith.constant 0 : i32
    return %c0_i32, %c0_i32_0, %c0_i32_1 : i32, i32, i32
  }
  func.func @transform_2(%arg0: i32) -> (i32, i32) {
    %c0_i32 = arith.constant 0 : i32
    %c0_i32_0 = arith.constant 0 : i32
    %c0_i32_1 = arith.constant 0 : i32
    return %c0_i32, %c0_i32_0 : i32, i32
  }
  func.func @transform_3(%arg0: i32) -> (i32, i32, i32) {
    %c0_i32 = arith.constant 0 : i32
    %c0_i32_0 = arith.constant 0 : i32
    %c0_i32_1 = arith.constant 0 : i32
    %c0_i32_2 = arith.constant 0 : i32
    return %c0_i32, %c0_i32_0, %c0_i32_1 : i32, i32, i32
  }
  func.func @transform_4(%arg0: i32) -> (i32, i32) {
    %c0_i32 = arith.constant 0 : i32
    %c0_i32_0 = arith.constant 0 : i32
    %c0_i32_1 = arith.constant 0 : i32
    return %c0_i32, %c0_i32_0 : i32, i32
  }
  func.func @transform_5(%arg0: i32) -> (i32, i32, i32, i32) {
    %c0_i32 = arith.constant 0 : i32
    %c0_i32_0 = arith.constant 0 : i32
    %c0_i32_1 = arith.constant 0 : i32
    %c0_i32_2 = arith.constant 0 : i32
    return %arg0, %c0_i32, %c0_i32_0, %c0_i32_1 : i32, i32, i32, i32
  }
}

module attributes {stable_mosaic.version = 11 : i64} {
  func.func @_level_kernel(%arg0: i32, %arg1: memref<1x32x128xbf16, #tpu.memory_space<vmem>>, %arg2: memref<4x128x64xbf16, #tpu.memory_space<vmem>>, %arg3: memref<1x64xf32, #tpu.memory_space<vmem>>, %arg4: memref<9x64x64xbf16, #tpu.memory_space<vmem>>, %arg5: memref<1x64xf32, #tpu.memory_space<vmem>>, %arg6: memref<1x1x20x64xf32, #tpu.memory_space<vmem>>, %arg7: memref<40x64xbf16, #tpu.memory_space<vmem>>) attributes {dimension_semantics = [#tpu.dimension_semantics<parallel>], iteration_bounds = array<i64: 2>, scalar_prefetch = 0 : i64, scratch_operands = 1 : i64, tpu.core_type = #tpu.core_type<tc>, window_params = [{transform_indices = @transform_0, window_bounds = array<i64: 1, 32, 128>}, {pipeline_mode = #tpu.pipeline_mode<synchronous>, transform_indices = @transform_1, window_bounds = array<i64: 4, 128, 64>}, {pipeline_mode = #tpu.pipeline_mode<synchronous>, transform_indices = @transform_2, window_bounds = array<i64: 1, 64>}, {pipeline_mode = #tpu.pipeline_mode<synchronous>, transform_indices = @transform_3, window_bounds = array<i64: 9, 64, 64>}, {pipeline_mode = #tpu.pipeline_mode<synchronous>, transform_indices = @transform_4, window_bounds = array<i64: 1, 64>}, {transform_indices = @transform_5, window_bounds = array<i64: 1, 1, 20, 64>}]} {
    %cst = arith.constant 0.000000e+00 : bf16
    %0 = vector.broadcast %cst : bf16 to vector<8x64xbf16>
    %c0 = arith.constant 0 : index
    %c0_0 = arith.constant 0 : index
    %1 = vector.load %arg7[%c0, %c0_0] : memref<40x64xbf16, #tpu.memory_space<vmem>>, vector<8x64xbf16>
    tpu.vector_store %arg7[%c0, %c0_0], %0 {strides = array<i32>} : memref<40x64xbf16, #tpu.memory_space<vmem>>, vector<8x64xbf16>,
    %cst_1 = arith.constant 0.000000e+00 : bf16
    %2 = vector.broadcast %cst_1 : bf16 to vector<16x64xbf16>
    %c24 = arith.constant 24 : index
    %c0_2 = arith.constant 0 : index
    %3 = vector.load %arg7[%c24, %c0_2] : memref<40x64xbf16, #tpu.memory_space<vmem>>, vector<16x64xbf16>
    tpu.vector_store %arg7[%c24, %c0_2], %2 {strides = array<i32>} : memref<40x64xbf16, #tpu.memory_space<vmem>>, vector<16x64xbf16>,
    %c0_3 = arith.constant 0 : index
    %c0_4 = arith.constant 0 : index
    %c0_5 = arith.constant 0 : index
    %4 = vector.load %arg1[%c0_3, %c0_4, %c0_5] : memref<1x32x128xbf16, #tpu.memory_space<vmem>>, vector<1x32x128xbf16>
    %5 = vector.shape_cast %4 : vector<1x32x128xbf16> to vector<32x128xbf16>
    %cst_6 = arith.constant 0.000000e+00 : f32
    %6 = vector.broadcast %cst_6 : f32 to vector<20x64xf32>
    %7 = vector.extract_strided_slice %5 {offsets = [0, 0], sizes = [20, 128], strides = [1, 1]} : vector<32x128xbf16> to vector<20x128xbf16>
    %c0_7 = arith.constant 0 : index
    %c0_8 = arith.constant 0 : index
    %c0_9 = arith.constant 0 : index
    %8 = vector.load %arg2[%c0_7, %c0_8, %c0_9] : memref<4x128x64xbf16, #tpu.memory_space<vmem>>, vector<1x128x64xbf16>
    %9 = vector.shape_cast %8 : vector<1x128x64xbf16> to vector<128x64xbf16>
    %cst_10 = arith.constant dense<0.000000e+00> : vector<20x64xf32>
    %10 = tpu.matmul %7, %9, %cst_10 {dimension_numbers = #tpu.dot_dimension_numbers<[1], [0], [0], [1], [0, 0, 1, 1], [], []>} : vector<20x128xbf16>, vector<128x64xbf16>, vector<20x64xf32> -> vector<20x64xf32>
    %11 = arith.addf %6, %10 : vector<20x64xf32>
    %12 = vector.extract_strided_slice %5 {offsets = [1, 0], sizes = [20, 128], strides = [1, 1]} : vector<32x128xbf16> to vector<20x128xbf16>
    %c1 = arith.constant 1 : index
    %c0_11 = arith.constant 0 : index
    %c0_12 = arith.constant 0 : index
    %13 = vector.load %arg2[%c1, %c0_11, %c0_12] : memref<4x128x64xbf16, #tpu.memory_space<vmem>>, vector<1x128x64xbf16>
    %14 = vector.shape_cast %13 : vector<1x128x64xbf16> to vector<128x64xbf16>
    %cst_13 = arith.constant dense<0.000000e+00> : vector<20x64xf32>
    %15 = tpu.matmul %12, %14, %cst_13 {dimension_numbers = #tpu.dot_dimension_numbers<[1], [0], [0], [1], [0, 0, 1, 1], [], []>} : vector<20x128xbf16>, vector<128x64xbf16>, vector<20x64xf32> -> vector<20x64xf32>
    %16 = arith.addf %11, %15 : vector<20x64xf32>
    %17 = vector.extract_strided_slice %5 {offsets = [5, 0], sizes = [20, 128], strides = [1, 1]} : vector<32x128xbf16> to vector<20x128xbf16>
    %c2 = arith.constant 2 : index
    %c0_14 = arith.constant 0 : index
    %c0_15 = arith.constant 0 : index
    %18 = vector.load %arg2[%c2, %c0_14, %c0_15] : memref<4x128x64xbf16, #tpu.memory_space<vmem>>, vector<1x128x64xbf16>
    %19 = vector.shape_cast %18 : vector<1x128x64xbf16> to vector<128x64xbf16>
    %cst_16 = arith.constant dense<0.000000e+00> : vector<20x64xf32>
    %20 = tpu.matmul %17, %19, %cst_16 {dimension_numbers = #tpu.dot_dimension_numbers<[1], [0], [0], [1], [0, 0, 1, 1], [], []>} : vector<20x128xbf16>, vector<128x64xbf16>, vector<20x64xf32> -> vector<20x64xf32>
    %21 = arith.addf %16, %20 : vector<20x64xf32>
    %22 = vector.extract_strided_slice %5 {offsets = [6, 0], sizes = [20, 128], strides = [1, 1]} : vector<32x128xbf16> to vector<20x128xbf16>
    %c3 = arith.constant 3 : index
    %c0_17 = arith.constant 0 : index
    %c0_18 = arith.constant 0 : index
    %23 = vector.load %arg2[%c3, %c0_17, %c0_18] : memref<4x128x64xbf16, #tpu.memory_space<vmem>>, vector<1x128x64xbf16>
    %24 = vector.shape_cast %23 : vector<1x128x64xbf16> to vector<128x64xbf16>
    %cst_19 = arith.constant dense<0.000000e+00> : vector<20x64xf32>
    %25 = tpu.matmul %22, %24, %cst_19 {dimension_numbers = #tpu.dot_dimension_numbers<[1], [0], [0], [1], [0, 0, 1, 1], [], []>} : vector<20x128xbf16>, vector<128x64xbf16>, vector<20x64xf32> -> vector<20x64xf32>
    %26 = arith.addf %21, %25 : vector<20x64xf32>
    %c0_20 = arith.constant 0 : index
    %c0_21 = arith.constant 0 : index
    %27 = vector.load %arg3[%c0_20, %c0_21] : memref<1x64xf32, #tpu.memory_space<vmem>>, vector<1x64xf32>
    %28 = vector.broadcast %27 : vector<1x64xf32> to vector<20x64xf32>
    %29 = arith.addf %26, %28 : vector<20x64xf32>
    %cst_22 = arith.constant 0.000000e+00 : f32
    %30 = vector.broadcast %cst_22 : f32 to vector<20x64xf32>
    %31 = arith.cmpf oge, %29, %30 : vector<20x64xf32>
    %cst_23 = arith.constant 1.000000e-01 : f32
    %32 = vector.broadcast %cst_23 : f32 to vector<20x64xf32>
    %33 = arith.mulf %32, %29 : vector<20x64xf32>
    %34 = arith.select %31, %29, %33 : vector<20x64xi1>, vector<20x64xf32>
    %35 = tpu.iota {dimensions = array<i32: 0>} : vector<20x1xi32>
    %c32_i32 = arith.constant 32 : i32
    %c0_i32 = arith.constant 0 : i32
    %36 = arith.cmpi eq, %c32_i32, %c0_i32 : i32
    %c1_i32 = arith.constant 1 : i32
    %37 = arith.select %36, %c1_i32, %c32_i32 : i32
    %38 = vector.broadcast %37 : i32 to vector<20x1xi32>
    %39 = arith.remsi %35, %38 : vector<20x1xi32>
    %c0_i32_24 = arith.constant 0 : i32
    %40 = vector.broadcast %c0_i32_24 : i32 to vector<20x1xi32>
    %41 = arith.cmpi ne, %39, %40 : vector<20x1xi32>
    %c0_i32_25 = arith.constant 0 : i32
    %42 = vector.broadcast %c0_i32_25 : i32 to vector<20x1xi32>
    %43 = arith.cmpi slt, %39, %42 : vector<20x1xi32>
    %c0_i32_26 = arith.constant 0 : i32
    %44 = arith.cmpi slt, %37, %c0_i32_26 : i32
    %45 = vector.broadcast %44 : i1 to vector<20x1xi1>
    %46 = vector.broadcast %45 : vector<20x1xi1> to vector<20x1xi1>
    %47 = arith.xori %43, %46 : vector<20x1xi1>
    %48 = arith.andi %47, %41 : vector<20x1xi1>
    %49 = vector.broadcast %37 : i32 to vector<20x1xi32>
    %50 = arith.addi %39, %49 : vector<20x1xi32>
    %51 = arith.select %48, %50, %39 : vector<20x1xi1>, vector<20x1xi32>
    %c20_i32 = arith.constant 20 : i32
    %52 = vector.broadcast %c20_i32 : i32 to vector<20x1xi32>
    %53 = arith.cmpi slt, %51, %52 : vector<20x1xi32>
    %c5_i32 = arith.constant 5 : i32
    %c0_i32_27 = arith.constant 0 : i32
    %54 = arith.cmpi eq, %c5_i32, %c0_i32_27 : i32
    %c1_i32_28 = arith.constant 1 : i32
    %55 = arith.select %54, %c1_i32_28, %c5_i32 : i32
    %56 = vector.broadcast %55 : i32 to vector<20x1xi32>
    %57 = arith.remsi %51, %56 : vector<20x1xi32>
    %c0_i32_29 = arith.constant 0 : i32
    %58 = vector.broadcast %c0_i32_29 : i32 to vector<20x1xi32>
    %59 = arith.cmpi ne, %57, %58 : vector<20x1xi32>
    %c0_i32_30 = arith.constant 0 : i32
    %60 = vector.broadcast %c0_i32_30 : i32 to vector<20x1xi32>
    %61 = arith.cmpi slt, %57, %60 : vector<20x1xi32>
    %c0_i32_31 = arith.constant 0 : i32
    %62 = arith.cmpi slt, %55, %c0_i32_31 : i32
    %63 = vector.broadcast %62 : i1 to vector<20x1xi1>
    %64 = vector.broadcast %63 : vector<20x1xi1> to vector<20x1xi1>
    %65 = arith.xori %61, %64 : vector<20x1xi1>
    %66 = arith.andi %65, %59 : vector<20x1xi1>
    %67 = vector.broadcast %55 : i32 to vector<20x1xi32>
    %68 = arith.addi %57, %67 : vector<20x1xi32>
    %69 = arith.select %66, %68, %57 : vector<20x1xi1>, vector<20x1xi32>
    %c4_i32 = arith.constant 4 : i32
    %70 = vector.broadcast %c4_i32 : i32 to vector<20x1xi32>
    %71 = arith.cmpi ne, %69, %70 : vector<20x1xi32>
    %72 = arith.andi %53, %71 : vector<20x1xi1>
    %cst_32 = arith.constant 0.000000e+00 : f32
    %73 = vector.shape_cast %72 : vector<20x1xi1> to vector<20x1xi1>
    %74 = vector.broadcast %73 : vector<20x1xi1> to vector<20x64xi1>
    %75 = vector.broadcast %cst_32 : f32 to vector<20x64xf32>
    %76 = arith.select %74, %34, %75 : vector<20x64xi1>, vector<20x64xf32>
    %77 = arith.truncf %76 : vector<20x64xf32> to vector<20x64xbf16>
    %c8 = arith.constant 8 : index
    %c0_33 = arith.constant 0 : index
    %78 = vector.load %arg7[%c8, %c0_33] : memref<40x64xbf16, #tpu.memory_space<vmem>>, vector<20x64xbf16>
    tpu.vector_store %arg7[%c8, %c0_33], %77 {strides = array<i32>} : memref<40x64xbf16, #tpu.memory_space<vmem>>, vector<20x64xbf16>,
    %cst_34 = arith.constant 0.000000e+00 : f32
    %79 = vector.broadcast %cst_34 : f32 to vector<20x64xf32>
    %c2_35 = arith.constant 2 : index
    %c0_36 = arith.constant 0 : index
    %80 = vector.load %arg7[%c2_35, %c0_36] : memref<40x64xbf16, #tpu.memory_space<vmem>>, vector<20x64xbf16>
    %c0_37 = arith.constant 0 : index
    %c0_38 = arith.constant 0 : index
    %c0_39 = arith.constant 0 : index
    %81 = vector.load %arg4[%c0_37, %c0_38, %c0_39] : memref<9x64x64xbf16, #tpu.memory_space<vmem>>, vector<1x64x64xbf16>
    %82 = vector.shape_cast %81 : vector<1x64x64xbf16> to vector<64x64xbf16>
    %cst_40 = arith.constant dense<0.000000e+00> : vector<20x64xf32>
    %83 = tpu.matmul %80, %82, %cst_40 {dimension_numbers = #tpu.dot_dimension_numbers<[1], [0], [0], [1], [0, 0, 1, 1], [], []>} : vector<20x64xbf16>, vector<64x64xbf16>, vector<20x64xf32> -> vector<20x64xf32>
    %84 = arith.addf %79, %83 : vector<20x64xf32>
    %c3_41 = arith.constant 3 : index
    %c0_42 = arith.constant 0 : index
    %85 = vector.load %arg7[%c3_41, %c0_42] : memref<40x64xbf16, #tpu.memory_space<vmem>>, vector<20x64xbf16>
    %c1_43 = arith.constant 1 : index
    %c0_44 = arith.constant 0 : index
    %c0_45 = arith.constant 0 : index
    %86 = vector.load %arg4[%c1_43, %c0_44, %c0_45] : memref<9x64x64xbf16, #tpu.memory_space<vmem>>, vector<1x64x64xbf16>
    %87 = vector.shape_cast %86 : vector<1x64x64xbf16> to vector<64x64xbf16>
    %cst_46 = arith.constant dense<0.000000e+00> : vector<20x64xf32>
    %88 = tpu.matmul %85, %87, %cst_46 {dimension_numbers = #tpu.dot_dimension_numbers<[1], [0], [0], [1], [0, 0, 1, 1], [], []>} : vector<20x64xbf16>, vector<64x64xbf16>, vector<20x64xf32> -> vector<20x64xf32>
    %89 = arith.addf %84, %88 : vector<20x64xf32>
    %c4 = arith.constant 4 : index
    %c0_47 = arith.constant 0 : index
    %90 = vector.load %arg7[%c4, %c0_47] : memref<40x64xbf16, #tpu.memory_space<vmem>>, vector<20x64xbf16>
    %c2_48 = arith.constant 2 : index
    %c0_49 = arith.constant 0 : index
    %c0_50 = arith.constant 0 : index
    %91 = vector.load %arg4[%c2_48, %c0_49, %c0_50] : memref<9x64x64xbf16, #tpu.memory_space<vmem>>, vector<1x64x64xbf16>
    %92 = vector.shape_cast %91 : vector<1x64x64xbf16> to vector<64x64xbf16>
    %cst_51 = arith.constant dense<0.000000e+00> : vector<20x64xf32>
    %93 = tpu.matmul %90, %92, %cst_51 {dimension_numbers = #tpu.dot_dimension_numbers<[1], [0], [0], [1], [0, 0, 1, 1], [], []>} : vector<20x64xbf16>, vector<64x64xbf16>, vector<20x64xf32> -> vector<20x64xf32>
    %94 = arith.addf %89, %93 : vector<20x64xf32>
    %c7 = arith.constant 7 : index
    %c0_52 = arith.constant 0 : index
    %95 = vector.load %arg7[%c7, %c0_52] : memref<40x64xbf16, #tpu.memory_space<vmem>>, vector<20x64xbf16>
    %c3_53 = arith.constant 3 : index
    %c0_54 = arith.constant 0 : index
    %c0_55 = arith.constant 0 : index
    %96 = vector.load %arg4[%c3_53, %c0_54, %c0_55] : memref<9x64x64xbf16, #tpu.memory_space<vmem>>, vector<1x64x64xbf16>
    %97 = vector.shape_cast %96 : vector<1x64x64xbf16> to vector<64x64xbf16>
    %cst_56 = arith.constant dense<0.000000e+00> : vector<20x64xf32>
    %98 = tpu.matmul %95, %97, %cst_56 {dimension_numbers = #tpu.dot_dimension_numbers<[1], [0], [0], [1], [0, 0, 1, 1], [], []>} : vector<20x64xbf16>, vector<64x64xbf16>, vector<20x64xf32> -> vector<20x64xf32>
    %99 = arith.addf %94, %98 : vector<20x64xf32>
    %c8_57 = arith.constant 8 : index
    %c0_58 = arith.constant 0 : index
    %100 = vector.load %arg7[%c8_57, %c0_58] : memref<40x64xbf16, #tpu.memory_space<vmem>>, vector<20x64xbf16>
    %c4_59 = arith.constant 4 : index
    %c0_60 = arith.constant 0 : index
    %c0_61 = arith.constant 0 : index
    %101 = vector.load %arg4[%c4_59, %c0_60, %c0_61] : memref<9x64x64xbf16, #tpu.memory_space<vmem>>, vector<1x64x64xbf16>
    %102 = vector.shape_cast %101 : vector<1x64x64xbf16> to vector<64x64xbf16>
    %cst_62 = arith.constant dense<0.000000e+00> : vector<20x64xf32>
    %103 = tpu.matmul %100, %102, %cst_62 {dimension_numbers = #tpu.dot_dimension_numbers<[1], [0], [0], [1], [0, 0, 1, 1], [], []>} : vector<20x64xbf16>, vector<64x64xbf16>, vector<20x64xf32> -> vector<20x64xf32>
    %104 = arith.addf %99, %103 : vector<20x64xf32>
    %c9 = arith.constant 9 : index
    %c0_63 = arith.constant 0 : index
    %105 = vector.load %arg7[%c9, %c0_63] : memref<40x64xbf16, #tpu.memory_space<vmem>>, vector<20x64xbf16>
    %c5 = arith.constant 5 : index
    %c0_64 = arith.constant 0 : index
    %c0_65 = arith.constant 0 : index
    %106 = vector.load %arg4[%c5, %c0_64, %c0_65] : memref<9x64x64xbf16, #tpu.memory_space<vmem>>, vector<1x64x64xbf16>
    %107 = vector.shape_cast %106 : vector<1x64x64xbf16> to vector<64x64xbf16>
    %cst_66 = arith.constant dense<0.000000e+00> : vector<20x64xf32>
    %108 = tpu.matmul %105, %107, %cst_66 {dimension_numbers = #tpu.dot_dimension_numbers<[1], [0], [0], [1], [0, 0, 1, 1], [], []>} : vector<20x64xbf16>, vector<64x64xbf16>, vector<20x64xf32> -> vector<20x64xf32>
    %109 = arith.addf %104, %108 : vector<20x64xf32>
    %c12 = arith.constant 12 : index
    %c0_67 = arith.constant 0 : index
    %110 = vector.load %arg7[%c12, %c0_67] : memref<40x64xbf16, #tpu.memory_space<vmem>>, vector<20x64xbf16>
    %c6 = arith.constant 6 : index
    %c0_68 = arith.constant 0 : index
    %c0_69 = arith.constant 0 : index
    %111 = vector.load %arg4[%c6, %c0_68, %c0_69] : memref<9x64x64xbf16, #tpu.memory_space<vmem>>, vector<1x64x64xbf16>
    %112 = vector.shape_cast %111 : vector<1x64x64xbf16> to vector<64x64xbf16>
    %cst_70 = arith.constant dense<0.000000e+00> : vector<20x64xf32>
    %113 = tpu.matmul %110, %112, %cst_70 {dimension_numbers = #tpu.dot_dimension_numbers<[1], [0], [0], [1], [0, 0, 1, 1], [], []>} : vector<20x64xbf16>, vector<64x64xbf16>, vector<20x64xf32> -> vector<20x64xf32>
    %114 = arith.addf %109, %113 : vector<20x64xf32>
    %c13 = arith.constant 13 : index
    %c0_71 = arith.constant 0 : index
    %115 = vector.load %arg7[%c13, %c0_71] : memref<40x64xbf16, #tpu.memory_space<vmem>>, vector<20x64xbf16>
    %c7_72 = arith.constant 7 : index
    %c0_73 = arith.constant 0 : index
    %c0_74 = arith.constant 0 : index
    %116 = vector.load %arg4[%c7_72, %c0_73, %c0_74] : memref<9x64x64xbf16, #tpu.memory_space<vmem>>, vector<1x64x64xbf16>
    %117 = vector.shape_cast %116 : vector<1x64x64xbf16> to vector<64x64xbf16>
    %cst_75 = arith.constant dense<0.000000e+00> : vector<20x64xf32>
    %118 = tpu.matmul %115, %117, %cst_75 {dimension_numbers = #tpu.dot_dimension_numbers<[1], [0], [0], [1], [0, 0, 1, 1], [], []>} : vector<20x64xbf16>, vector<64x64xbf16>, vector<20x64xf32> -> vector<20x64xf32>
    %119 = arith.addf %114, %118 : vector<20x64xf32>
    %c14 = arith.constant 14 : index
    %c0_76 = arith.constant 0 : index
    %120 = vector.load %arg7[%c14, %c0_76] : memref<40x64xbf16, #tpu.memory_space<vmem>>, vector<20x64xbf16>
    %c8_77 = arith.constant 8 : index
    %c0_78 = arith.constant 0 : index
    %c0_79 = arith.constant 0 : index
    %121 = vector.load %arg4[%c8_77, %c0_78, %c0_79] : memref<9x64x64xbf16, #tpu.memory_space<vmem>>, vector<1x64x64xbf16>
    %122 = vector.shape_cast %121 : vector<1x64x64xbf16> to vector<64x64xbf16>
    %cst_80 = arith.constant dense<0.000000e+00> : vector<20x64xf32>
    %123 = tpu.matmul %120, %122, %cst_80 {dimension_numbers = #tpu.dot_dimension_numbers<[1], [0], [0], [1], [0, 0, 1, 1], [], []>} : vector<20x64xbf16>, vector<64x64xbf16>, vector<20x64xf32> -> vector<20x64xf32>
    %124 = arith.addf %119, %123 : vector<20x64xf32>
    %c0_81 = arith.constant 0 : index
    %c0_82 = arith.constant 0 : index
    %125 = vector.load %arg5[%c0_81, %c0_82] : memref<1x64xf32, #tpu.memory_space<vmem>>, vector<1x64xf32>
    %126 = vector.broadcast %125 : vector<1x64xf32> to vector<20x64xf32>
    %127 = arith.addf %124, %126 : vector<20x64xf32>
    %cst_83 = arith.constant 0.000000e+00 : f32
    %128 = vector.broadcast %cst_83 : f32 to vector<20x64xf32>
    %129 = arith.cmpf oge, %127, %128 : vector<20x64xf32>
    %cst_84 = arith.constant 1.000000e-01 : f32
    %130 = vector.broadcast %cst_84 : f32 to vector<20x64xf32>
    %131 = arith.mulf %130, %127 : vector<20x64xf32>
    %132 = arith.select %129, %127, %131 : vector<20x64xi1>, vector<20x64xf32>
    %c0_85 = arith.constant 0 : index
    %c0_86 = arith.constant 0 : index
    %c0_87 = arith.constant 0 : index
    %c0_88 = arith.constant 0 : index
    %133 = vector.load %arg6[%c0_85, %c0_86, %c0_87, %c0_88] : memref<1x1x20x64xf32, #tpu.memory_space<vmem>>, vector<1x1x20x64xf32>
    %134 = vector.shape_cast %133 : vector<1x1x20x64xf32> to vector<20x64xf32>
    %135 = vector.shape_cast %132 : vector<20x64xf32> to vector<1x1x20x64xf32>
    tpu.vector_store %arg6[%c0_85, %c0_86, %c0_87, %c0_88], %135 {strides = array<i32>} : memref<1x1x20x64xf32, #tpu.memory_space<vmem>>, vector<1x1x20x64xf32>,
    return
  }
  func.func @transform_0(%arg0: i32) -> (i32, i32, i32) {
    %c0_i32 = arith.constant 0 : i32
    %c0_i32_0 = arith.constant 0 : i32
    %c0_i32_1 = arith.constant 0 : i32
    return %arg0, %c0_i32, %c0_i32_0 : i32, i32, i32
  }
  func.func @transform_1(%arg0: i32) -> (i32, i32, i32) {
    %c0_i32 = arith.constant 0 : i32
    %c0_i32_0 = arith.constant 0 : i32
    %c0_i32_1 = arith.constant 0 : i32
    %c0_i32_2 = arith.constant 0 : i32
    return %c0_i32, %c0_i32_0, %c0_i32_1 : i32, i32, i32
  }
  func.func @transform_2(%arg0: i32) -> (i32, i32) {
    %c0_i32 = arith.constant 0 : i32
    %c0_i32_0 = arith.constant 0 : i32
    %c0_i32_1 = arith.constant 0 : i32
    return %c0_i32, %c0_i32_0 : i32, i32
  }
  func.func @transform_3(%arg0: i32) -> (i32, i32, i32) {
    %c0_i32 = arith.constant 0 : i32
    %c0_i32_0 = arith.constant 0 : i32
    %c0_i32_1 = arith.constant 0 : i32
    %c0_i32_2 = arith.constant 0 : i32
    return %c0_i32, %c0_i32_0, %c0_i32_1 : i32, i32, i32
  }
  func.func @transform_4(%arg0: i32) -> (i32, i32) {
    %c0_i32 = arith.constant 0 : i32
    %c0_i32_0 = arith.constant 0 : i32
    %c0_i32_1 = arith.constant 0 : i32
    return %c0_i32, %c0_i32_0 : i32, i32
  }
  func.func @transform_5(%arg0: i32) -> (i32, i32, i32, i32) {
    %c0_i32 = arith.constant 0 : i32
    %c0_i32_0 = arith.constant 0 : i32
    %c0_i32_1 = arith.constant 0 : i32
    %c0_i32_2 = arith.constant 0 : i32
    return %arg0, %c0_i32, %c0_i32_0, %c0_i32_1 : i32, i32, i32, i32
  }
}

</mosaic_0001>

<llo_original>
// kernel: a_call__.2
$region0: #{a_call__.2}
  #allocation0 [shape = 'u32[]', space=smem, size = 0x4, offset = 0x4, fixed_abs, tag = 'smem constant byte address 0x4 - core index']
  #allocation1 [shape = 'u32[72,128]{1,0:T(1,128)}', space=vmem, size = 0x9000, scoped, tag = 'internal scratch']
  #allocation2 [shape = 'bf16[104,32]{1,0:T(8,128)(2,1)}', space=vmem, size = 0x6800, scoped, tag = 'scratch operand']
  %s0 = inlined_call_operand.vmem [shape: bf16[2,88,16], index: 0, kind: input, shape index: {}]
  %s1 = inlined_call_operand.vmem [shape: bf16[4,16,32], index: 1, kind: input, shape index: {}]
  %s2 = inlined_call_operand.vmem [shape: f32[1,32], index: 2, kind: input, shape index: {}]
  %s3 = inlined_call_operand.vmem [shape: bf16[9,32,32], index: 3, kind: input, shape index: {}]
  %s4 = inlined_call_operand.vmem [shape: f32[1,32], index: 4, kind: input, shape index: {}]
  %s5 = inlined_call_operand.vmem [shape: f32[2,1,72,32], index: 5, kind: output, shape index: {}]
  %s6 = sld [smem:[#allocation0]]
  $region53: #{a_call__.2} parent=0
    _
  %s8 = ssub.s32 1, %s6
  %s9 = scalar_select 0, %s8, %s6
  loop: start=0, step=1, limit=4
  $region2: #{a_call__.2} parent=0 // loop_pre_header
    _
  $region3: #{a_call__.2} parent=0 // loop_header
    %s11 = sphi 0, %s15
    %p12 = scmp.ge.s32.totalorder %s11, 4
    %s21 = sphi 0, %s23
    %s24 = sphi 0, %s21
    %s25 = sphi 0, %s24
    %s41 = sphi 0, %s25
    %s45 = sphi 0, %s45
    %s47 = sphi 0, %s45
    %s48 = sphi 0, %s47
    %s62 = sphi 0, %s48
    %s66 = sphi 0, %s66
    %s68 = sphi 0, %s66
    %s69 = sphi 0, %s68
    %s83 = sphi 0, %s69
    %s87 = sphi 0, %s87
    %s89 = sphi 0, %s87
    %s90 = sphi 0, %s89
    %s104 = sphi 0, %s90
    %s108 = sphi 0, %s108
    %s110 = sphi 0, %s108
    %s111 = sphi 0, %s110
    %s125 = sphi 0, %s111
    %s131 = sphi 0, %s133
    %s134 = sphi 0, %s131
    %s135 = sphi 0, %s134
    %s151 = sphi 0, %s135
  $region4: #{a_call__.2} parent=0 // loop_header_branch
    %14 = sbr.rel (%p12) target = $region8
  $region5: #{a_call__.2} parent=0 // loop_body
    %s16 = ssub.s32 %s11, 1
    %s17 = ssub.s32 %s11, 2
    %s18 = sadd.s32 %s11, 1
    %s19 = ssub.s32 %s11, %s18
    %p20 = scmp.eq.s32.totalorder %s19, 0
    %s22 = sadd.s32 %s21, 1
    %s23 = scalar_select %p20, %s21, %s22
    %p26 = pneg %p20
    %p27 = scmp.eq.s32.totalorder %s11, 1
    %p28 = por %p26, %p27
    %p29 = scmp.ne.s32.totalorder %s21, %s24
    %p30 = scmp.eq.s32.totalorder %s11, 0
    %p31 = por %p29, %p30
    %p32 = scmp.ne.s32.totalorder %s21, %s24
    %p33 = scmp.eq.s32.totalorder %s16, 1
    %p34 = por %p32, %p33
    %p35 = scmp.ne.s32.totalorder %s24, %s25
    %p36 = scmp.eq.s32.totalorder %s16, 0
    %p37 = por %p35, %p36
    %p38 = scmp.ne.s32.totalorder %s24, %s25
    %p39 = scmp.eq.s32.totalorder %s17, 1
    %p40 = por %p38, %p39
    %p42 = scmp.ne.s32.totalorder %s25, %s41
    %p43 = scmp.eq.s32.totalorder %s17, 0
    %p44 = por %p42, %p43
    %s46 = sadd.s32 %s45, 1
    %p49 = scmp.eq.s32.totalorder %s11, 1
    %p50 = scmp.ne.s32.totalorder %s45, %s47
    %p51 = scmp.eq.s32.totalorder %s11, 0
    %p52 = por %p50, %p51
    %p53 = scmp.ne.s32.totalorder %s45, %s47
    %p54 = scmp.eq.s32.totalorder %s16, 1
    %p55 = por %p53, %p54
    %p56 = scmp.ne.s32.totalorder %s47, %s48
    %p57 = scmp.eq.s32.totalorder %s16, 0
    %p58 = por %p56, %p57
    %p59 = scmp.ne.s32.totalorder %s47, %s48
    %p60 = scmp.eq.s32.totalorder %s17, 1
    %p61 = por %p59, %p60
    %p63 = scmp.ne.s32.totalorder %s48, %s62
    %p64 = scmp.eq.s32.totalorder %s17, 0
    %p65 = por %p63, %p64
    %s67 = sadd.s32 %s66, 1
    %p70 = scmp.eq.s32.totalorder %s11, 1
    %p71 = scmp.ne.s32.totalorder %s66, %s68
    %p72 = scmp.eq.s32.totalorder %s11, 0
    %p73 = por %p71, %p72
    %p74 = scmp.ne.s32.totalorder %s66, %s68
    %p75 = scmp.eq.s32.totalorder %s16, 1
    %p76 = por %p74, %p75
    %p77 = scmp.ne.s32.totalorder %s68, %s69
    %p78 = scmp.eq.s32.totalorder %s16, 0
    %p79 = por %p77, %p78
    %p80 = scmp.ne.s32.totalorder %s68, %s69
    %p81 = scmp.eq.s32.totalorder %s17, 1
    %p82 = por %p80, %p81
    %p84 = scmp.ne.s32.totalorder %s69, %s83
    %p85 = scmp.eq.s32.totalorder %s17, 0
    %p86 = por %p84, %p85
    %s88 = sadd.s32 %s87, 1
    %p91 = scmp.eq.s32.totalorder %s11, 1
    %p92 = scmp.ne.s32.totalorder %s87, %s89
    %p93 = scmp.eq.s32.totalorder %s11, 0
    %p94 = por %p92, %p93
    %p95 = scmp.ne.s32.totalorder %s87, %s89
    %p96 = scmp.eq.s32.totalorder %s16, 1
    %p97 = por %p95, %p96
    %p98 = scmp.ne.s32.totalorder %s89, %s90
    %p99 = scmp.eq.s32.totalorder %s16, 0
    %p100 = por %p98, %p99
    %p101 = scmp.ne.s32.totalorder %s89, %s90
    %p102 = scmp.eq.s32.totalorder %s17, 1
    %p103 = por %p101, %p102
    %p105 = scmp.ne.s32.totalorder %s90, %s104
    %p106 = scmp.eq.s32.totalorder %s17, 0
    %p107 = por %p105, %p106
    %s109 = sadd.s32 %s108, 1
    %p112 = scmp.eq.s32.totalorder %s11, 1
    %p113 = scmp.ne.s32.totalorder %s108, %s110
    %p114 = scmp.eq.s32.totalorder %s11, 0
    %p115 = por %p113, %p114
    %p116 = scmp.ne.s32.totalorder %s108, %s110
    %p117 = scmp.eq.s32.totalorder %s16, 1
    %p118 = por %p116, %p117
    %p119 = scmp.ne.s32.totalorder %s110, %s111
    %p120 = scmp.eq.s32.totalorder %s16, 0
    %p121 = por %p119, %p120
    %p122 = scmp.ne.s32.totalorder %s110, %s111
    %p123 = scmp.eq.s32.totalorder %s17, 1
    %p124 = por %p122, %p123
    %p126 = scmp.ne.s32.totalorder %s111, %s125
    %p127 = scmp.eq.s32.totalorder %s17, 0
    %p128 = por %p126, %p127
    %s129 = ssub.s32 %s11, %s18
    %p130 = scmp.eq.s32.totalorder %s129, 0
    %s132 = sadd.s32 %s131, 1
    %s133 = scalar_select %p130, %s131, %s132
    %p136 = pneg %p130
    %p137 = scmp.eq.s32.totalorder %s11, 1
    %p138 = por %p136, %p137
    %p139 = scmp.ne.s32.totalorder %s131, %s134
    %p140 = scmp.eq.s32.totalorder %s11, 0
    %p141 = por %p139, %p140
    %p142 = scmp.ne.s32.totalorder %s131, %s134
    %p143 = scmp.eq.s32.totalorder %s16, 1
    %p144 = por %p142, %p143
    %p145 = scmp.ne.s32.totalorder %s134, %s135
    %p146 = scmp.eq.s32.totalorder %s16, 0
    %p147 = por %p145, %p146
    %p148 = scmp.ne.s32.totalorder %s134, %s135
    %p149 = scmp.eq.s32.totalorder %s17, 1
    %p150 = por %p148, %p149
    %p152 = scmp.ne.s32.totalorder %s135, %s151
    %p153 = scmp.eq.s32.totalorder %s17, 0
    %p154 = por %p152, %p153
    %p155 = scmp.le.s32.totalorder 1, %s11
    %p156 = scmp.lt.s32.totalorder %s11, 3
    %p157 = pnand %p155, %p156
    %p158 = pneg %p157
    // Predicated region
    $region9: #{a_call__.2} parent=5 // pred_check
      _
    $region10: #{a_call__.2} parent=5 // pred_check_branch
      %160 = sbr.rel (%p157) target = $region12
    $region11: #{a_call__.2} parent=5 // pred_region
      %s161 = ssub.s32 %s11, 1
      // Predicated region
      $region13: #{a_call__.2} parent=11 // pred_check
        %p162 = pneg %p58
      $region14: #{a_call__.2} parent=11 // pred_check_branch
        %164 = sbr.rel (%p162) target = $region16
      $region15: #{a_call__.2} parent=11 // pred_region
        _
      $region16: #{a_call__.2} parent=11 // pred_fallthru
        _
      // Predicated region
      $region17: #{a_call__.2} parent=11 // pred_check
        %p165 = pneg %p79
      $region18: #{a_call__.2} parent=11 // pred_check_branch
        %167 = sbr.rel (%p165) target = $region20
      $region19: #{a_call__.2} parent=11 // pred_region
        _
      $region20: #{a_call__.2} parent=11 // pred_fallthru
        _
      // Predicated region
      $region21: #{a_call__.2} parent=11 // pred_check
        %p168 = pneg %p100
      $region22: #{a_call__.2} parent=11 // pred_check_branch
        %170 = sbr.rel (%p168) target = $region24
      $region23: #{a_call__.2} parent=11 // pred_region
        _
      $region24: #{a_call__.2} parent=11 // pred_fallthru
        _
      // Predicated region
      $region25: #{a_call__.2} parent=11 // pred_check
        %p171 = pneg %p121
      $region26: #{a_call__.2} parent=11 // pred_check_branch
        %173 = sbr.rel (%p171) target = $region28
      $region27: #{a_call__.2} parent=11 // pred_region
        _
      $region28: #{a_call__.2} parent=11 // pred_fallthru
        _
    $region12: #{a_call__.2} parent=5 // pred_fallthru
      _
    %p174 = scmp.lt.s32.totalorder %s11, 2
    // Predicated region
    $region29: #{a_call__.2} parent=5 // pred_check
      %p175 = pneg %p174
    $region30: #{a_call__.2} parent=5 // pred_check_branch
      %177 = sbr.rel (%p175) target = $region32
    $region31: #{a_call__.2} parent=5 // pred_region
      // Predicated region
      $region33: #{a_call__.2} parent=31 // pred_check
        %p178 = pneg %p31
      $region34: #{a_call__.2} parent=31 // pred_check_branch
        %180 = sbr.rel (%p178) target = $region36
      $region35: #{a_call__.2} parent=31 // pred_region
        %p181 = scmp.lt.s32.totalorder %s11, 1
        %s182 = scalar_select %p181, %s11, 1
        %s183 = smul.addr %s182, 11
        %s184 = smul.addr %s183, 4
        %s185 = scalar_lea.vmem %s0, %s184
      $region36: #{a_call__.2} parent=31 // pred_fallthru
        _
    $region32: #{a_call__.2} parent=5 // pred_fallthru
      _
    %p186 = scmp.le.s32.totalorder 1, %s11
    %p187 = scmp.lt.s32.totalorder %s11, 3
    %p188 = pnand %p186, %p187
    %p189 = pneg %p188
    // Predicated region
    $region37: #{a_call__.2} parent=5 // pred_check
      _
    $region38: #{a_call__.2} parent=5 // pred_check_branch
      %191 = sbr.rel (%p188) target = $region40
    $region39: #{a_call__.2} parent=5 // pred_region
      %s192 = ssub.s32 %s11, 1
      %p193 = scmp.lt.s32.totalorder %s16, 1
      %s194 = scalar_select %p193, %s16, 1
      %s195 = smul.addr %s194, 11
      %s196 = smul.addr %s195, 4
      %s197 = scalar_lea.vmem %s0, %s196
      %p198 = pneg %p37
      %p199 = pneg %p34
      %p200 = pneg %p58
      %p201 = pneg %p55
      %p202 = pneg %p79
      %p203 = pneg %p76
      %p204 = pneg %p100
      %p205 = pneg %p97
      %p206 = pneg %p121
      %p207 = pneg %p118
      %p208 = pneg %p147
      %p209 = pneg %p144
      %p210 = scmp.lt.s32.totalorder %s16, 1
      %s211 = scalar_select %p210, %s16, 1
      %s212 = smul.addr %s211, 9
      %s213 = smul.addr %s212, 8
      %s214 = scalar_lea.vmem %s5, %s213
      %p215 = scmp.lt.s32.totalorder %s16, 1
      %s216 = scalar_select %p215, %s16, 1
      %s217 = smul.addr %s216, 11
      %s218 = smul.addr %s217, 4
      %s219 = scalar_lea.vmem %s0, %s218
      %p220 = scmp.lt.s32.totalorder %s16, 1
      %s221 = scalar_select %p220, %s16, 1
      %s222 = smul.addr %s221, 9
      %s223 = smul.addr %s222, 8
      %s224 = scalar_lea.vmem %s5, %s223
      %vm226 = vcmask 257024
      %227 = vst.msk [vmem:[#allocation2] sm:$0xf] %vm226, 0
      %228 = vst.msk [vmem:[#allocation2 + $0x4] sm:$0xf] %vm226, 0
      %229 = vst.msk [vmem:[#allocation2 + $0x2c] sm:$0xf] %vm226, 0
      %230 = vst.msk [vmem:[#allocation2 + $0x30] sm:$0xf] %vm226, 0
      %v231 = vld [vmem:[%s219] sm:$0xf]
      %v232 = vld [vmem:[%s219 + $0x4] sm:$0xf]
      %v233 = vld [vmem:[%s219 + $0x8] sm:$0xf]
      %v234 = vld [vmem:[%s219 + $0xc] sm:$0xf]
      %v235 = vld [vmem:[%s219 + $0x10] sm:$0xf]
      %v236 = vld [vmem:[%s219 + $0x14] sm:$0xf]
      %v237 = vld [vmem:[%s219 + $0x18] sm:$0xf]
      %v238 = vld [vmem:[%s219 + $0x1c] sm:$0xf]
      %v239 = vld [vmem:[%s219 + $0x20] sm:$0xf]
      %v240 = vld [vmem:[%s219 + $0x24] sm:$0xf]
      %v241 = vld [vmem:[%s219 + $0x28] sm:$0xf]
      %v242 = vld [vmem:[%s1] sm:$0xf]
      %v243 = vld [vmem:[%s1 + $0x4] sm:$0xf]
      %s244 = scalar_lea.vmem %s1, 8
      %v245 = vld [vmem:[%s244] sm:$0xf]
      %v246 = vld [vmem:[%s244 + $0x4] sm:$0xf]
      %v257 = vunpack.c.l.b16 %v231
      %v258 = vunpack.c.l.b16 %v232
      %v259 = vunpack.c.l.b16 %v233
      %v260 = vunpack.c.l.b16 %v234
      %v261 = vunpack.c.l.b16 %v235
      %v262 = vunpack.c.l.b16 %v236
      %v263 = vunpack.c.l.b16 %v237
      %v264 = vunpack.c.l.b16 %v238
      %v265 = vunpack.c.l.b16 %v239
      %v266 = vunpack.c.l.b16 %v240
      %v267 = vpack.c.b16 %v258, %v257
      %v268 = vpack.c.b16 %v260, %v259
      %v269 = vpack.c.b16 %v262, %v261
      %v270 = vpack.c.b16 %v264, %v263
      %v271 = vpack.c.b16 %v266, %v265
      %vm272 = vsmask.f32 7424
      %v274 = vshrl.u32 %v267, 16
      %v276 = vshll.u32 %v267, 16
      %v278 = vrot.slane %v276, 1
      %v279 = vor.u32 %v274, %v278
      %v281 = vshll.u32 %v268, 16
      %v283 = vrot.slane %v281, 1
      %v284 = vsel %vm272, %v279, %v283
      %v285 = vshrl.u32 %v268, 16
      %v287 = vor.u32 %v285, %v283
      %v289 = vshll.u32 %v269, 16
      %v291 = vrot.slane %v289, 1
      %v292 = vsel %vm272, %v287, %v291
      %v293 = vshrl.u32 %v269, 16
      %v295 = vor.u32 %v293, %v291
      %v297 = vshll.u32 %v270, 16
      %v299 = vrot.slane %v297, 1
      %v300 = vsel %vm272, %v295, %v299
      %v301 = vshrl.u32 %v270, 16
      %v303 = vor.u32 %v301, %v299
      %v305 = vshll.u32 %v271, 16
      %v307 = vrot.slane %v305, 1
      %v308 = vsel %vm272, %v303, %v307
      %v309 = vshrl.u32 %v271, 16
      %v311 = vor.u32 %v309, %v307
      %v314 = vunpack.c.l.b16 %v245
      %v315 = vunpack.c.l.b16 %v246
      %v316 = vpack.c.b16 %v315, %v314
      %vm318 = vcmask 130048
      %v320 = vsel %vm318, %v284, 0
      %v323 = vsel %vm318, %v292, 0
      %v326 = vsel %vm318, %v300, 0
      %v329 = vsel %vm318, %v308, 0
      %v332 = vsel %vm318, %v311, 0
      %334 = vmatpush.bf16.msra.mxu0 0
      %335 = vmatpush.bf16.msra.mxu0 0
      %336 = vmatpush.bf16.msra.mxu0 0
      %337 = vmatpush.bf16.msra.mxu0 0
      %338 = vmatpush.bf16.msra.mxu0 0
      %339 = vmatpush.bf16.msra.mxu0 0
      %340 = vmatpush.bf16.msra.mxu0 0
      %341 = vmatpush.bf16.msra.mxu0 %v316
      %342 = vmatmul.bf16.gmra.mxu0 %v320
      %v343 = vpop.f32.mrf.mxu0
      %v344 = vadd.f32 0.0, %v343
      %v345 = vpop.f32.mrf.mxu0
      %v346 = vadd.f32 0.0, %v345
      %347 = vmatmul.bf16.gmra.mxu0 %v323
      %v348 = vpop.f32.mrf.mxu0
      %v349 = vadd.f32 0.0, %v348
      %v350 = vpop.f32.mrf.mxu0
      %v351 = vadd.f32 0.0, %v350
      %352 = vmatmul.bf16.gmra.mxu0 %v326
      %v353 = vpop.f32.mrf.mxu0
      %v354 = vadd.f32 0.0, %v353
      %v355 = vpop.f32.mrf.mxu0
      %v356 = vadd.f32 0.0, %v355
      %357 = vmatmul.bf16.gmra.mxu0 %v329
      %v358 = vpop.f32.mrf.mxu0
      %v359 = vadd.f32 0.0, %v358
      %v360 = vpop.f32.mrf.mxu0
      %v361 = vadd.f32 0.0, %v360
      %362 = vmatmul.bf16.gmra.mxu0 %v332
      %v363 = vpop.f32.mrf.mxu0
      %v364 = vadd.f32 0.0, %v363
      %v365 = vpop.f32.mrf.mxu0
      %366 = vdwg.mxu0
      %v367 = vpack.c.b16 %v265, %v265
      %v370 = vunpack.c.l.b16 %v242
      %v371 = vunpack.c.l.b16 %v243
      %v372 = vpack.c.b16 %v371, %v370
      %v374 = vsel %vm318, %v267, 0
      %v376 = vsel %vm318, %v268, 0
      %v378 = vsel %vm318, %v269, 0
      %v380 = vsel %vm318, %v270, 0
      %v383 = vsel %vm318, %v367, 0
      %385 = vmatpush.bf16.msra.mxu0 0
      %386 = vmatpush.bf16.msra.mxu0 0
      %387 = vmatpush.bf16.msra.mxu0 0
      %388 = vmatpush.bf16.msra.mxu0 0
      %389 = vmatpush.bf16.msra.mxu0 0
      %390 = vmatpush.bf16.msra.mxu0 0
      %391 = vmatpush.bf16.msra.mxu0 0
      %392 = vmatpush.bf16.msra.mxu0 %v372
      %393 = vmatmul.bf16.gmra.mxu0 %v374
      %v394 = vpop.f32.mrf.mxu0
      %v395 = vadd.f32 %v344, %v394
      %v396 = vpop.f32.mrf.mxu0
      %v397 = vadd.f32 %v346, %v396
      %398 = vmatmul.bf16.gmra.mxu0 %v376
      %v399 = vpop.f32.mrf.mxu0
      %v400 = vadd.f32 %v349, %v399
      %v401 = vpop.f32.mrf.mxu0
      %v402 = vadd.f32 %v351, %v401
      %403 = vmatmul.bf16.gmra.mxu0 %v378
      %v404 = vpop.f32.mrf.mxu0
      %v405 = vadd.f32 %v354, %v404
      %v406 = vpop.f32.mrf.mxu0
      %v407 = vadd.f32 %v356, %v406
      %408 = vmatmul.bf16.gmra.mxu0 %v380
      %v409 = vpop.f32.mrf.mxu0
      %v410 = vadd.f32 %v359, %v409
      %v411 = vpop.f32.mrf.mxu0
      %v412 = vadd.f32 %v361, %v411
      %413 = vmatmul.bf16.gmra.mxu0 %v383
      %v414 = vpop.f32.mrf.mxu0
      %v415 = vadd.f32 %v364, %v414
      %v416 = vpop.f32.mrf.mxu0
      %417 = vdwg.mxu0
      %s418 = scalar_lea.vmem %s1, 16
      %v419 = vld [vmem:[%s418] sm:$0xf]
      %v420 = vld [vmem:[%s418 + $0x4] sm:$0xf]
      %v422 = vunpack.c.l.b16 %v241
      %v423 = vpack.c.b16 %v259, %v258
      %v424 = vpack.c.b16 %v261, %v260
      %v425 = vpack.c.b16 %v263, %v262
      %v426 = vpack.c.b16 %v265, %v264
      %v427 = vpack.c.b16 %v422, %v266
      %v429 = vshrl.u32 %v423, 16
      %v431 = vshll.u32 %v423, 16
      %v433 = vrot.slane %v431, 1
      %v434 = vor.u32 %v429, %v433
      %v436 = vshll.u32 %v424, 16
      %v438 = vrot.slane %v436, 1
      %v439 = vsel %vm272, %v434, %v438
      %v440 = vshrl.u32 %v424, 16
      %v442 = vor.u32 %v440, %v438
      %v444 = vshll.u32 %v425, 16
      %v446 = vrot.slane %v444, 1
      %v447 = vsel %vm272, %v442, %v446
      %v448 = vshrl.u32 %v425, 16
      %v450 = vor.u32 %v448, %v446
      %v452 = vshll.u32 %v426, 16
      %v454 = vrot.slane %v452, 1
      %v455 = vsel %vm272, %v450, %v454
      %v456 = vshrl.u32 %v426, 16
      %v458 = vor.u32 %v456, %v454
      %v460 = vshll.u32 %v427, 16
      %v462 = vrot.slane %v460, 1
      %v463 = vsel %vm272, %v458, %v462
      %v464 = vshrl.u32 %v427, 16
      %v466 = vor.u32 %v464, %v462
      %v469 = vunpack.c.l.b16 %v419
      %v470 = vunpack.c.l.b16 %v420
      %v471 = vpack.c.b16 %v470, %v469
      %v474 = vsel %vm318, %v439, 0
      %v477 = vsel %vm318, %v447, 0
      %v480 = vsel %vm318, %v455, 0
      %v483 = vsel %vm318, %v463, 0
      %v486 = vsel %vm318, %v466, 0
      %488 = vmatpush.bf16.msra.mxu0 0
      %489 = vmatpush.bf16.msra.mxu0 0
      %490 = vmatpush.bf16.msra.mxu0 0
      %491 = vmatpush.bf16.msra.mxu0 0
      %492 = vmatpush.bf16.msra.mxu0 0
      %493 = vmatpush.bf16.msra.mxu0 0
      %494 = vmatpush.bf16.msra.mxu0 0
      %495 = vmatpush.bf16.msra.mxu0 %v471
      %496 = vmatmul.bf16.gmra.mxu0 %v474
      %v497 = vpop.f32.mrf.mxu0
      %v498 = vadd.f32 0.0, %v497
      %v499 = vpop.f32.mrf.mxu0
      %v500 = vadd.f32 0.0, %v499
      %501 = vmatmul.bf16.gmra.mxu0 %v477
      %v502 = vpop.f32.mrf.mxu0
      %v503 = vadd.f32 0.0, %v502
      %v504 = vpop.f32.mrf.mxu0
      %v505 = vadd.f32 0.0, %v504
      %506 = vmatmul.bf16.gmra.mxu0 %v480
      %v507 = vpop.f32.mrf.mxu0
      %v508 = vadd.f32 0.0, %v507
      %v509 = vpop.f32.mrf.mxu0
      %v510 = vadd.f32 0.0, %v509
      %511 = vmatmul.bf16.gmra.mxu0 %v483
      %v512 = vpop.f32.mrf.mxu0
      %v513 = vadd.f32 0.0, %v512
      %v514 = vpop.f32.mrf.mxu0
      %v515 = vadd.f32 0.0, %v514
      %516 = vmatmul.bf16.gmra.mxu0 %v486
      %v517 = vpop.f32.mrf.mxu0
      %v518 = vadd.f32 0.0, %v517
      %v519 = vpop.f32.mrf.mxu0
      %520 = vdwg.mxu0
      %v521 = vadd.f32 %v395, %v498
      %v522 = vadd.f32 %v397, %v500
      %v523 = vadd.f32 %v400, %v503
      %v524 = vadd.f32 %v402, %v505
      %v525 = vadd.f32 %v405, %v508
      %v526 = vadd.f32 %v407, %v510
      %v527 = vadd.f32 %v410, %v513
      %v528 = vadd.f32 %v412, %v515
      %v529 = vadd.f32 %v415, %v518
      %s530 = scalar_lea.vmem %s1, 24
      %v531 = vld [vmem:[%s530] sm:$0xf]
      %v532 = vld [vmem:[%s530 + $0x4] sm:$0xf]
      %vm533 = vcmask 1046528
      %v534 = vrot.slane %v423, 1
      %v535 = vrot.slane %v424, 1
      %v536 = vsel %vm533, %v534, %v535
      %v537 = vrot.slane %v425, 1
      %v538 = vsel %vm533, %v535, %v537
      %v539 = vrot.slane %v426, 1
      %v540 = vsel %vm533, %v537, %v539
      %v541 = vrot.slane %v427, 1
      %v542 = vsel %vm533, %v539, %v541
      %v545 = vunpack.c.l.b16 %v531
      %v546 = vunpack.c.l.b16 %v532
      %v547 = vpack.c.b16 %v546, %v545
      %v550 = vsel %vm318, %v536, 0
      %v553 = vsel %vm318, %v538, 0
      %v556 = vsel %vm318, %v540, 0
      %v559 = vsel %vm318, %v542, 0
      %v562 = vsel %vm318, %v541, 0
      %564 = vmatpush.bf16.msra.mxu0 0
      %565 = vmatpush.bf16.msra.mxu0 0
      %566 = vmatpush.bf16.msra.mxu0 0
      %567 = vmatpush.bf16.msra.mxu0 0
      %568 = vmatpush.bf16.msra.mxu0 0
      %569 = vmatpush.bf16.msra.mxu0 0
      %570 = vmatpush.bf16.msra.mxu0 0
      %571 = vmatpush.bf16.msra.mxu0 %v547
      %572 = vmatmul.bf16.gmra.mxu0 %v550
      %v573 = vpop.f32.mrf.mxu0
      %v574 = vadd.f32 0.0, %v573
      %v575 = vpop.f32.mrf.mxu0
      %v576 = vadd.f32 0.0, %v575
      %577 = vmatmul.bf16.gmra.mxu0 %v553
      %v578 = vpop.f32.mrf.mxu0
      %v579 = vadd.f32 0.0, %v578
      %v580 = vpop.f32.mrf.mxu0
      %v581 = vadd.f32 0.0, %v580
      %582 = vmatmul.bf16.gmra.mxu0 %v556
      %v583 = vpop.f32.mrf.mxu0
      %v584 = vadd.f32 0.0, %v583
      %v585 = vpop.f32.mrf.mxu0
      %v586 = vadd.f32 0.0, %v585
      %587 = vmatmul.bf16.gmra.mxu0 %v559
      %v588 = vpop.f32.mrf.mxu0
      %v589 = vadd.f32 0.0, %v588
      %v590 = vpop.f32.mrf.mxu0
      %v591 = vadd.f32 0.0, %v590
      %592 = vmatmul.bf16.gmra.mxu0 %v562
      %v593 = vpop.f32.mrf.mxu0
      %v594 = vadd.f32 0.0, %v593
      %v595 = vpop.f32.mrf.mxu0
      %596 = vdwg.mxu0
      %v597 = vadd.f32 %v521, %v574
      %v598 = vadd.f32 %v522, %v576
      %v599 = vadd.f32 %v523, %v579
      %v600 = vadd.f32 %v524, %v581
      %v601 = vadd.f32 %v525, %v584
      %v602 = vadd.f32 %v526, %v586
      %v603 = vadd.f32 %v527, %v589
      %v604 = vadd.f32 %v528, %v591
      %v605 = vadd.f32 %v529, %v594
      %v606 = vld [vmem:[%s2] sm:$0x1]
      %v608 = vperm.slane %v606, 0
      %v610 = vadd.f32 %v597, %v608
      %v611 = vadd.f32 %v598, %v608
      %v612 = vadd.f32 %v599, %v608
      %v613 = vadd.f32 %v600, %v608
      %v614 = vadd.f32 %v601, %v608
      %v615 = vadd.f32 %v602, %v608
      %v616 = vadd.f32 %v603, %v608
      %v617 = vadd.f32 %v604, %v608
      %v618 = vadd.f32 %v605, %v608
      %vm619 = vcmp.ge.f32.partialorder %v610, 0.0
      %vm620 = vcmp.ge.f32.partialorder %v611, 0.0
      %vm621 = vcmp.ge.f32.partialorder %v612, 0.0
      %vm622 = vcmp.ge.f32.partialorder %v613, 0.0
      %vm623 = vcmp.ge.f32.partialorder %v614, 0.0
      %vm624 = vcmp.ge.f32.partialorder %v615, 0.0
      %vm625 = vcmp.ge.f32.partialorder %v616, 0.0
      %vm626 = vcmp.ge.f32.partialorder %v617, 0.0
      %vm627 = vcmp.ge.f32.partialorder %v618, 0.0
      %v628 = vmul.f32 %v610, 0.1
      %v629 = vmul.f32 %v611, 0.1
      %v630 = vmul.f32 %v612, 0.1
      %v631 = vmul.f32 %v613, 0.1
      %v632 = vmul.f32 %v614, 0.1
      %v633 = vmul.f32 %v615, 0.1
      %v634 = vmul.f32 %v616, 0.1
      %v635 = vmul.f32 %v617, 0.1
      %v636 = vmul.f32 %v618, 0.1
      %v637 = vsel %vm619, %v610, %v628
      %v638 = vsel %vm620, %v611, %v629
      %v639 = vsel %vm621, %v612, %v630
      %v640 = vsel %vm622, %v613, %v631
      %v641 = vsel %vm623, %v614, %v632
      %v642 = vsel %vm624, %v615, %v633
      %v643 = vsel %vm625, %v616, %v634
      %v644 = vsel %vm626, %v617, %v635
      %v645 = vsel %vm627, %v618, %v636
      %v646 = vlaneseq
      %v647 = vshrl.u32 %v646, 7
      %v648 = vadd.s32 %v647, 8
      %v649 = vadd.s32 %v647, 16
      %v650 = vadd.s32 %v647, 24
      %v651 = vadd.s32 %v647, 32
      %v652 = vadd.s32 %v647, 40
      %v653 = vadd.s32 %v647, 48
      %v654 = vadd.s32 %v647, 56
      %v655 = vadd.s32 %v647, 64
      %vm656 = vcmp.lt.s32.totalorder %v647, 0
      %v657 = vsub.s32 0, %v647
      %v658 = vsel %vm656, %v657, %v647
      %v659 = vand.u32 %v658, 65535
      %v660 = vshrl.u32 %v658, 16
      %v662 = vmul.u32 %v659, 35747
      %v663 = vmul.u32 %v659, 47662
      %v664 = vmul.u32 %v660, 35747
      %v665 = vmul.u32 %v660, 47662
      %v666 = vshll.u32 %v663, 16
      %v667 = vshrl.u32 %v663, 16
      %v668 = vshll.u32 %v664, 16
      %v669 = vshrl.u32 %v664, 16
      %vm670 = vc.u32 %v662, %v666
      %v671 = vsel %vm670, 1, 0
      %v672 = vadd.s32 %v662, %v666
      %v673 = vadd.s32 %v665, %v671
      %vm674 = vc.u32 %v672, %v668
      %v675 = vsel %vm674, 1, 0
      %v676 = vadd.s32 %v672, %v668
      %v677 = vadd.s32 %v673, %v675
      %v678 = vadd.s32 %v677, %v667
      %v679 = vadd.s32 %v678, %v669
      %v680 = vshrl.u32 %v679, 6
      %v681 = vmul.u32 %v680, 88
      %v682 = vsub.s32 %v658, %v681
      %v683 = vsub.s32 0, %v682
      %v684 = vsel %vm656, %v683, %v682
      %vm685 = vcmp.lt.s32.totalorder %v648, 0
      %v686 = vsub.s32 0, %v648
      %v687 = vsel %vm685, %v686, %v648
      %v688 = vand.u32 %v687, 65535
      %v689 = vshrl.u32 %v687, 16
      %v691 = vmul.u32 %v688, 35747
      %v692 = vmul.u32 %v688, 47662
      %v693 = vmul.u32 %v689, 35747
      %v694 = vmul.u32 %v689, 47662
      %v695 = vshll.u32 %v692, 16
      %v696 = vshrl.u32 %v692, 16
      %v697 = vshll.u32 %v693, 16
      %v698 = vshrl.u32 %v693, 16
      %vm699 = vc.u32 %v691, %v695
      %v700 = vsel %vm699, 1, 0
      %v701 = vadd.s32 %v691, %v695
      %v702 = vadd.s32 %v694, %v700
      %vm703 = vc.u32 %v701, %v697
      %v704 = vsel %vm703, 1, 0
      %v705 = vadd.s32 %v701, %v697
      %v706 = vadd.s32 %v702, %v704
      %v707 = vadd.s32 %v706, %v696
      %v708 = vadd.s32 %v707, %v698
      %v709 = vshrl.u32 %v708, 6
      %v710 = vmul.u32 %v709, 88
      %v711 = vsub.s32 %v687, %v710
      %v712 = vsub.s32 0, %v711
      %v713 = vsel %vm685, %v712, %v711
      %vm714 = vcmp.lt.s32.totalorder %v649, 0
      %v715 = vsub.s32 0, %v649
      %v716 = vsel %vm714, %v715, %v649
      %v717 = vand.u32 %v716, 65535
      %v718 = vshrl.u32 %v716, 16
      %v720 = vmul.u32 %v717, 35747
      %v721 = vmul.u32 %v717, 47662
      %v722 = vmul.u32 %v718, 35747
      %v723 = vmul.u32 %v718, 47662
      %v724 = vshll.u32 %v721, 16
      %v725 = vshrl.u32 %v721, 16
      %v726 = vshll.u32 %v722, 16
      %v727 = vshrl.u32 %v722, 16
      %vm728 = vc.u32 %v720, %v724
      %v729 = vsel %vm728, 1, 0
      %v730 = vadd.s32 %v720, %v724
      %v731 = vadd.s32 %v723, %v729
      %vm732 = vc.u32 %v730, %v726
      %v733 = vsel %vm732, 1, 0
      %v734 = vadd.s32 %v730, %v726
      %v735 = vadd.s32 %v731, %v733
      %v736 = vadd.s32 %v735, %v725
      %v737 = vadd.s32 %v736, %v727
      %v738 = vshrl.u32 %v737, 6
      %v739 = vmul.u32 %v738, 88
      %v740 = vsub.s32 %v716, %v739
      %v741 = vsub.s32 0, %v740
      %v742 = vsel %vm714, %v741, %v740
      %vm743 = vcmp.lt.s32.totalorder %v650, 0
      %v744 = vsub.s32 0, %v650
      %v745 = vsel %vm743, %v744, %v650
      %v746 = vand.u32 %v745, 65535
      %v747 = vshrl.u32 %v745, 16
      %v749 = vmul.u32 %v746, 35747
      %v750 = vmul.u32 %v746, 47662
      %v751 = vmul.u32 %v747, 35747
      %v752 = vmul.u32 %v747, 47662
      %v753 = vshll.u32 %v750, 16
      %v754 = vshrl.u32 %v750, 16
      %v755 = vshll.u32 %v751, 16
      %v756 = vshrl.u32 %v751, 16
      %vm757 = vc.u32 %v749, %v753
      %v758 = vsel %vm757, 1, 0
      %v759 = vadd.s32 %v749, %v753
      %v760 = vadd.s32 %v752, %v758
      %vm761 = vc.u32 %v759, %v755
      %v762 = vsel %vm761, 1, 0
      %v763 = vadd.s32 %v759, %v755
      %v764 = vadd.s32 %v760, %v762
      %v765 = vadd.s32 %v764, %v754
      %v766 = vadd.s32 %v765, %v756
      %v767 = vshrl.u32 %v766, 6
      %v768 = vmul.u32 %v767, 88
      %v769 = vsub.s32 %v745, %v768
      %v770 = vsub.s32 0, %v769
      %v771 = vsel %vm743, %v770, %v769
      %vm772 = vcmp.lt.s32.totalorder %v651, 0
      %v773 = vsub.s32 0, %v651
      %v774 = vsel %vm772, %v773, %v651
      %v775 = vand.u32 %v774, 65535
      %v776 = vshrl.u32 %v774, 16
      %v778 = vmul.u32 %v775, 35747
      %v779 = vmul.u32 %v775, 47662
      %v780 = vmul.u32 %v776, 35747
      %v781 = vmul.u32 %v776, 47662
      %v782 = vshll.u32 %v779, 16
      %v783 = vshrl.u32 %v779, 16
      %v784 = vshll.u32 %v780, 16
      %v785 = vshrl.u32 %v780, 16
      %vm786 = vc.u32 %v778, %v782
      %v787 = vsel %vm786, 1, 0
      %v788 = vadd.s32 %v778, %v782
      %v789 = vadd.s32 %v781, %v787
      %vm790 = vc.u32 %v788, %v784
      %v791 = vsel %vm790, 1, 0
      %v792 = vadd.s32 %v788, %v784
      %v793 = vadd.s32 %v789, %v791
      %v794 = vadd.s32 %v793, %v783
      %v795 = vadd.s32 %v794, %v785
      %v796 = vshrl.u32 %v795, 6
      %v797 = vmul.u32 %v796, 88
      %v798 = vsub.s32 %v774, %v797
      %v799 = vsub.s32 0, %v798
      %v800 = vsel %vm772, %v799, %v798
      %vm801 = vcmp.lt.s32.totalorder %v652, 0
      %v802 = vsub.s32 0, %v652
      %v803 = vsel %vm801, %v802, %v652
      %v804 = vand.u32 %v803, 65535
      %v805 = vshrl.u32 %v803, 16
      %v807 = vmul.u32 %v804, 35747
      %v808 = vmul.u32 %v804, 47662
      %v809 = vmul.u32 %v805, 35747
      %v810 = vmul.u32 %v805, 47662
      %v811 = vshll.u32 %v808, 16
      %v812 = vshrl.u32 %v808, 16
      %v813 = vshll.u32 %v809, 16
      %v814 = vshrl.u32 %v809, 16
      %vm815 = vc.u32 %v807, %v811
      %v816 = vsel %vm815, 1, 0
      %v817 = vadd.s32 %v807, %v811
      %v818 = vadd.s32 %v810, %v816
      %vm819 = vc.u32 %v817, %v813
      %v820 = vsel %vm819, 1, 0
      %v821 = vadd.s32 %v817, %v813
      %v822 = vadd.s32 %v818, %v820
      %v823 = vadd.s32 %v822, %v812
      %v824 = vadd.s32 %v823, %v814
      %v825 = vshrl.u32 %v824, 6
      %v826 = vmul.u32 %v825, 88
      %v827 = vsub.s32 %v803, %v826
      %v828 = vsub.s32 0, %v827
      %v829 = vsel %vm801, %v828, %v827
      %vm830 = vcmp.lt.s32.totalorder %v653, 0
      %v831 = vsub.s32 0, %v653
      %v832 = vsel %vm830, %v831, %v653
      %v833 = vand.u32 %v832, 65535
      %v834 = vshrl.u32 %v832, 16
      %v836 = vmul.u32 %v833, 35747
      %v837 = vmul.u32 %v833, 47662
      %v838 = vmul.u32 %v834, 35747
      %v839 = vmul.u32 %v834, 47662
      %v840 = vshll.u32 %v837, 16
      %v841 = vshrl.u32 %v837, 16
      %v842 = vshll.u32 %v838, 16
      %v843 = vshrl.u32 %v838, 16
      %vm844 = vc.u32 %v836, %v840
      %v845 = vsel %vm844, 1, 0
      %v846 = vadd.s32 %v836, %v840
      %v847 = vadd.s32 %v839, %v845
      %vm848 = vc.u32 %v846, %v842
      %v849 = vsel %vm848, 1, 0
      %v850 = vadd.s32 %v846, %v842
      %v851 = vadd.s32 %v847, %v849
      %v852 = vadd.s32 %v851, %v841
      %v853 = vadd.s32 %v852, %v843
      %v854 = vshrl.u32 %v853, 6
      %v855 = vmul.u32 %v854, 88
      %v856 = vsub.s32 %v832, %v855
      %v857 = vsub.s32 0, %v856
      %v858 = vsel %vm830, %v857, %v856
      %vm859 = vcmp.lt.s32.totalorder %v654, 0
      %v860 = vsub.s32 0, %v654
      %v861 = vsel %vm859, %v860, %v654
      %v862 = vand.u32 %v861, 65535
      %v863 = vshrl.u32 %v861, 16
      %v865 = vmul.u32 %v862, 35747
      %v866 = vmul.u32 %v862, 47662
      %v867 = vmul.u32 %v863, 35747
      %v868 = vmul.u32 %v863, 47662
      %v869 = vshll.u32 %v866, 16
      %v870 = vshrl.u32 %v866, 16
      %v871 = vshll.u32 %v867, 16
      %v872 = vshrl.u32 %v867, 16
      %vm873 = vc.u32 %v865, %v869
      %v874 = vsel %vm873, 1, 0
      %v875 = vadd.s32 %v865, %v869
      %v876 = vadd.s32 %v868, %v874
      %vm877 = vc.u32 %v875, %v871
      %v878 = vsel %vm877, 1, 0
      %v879 = vadd.s32 %v875, %v871
      %v880 = vadd.s32 %v876, %v878
      %v881 = vadd.s32 %v880, %v870
      %v882 = vadd.s32 %v881, %v872
      %v883 = vshrl.u32 %v882, 6
      %v884 = vmul.u32 %v883, 88
      %v885 = vsub.s32 %v861, %v884
      %v886 = vsub.s32 0, %v885
      %v887 = vsel %vm859, %v886, %v885
      %vm888 = vcmp.lt.s32.totalorder %v655, 0
      %v889 = vsub.s32 0, %v655
      %v890 = vsel %vm888, %v889, %v655
      %v891 = vand.u32 %v890, 65535
      %v892 = vshrl.u32 %v890, 16
      %v894 = vmul.u32 %v891, 35747
      %v895 = vmul.u32 %v891, 47662
      %v896 = vmul.u32 %v892, 35747
      %v897 = vmul.u32 %v892, 47662
      %v898 = vshll.u32 %v895, 16
      %v899 = vshrl.u32 %v895, 16
      %v900 = vshll.u32 %v896, 16
      %v901 = vshrl.u32 %v896, 16
      %vm902 = vc.u32 %v894, %v898
      %v903 = vsel %vm902, 1, 0
      %v904 = vadd.s32 %v894, %v898
      %v905 = vadd.s32 %v897, %v903
      %vm906 = vc.u32 %v904, %v900
      %v907 = vsel %vm906, 1, 0
      %v908 = vadd.s32 %v904, %v900
      %v909 = vadd.s32 %v905, %v907
      %v910 = vadd.s32 %v909, %v899
      %v911 = vadd.s32 %v910, %v901
      %v912 = vshrl.u32 %v911, 6
      %v913 = vmul.u32 %v912, 88
      %v914 = vsub.s32 %v890, %v913
      %v915 = vsub.s32 0, %v914
      %v916 = vsel %vm888, %v915, %v914
      %vm917 = vcmp.ne.s32.totalorder %v684, 0
      %vm918 = vcmp.ne.s32.totalorder %v713, 0
      %vm919 = vcmp.ne.s32.totalorder %v742, 0
      %vm920 = vcmp.ne.s32.totalorder %v771, 0
      %vm921 = vcmp.ne.s32.totalorder %v800, 0
      %vm922 = vcmp.ne.s32.totalorder %v829, 0
      %vm923 = vcmp.ne.s32.totalorder %v858, 0
      %vm924 = vcmp.ne.s32.totalorder %v887, 0
      %vm925 = vcmp.ne.s32.totalorder %v916, 0
      %vm926 = vcmp.lt.s32.totalorder %v684, 0
      %vm927 = vcmp.lt.s32.totalorder %v713, 0
      %vm928 = vcmp.lt.s32.totalorder %v742, 0
      %vm929 = vcmp.lt.s32.totalorder %v771, 0
      %vm930 = vcmp.lt.s32.totalorder %v800, 0
      %vm931 = vcmp.lt.s32.totalorder %v829, 0
      %vm932 = vcmp.lt.s32.totalorder %v858, 0
      %vm933 = vcmp.lt.s32.totalorder %v887, 0
      %vm934 = vcmp.lt.s32.totalorder %v916, 0
      %vm935 = vmand %vm926, %vm917
      %vm936 = vmand %vm927, %vm918
      %vm937 = vmand %vm928, %vm919
      %vm938 = vmand %vm929, %vm920
      %vm939 = vmand %vm930, %vm921
      %vm940 = vmand %vm931, %vm922
      %vm941 = vmand %vm932, %vm923
      %vm942 = vmand %vm933, %vm924
      %vm943 = vmand %vm934, %vm925
      %v944 = vadd.s32 %v684, 88
      %v945 = vadd.s32 %v713, 88
      %v946 = vadd.s32 %v742, 88
      %v947 = vadd.s32 %v771, 88
      %v948 = vadd.s32 %v800, 88
      %v949 = vadd.s32 %v829, 88
      %v950 = vadd.s32 %v858, 88
      %v951 = vadd.s32 %v887, 88
      %v952 = vadd.s32 %v916, 88
      %v953 = vsel %vm935, %v944, %v684
      %v954 = vsel %vm936, %v945, %v713
      %v955 = vsel %vm937, %v946, %v742
      %v956 = vsel %vm938, %v947, %v771
      %v957 = vsel %vm939, %v948, %v800
      %v958 = vsel %vm940, %v949, %v829
      %v959 = vsel %vm941, %v950, %v858
      %v960 = vsel %vm942, %v951, %v887
      %v961 = vsel %vm943, %v952, %v916
      %vm962 = vcmp.lt.s32.totalorder %v953, 72
      %vm963 = vcmp.lt.s32.totalorder %v954, 72
      %vm964 = vcmp.lt.s32.totalorder %v955, 72
      %vm965 = vcmp.lt.s32.totalorder %v956, 72
      %vm966 = vcmp.lt.s32.totalorder %v957, 72
      %vm967 = vcmp.lt.s32.totalorder %v958, 72
      %vm968 = vcmp.lt.s32.totalorder %v959, 72
      %vm969 = vcmp.lt.s32.totalorder %v960, 72
      %vm970 = vcmp.lt.s32.totalorder %v961, 72
      %vm971 = vcmp.lt.s32.totalorder %v953, 0
      %v972 = vsub.s32 0, %v953
      %v973 = vsel %vm971, %v972, %v953
      %v974 = vand.u32 %v973, 65535
      %v975 = vshrl.u32 %v973, 16
      %v977 = vmul.u32 %v974, 14564
      %v978 = vmul.u32 %v974, 58254
      %v979 = vmul.u32 %v975, 14564
      %v980 = vmul.u32 %v975, 58254
      %v981 = vshll.u32 %v978, 16
      %v982 = vshrl.u32 %v978, 16
      %v983 = vshll.u32 %v979, 16
      %v984 = vshrl.u32 %v979, 16
      %vm985 = vc.u32 %v977, %v981
      %v986 = vsel %vm985, 1, 0
      %v987 = vadd.s32 %v977, %v981
      %v988 = vadd.s32 %v980, %v986
      %vm989 = vc.u32 %v987, %v983
      %v990 = vsel %vm989, 1, 0
      %v991 = vadd.s32 %v987, %v983
      %v992 = vadd.s32 %v988, %v990
      %v993 = vadd.s32 %v992, %v982
      %v994 = vadd.s32 %v993, %v984
      %v995 = vshrl.u32 %v994, 3
      %v996 = vmul.u32 %v995, 9
      %v997 = vsub.s32 %v973, %v996
      %v998 = vsub.s32 0, %v997
      %v999 = vsel %vm971, %v998, %v997
      %vm1000 = vcmp.lt.s32.totalorder %v954, 0
      %v1001 = vsub.s32 0, %v954
      %v1002 = vsel %vm1000, %v1001, %v954
      %v1003 = vand.u32 %v1002, 65535
      %v1004 = vshrl.u32 %v1002, 16
      %v1006 = vmul.u32 %v1003, 14564
      %v1007 = vmul.u32 %v1003, 58254
      %v1008 = vmul.u32 %v1004, 14564
      %v1009 = vmul.u32 %v1004, 58254
      %v1010 = vshll.u32 %v1007, 16
      %v1011 = vshrl.u32 %v1007, 16
      %v1012 = vshll.u32 %v1008, 16
      %v1013 = vshrl.u32 %v1008, 16
      %vm1014 = vc.u32 %v1006, %v1010
      %v1015 = vsel %vm1014, 1, 0
      %v1016 = vadd.s32 %v1006, %v1010
      %v1017 = vadd.s32 %v1009, %v1015
      %vm1018 = vc.u32 %v1016, %v1012
      %v1019 = vsel %vm1018, 1, 0
      %v1020 = vadd.s32 %v1016, %v1012
      %v1021 = vadd.s32 %v1017, %v1019
      %v1022 = vadd.s32 %v1021, %v1011
      %v1023 = vadd.s32 %v1022, %v1013
      %v1024 = vshrl.u32 %v1023, 3
      %v1025 = vmul.u32 %v1024, 9
      %v1026 = vsub.s32 %v1002, %v1025
      %v1027 = vsub.s32 0, %v1026
      %v1028 = vsel %vm1000, %v1027, %v1026
      %vm1029 = vcmp.lt.s32.totalorder %v955, 0
      %v1030 = vsub.s32 0, %v955
      %v1031 = vsel %vm1029, %v1030, %v955
      %v1032 = vand.u32 %v1031, 65535
      %v1033 = vshrl.u32 %v1031, 16
      %v1035 = vmul.u32 %v1032, 14564
      %v1036 = vmul.u32 %v1032, 58254
      %v1037 = vmul.u32 %v1033, 14564
      %v1038 = vmul.u32 %v1033, 58254
      %v1039 = vshll.u32 %v1036, 16
      %v1040 = vshrl.u32 %v1036, 16
      %v1041 = vshll.u32 %v1037, 16
      %v1042 = vshrl.u32 %v1037, 16
      %vm1043 = vc.u32 %v1035, %v1039
      %v1044 = vsel %vm1043, 1, 0
      %v1045 = vadd.s32 %v1035, %v1039
      %v1046 = vadd.s32 %v1038, %v1044
      %vm1047 = vc.u32 %v1045, %v1041
      %v1048 = vsel %vm1047, 1, 0
      %v1049 = vadd.s32 %v1045, %v1041
      %v1050 = vadd.s32 %v1046, %v1048
      %v1051 = vadd.s32 %v1050, %v1040
      %v1052 = vadd.s32 %v1051, %v1042
      %v1053 = vshrl.u32 %v1052, 3
      %v1054 = vmul.u32 %v1053, 9
      %v1055 = vsub.s32 %v1031, %v1054
      %v1056 = vsub.s32 0, %v1055
      %v1057 = vsel %vm1029, %v1056, %v1055
      %vm1058 = vcmp.lt.s32.totalorder %v956, 0
      %v1059 = vsub.s32 0, %v956
      %v1060 = vsel %vm1058, %v1059, %v956
      %v1061 = vand.u32 %v1060, 65535
      %v1062 = vshrl.u32 %v1060, 16
      %v1064 = vmul.u32 %v1061, 14564
      %v1065 = vmul.u32 %v1061, 58254
      %v1066 = vmul.u32 %v1062, 14564
      %v1067 = vmul.u32 %v1062, 58254
      %v1068 = vshll.u32 %v1065, 16
      %v1069 = vshrl.u32 %v1065, 16
      %v1070 = vshll.u32 %v1066, 16
      %v1071 = vshrl.u32 %v1066, 16
      %vm1072 = vc.u32 %v1064, %v1068
      %v1073 = vsel %vm1072, 1, 0
      %v1074 = vadd.s32 %v1064, %v1068
      %v1075 = vadd.s32 %v1067, %v1073
      %vm1076 = vc.u32 %v1074, %v1070
      %v1077 = vsel %vm1076, 1, 0
      %v1078 = vadd.s32 %v1074, %v1070
      %v1079 = vadd.s32 %v1075, %v1077
      %v1080 = vadd.s32 %v1079, %v1069
      %v1081 = vadd.s32 %v1080, %v1071
      %v1082 = vshrl.u32 %v1081, 3
      %v1083 = vmul.u32 %v1082, 9
      %v1084 = vsub.s32 %v1060, %v1083
      %v1085 = vsub.s32 0, %v1084
      %v1086 = vsel %vm1058, %v1085, %v1084
      %vm1087 = vcmp.lt.s32.totalorder %v957, 0
      %v1088 = vsub.s32 0, %v957
      %v1089 = vsel %vm1087, %v1088, %v957
      %v1090 = vand.u32 %v1089, 65535
      %v1091 = vshrl.u32 %v1089, 16
      %v1093 = vmul.u32 %v1090, 14564
      %v1094 = vmul.u32 %v1090, 58254
      %v1095 = vmul.u32 %v1091, 14564
      %v1096 = vmul.u32 %v1091, 58254
      %v1097 = vshll.u32 %v1094, 16
      %v1098 = vshrl.u32 %v1094, 16
      %v1099 = vshll.u32 %v1095, 16
      %v1100 = vshrl.u32 %v1095, 16
      %vm1101 = vc.u32 %v1093, %v1097
      %v1102 = vsel %vm1101, 1, 0
      %v1103 = vadd.s32 %v1093, %v1097
      %v1104 = vadd.s32 %v1096, %v1102
      %vm1105 = vc.u32 %v1103, %v1099
      %v1106 = vsel %vm1105, 1, 0
      %v1107 = vadd.s32 %v1103, %v1099
      %v1108 = vadd.s32 %v1104, %v1106
      %v1109 = vadd.s32 %v1108, %v1098
      %v1110 = vadd.s32 %v1109, %v1100
      %v1111 = vshrl.u32 %v1110, 3
      %v1112 = vmul.u32 %v1111, 9
      %v1113 = vsub.s32 %v1089, %v1112
      %v1114 = vsub.s32 0, %v1113
      %v1115 = vsel %vm1087, %v1114, %v1113
      %vm1116 = vcmp.lt.s32.totalorder %v958, 0
      %v1117 = vsub.s32 0, %v958
      %v1118 = vsel %vm1116, %v1117, %v958
      %v1119 = vand.u32 %v1118, 65535
      %v1120 = vshrl.u32 %v1118, 16
      %v1122 = vmul.u32 %v1119, 14564
      %v1123 = vmul.u32 %v1119, 58254
      %v1124 = vmul.u32 %v1120, 14564
      %v1125 = vmul.u32 %v1120, 58254
      %v1126 = vshll.u32 %v1123, 16
      %v1127 = vshrl.u32 %v1123, 16
      %v1128 = vshll.u32 %v1124, 16
      %v1129 = vshrl.u32 %v1124, 16
      %vm1130 = vc.u32 %v1122, %v1126
      %v1131 = vsel %vm1130, 1, 0
      %v1132 = vadd.s32 %v1122, %v1126
      %v1133 = vadd.s32 %v1125, %v1131
      %vm1134 = vc.u32 %v1132, %v1128
      %v1135 = vsel %vm1134, 1, 0
      %v1136 = vadd.s32 %v1132, %v1128
      %v1137 = vadd.s32 %v1133, %v1135
      %v1138 = vadd.s32 %v1137, %v1127
      %v1139 = vadd.s32 %v1138, %v1129
      %v1140 = vshrl.u32 %v1139, 3
      %v1141 = vmul.u32 %v1140, 9
      %v1142 = vsub.s32 %v1118, %v1141
      %v1143 = vsub.s32 0, %v1142
      %v1144 = vsel %vm1116, %v1143, %v1142
      %vm1145 = vcmp.lt.s32.totalorder %v959, 0
      %v1146 = vsub.s32 0, %v959
      %v1147 = vsel %vm1145, %v1146, %v959
      %v1148 = vand.u32 %v1147, 65535
      %v1149 = vshrl.u32 %v1147, 16
      %v1151 = vmul.u32 %v1148, 14564
      %v1152 = vmul.u32 %v1148, 58254
      %v1153 = vmul.u32 %v1149, 14564
      %v1154 = vmul.u32 %v1149, 58254
      %v1155 = vshll.u32 %v1152, 16
      %v1156 = vshrl.u32 %v1152, 16
      %v1157 = vshll.u32 %v1153, 16
      %v1158 = vshrl.u32 %v1153, 16
      %vm1159 = vc.u32 %v1151, %v1155
      %v1160 = vsel %vm1159, 1, 0
      %v1161 = vadd.s32 %v1151, %v1155
      %v1162 = vadd.s32 %v1154, %v1160
      %vm1163 = vc.u32 %v1161, %v1157
      %v1164 = vsel %vm1163, 1, 0
      %v1165 = vadd.s32 %v1161, %v1157
      %v1166 = vadd.s32 %v1162, %v1164
      %v1167 = vadd.s32 %v1166, %v1156
      %v1168 = vadd.s32 %v1167, %v1158
      %v1169 = vshrl.u32 %v1168, 3
      %v1170 = vmul.u32 %v1169, 9
      %v1171 = vsub.s32 %v1147, %v1170
      %v1172 = vsub.s32 0, %v1171
      %v1173 = vsel %vm1145, %v1172, %v1171
      %vm1174 = vcmp.lt.s32.totalorder %v960, 0
      %v1175 = vsub.s32 0, %v960
      %v1176 = vsel %vm1174, %v1175, %v960
      %v1177 = vand.u32 %v1176, 65535
      %v1178 = vshrl.u32 %v1176, 16
      %v1180 = vmul.u32 %v1177, 14564
      %v1181 = vmul.u32 %v1177, 58254
      %v1182 = vmul.u32 %v1178, 14564
      %v1183 = vmul.u32 %v1178, 58254
      %v1184 = vshll.u32 %v1181, 16
      %v1185 = vshrl.u32 %v1181, 16
      %v1186 = vshll.u32 %v1182, 16
      %v1187 = vshrl.u32 %v1182, 16
      %vm1188 = vc.u32 %v1180, %v1184
      %v1189 = vsel %vm1188, 1, 0
      %v1190 = vadd.s32 %v1180, %v1184
      %v1191 = vadd.s32 %v1183, %v1189
      %vm1192 = vc.u32 %v1190, %v1186
      %v1193 = vsel %vm1192, 1, 0
      %v1194 = vadd.s32 %v1190, %v1186
      %v1195 = vadd.s32 %v1191, %v1193
      %v1196 = vadd.s32 %v1195, %v1185
      %v1197 = vadd.s32 %v1196, %v1187
      %v1198 = vshrl.u32 %v1197, 3
      %v1199 = vmul.u32 %v1198, 9
      %v1200 = vsub.s32 %v1176, %v1199
      %v1201 = vsub.s32 0, %v1200
      %v1202 = vsel %vm1174, %v1201, %v1200
      %vm1203 = vcmp.lt.s32.totalorder %v961, 0
      %v1204 = vsub.s32 0, %v961
      %v1205 = vsel %vm1203, %v1204, %v961
      %v1206 = vand.u32 %v1205, 65535
      %v1207 = vshrl.u32 %v1205, 16
      %v1209 = vmul.u32 %v1206, 14564
      %v1210 = vmul.u32 %v1206, 58254
      %v1211 = vmul.u32 %v1207, 14564
      %v1212 = vmul.u32 %v1207, 58254
      %v1213 = vshll.u32 %v1210, 16
      %v1214 = vshrl.u32 %v1210, 16
      %v1215 = vshll.u32 %v1211, 16
      %v1216 = vshrl.u32 %v1211, 16
      %vm1217 = vc.u32 %v1209, %v1213
      %v1218 = vsel %vm1217, 1, 0
      %v1219 = vadd.s32 %v1209, %v1213
      %v1220 = vadd.s32 %v1212, %v1218
      %vm1221 = vc.u32 %v1219, %v1215
      %v1222 = vsel %vm1221, 1, 0
      %v1223 = vadd.s32 %v1219, %v1215
      %v1224 = vadd.s32 %v1220, %v1222
      %v1225 = vadd.s32 %v1224, %v1214
      %v1226 = vadd.s32 %v1225, %v1216
      %v1227 = vshrl.u32 %v1226, 3
      %v1228 = vmul.u32 %v1227, 9
      %v1229 = vsub.s32 %v1205, %v1228
      %v1230 = vsub.s32 0, %v1229
      %v1231 = vsel %vm1203, %v1230, %v1229
      %vm1232 = vcmp.ne.s32.totalorder %v999, 0
      %vm1233 = vcmp.ne.s32.totalorder %v1028, 0
      %vm1234 = vcmp.ne.s32.totalorder %v1057, 0
      %vm1235 = vcmp.ne.s32.totalorder %v1086, 0
      %vm1236 = vcmp.ne.s32.totalorder %v1115, 0
      %vm1237 = vcmp.ne.s32.totalorder %v1144, 0
      %vm1238 = vcmp.ne.s32.totalorder %v1173, 0
      %vm1239 = vcmp.ne.s32.totalorder %v1202, 0
      %vm1240 = vcmp.ne.s32.totalorder %v1231, 0
      %vm1241 = vcmp.lt.s32.totalorder %v999, 0
      %vm1242 = vcmp.lt.s32.totalorder %v1028, 0
      %vm1243 = vcmp.lt.s32.totalorder %v1057, 0
      %vm1244 = vcmp.lt.s32.totalorder %v1086, 0
      %vm1245 = vcmp.lt.s32.totalorder %v1115, 0
      %vm1246 = vcmp.lt.s32.totalorder %v1144, 0
      %vm1247 = vcmp.lt.s32.totalorder %v1173, 0
      %vm1248 = vcmp.lt.s32.totalorder %v1202, 0
      %vm1249 = vcmp.lt.s32.totalorder %v1231, 0
      %vm1250 = vmand %vm1241, %vm1232
      %vm1251 = vmand %vm1242, %vm1233
      %vm1252 = vmand %vm1243, %vm1234
      %vm1253 = vmand %vm1244, %vm1235
      %vm1254 = vmand %vm1245, %vm1236
      %vm1255 = vmand %vm1246, %vm1237
      %vm1256 = vmand %vm1247, %vm1238
      %vm1257 = vmand %vm1248, %vm1239
      %vm1258 = vmand %vm1249, %vm1240
      %v1259 = vadd.s32 %v999, 9
      %v1260 = vadd.s32 %v1028, 9
      %v1261 = vadd.s32 %v1057, 9
      %v1262 = vadd.s32 %v1086, 9
      %v1263 = vadd.s32 %v1115, 9
      %v1264 = vadd.s32 %v1144, 9
      %v1265 = vadd.s32 %v1173, 9
      %v1266 = vadd.s32 %v1202, 9
      %v1267 = vadd.s32 %v1231, 9
      %v1268 = vsel %vm1250, %v1259, %v999
      %v1269 = vsel %vm1251, %v1260, %v1028
      %v1270 = vsel %vm1252, %v1261, %v1057
      %v1271 = vsel %vm1253, %v1262, %v1086
      %v1272 = vsel %vm1254, %v1263, %v1115
      %v1273 = vsel %vm1255, %v1264, %v1144
      %v1274 = vsel %vm1256, %v1265, %v1173
      %v1275 = vsel %vm1257, %v1266, %v1202
      %v1276 = vsel %vm1258, %v1267, %v1231
      %vm1277 = vcmp.ne.s32.totalorder %v1268, 8
      %vm1278 = vcmp.ne.s32.totalorder %v1269, 8
      %vm1279 = vcmp.ne.s32.totalorder %v1270, 8
      %vm1280 = vcmp.ne.s32.totalorder %v1271, 8
      %vm1281 = vcmp.ne.s32.totalorder %v1272, 8
      %vm1282 = vcmp.ne.s32.totalorder %v1273, 8
      %vm1283 = vcmp.ne.s32.totalorder %v1274, 8
      %vm1284 = vcmp.ne.s32.totalorder %v1275, 8
      %vm1285 = vcmp.ne.s32.totalorder %v1276, 8
      %vm1286 = vmand %vm962, %vm1277
      %vm1287 = vmand %vm963, %vm1278
      %vm1288 = vmand %vm964, %vm1279
      %vm1289 = vmand %vm965, %vm1280
      %vm1290 = vmand %vm966, %vm1281
      %vm1291 = vmand %vm967, %vm1282
      %vm1292 = vmand %vm968, %vm1283
      %vm1293 = vmand %vm969, %vm1284
      %vm1294 = vmand %vm970, %vm1285
      %v1295 = vsel %vm1286, 1, 0
      %v1296 = vsel %vm1287, 1, 0
      %v1297 = vsel %vm1288, 1, 0
      %v1298 = vsel %vm1289, 1, 0
      %v1299 = vsel %vm1290, 1, 0
      %v1300 = vsel %vm1291, 1, 0
      %v1301 = vsel %vm1292, 1, 0
      %v1302 = vsel %vm1293, 1, 0
      %v1303 = vsel %vm1294, 1, 0
      %vm1304 = vcmp.eq.s32.totalorder %v1295, 1
      %vm1305 = vcmp.eq.s32.totalorder %v1296, 1
      %vm1306 = vcmp.eq.s32.totalorder %v1297, 1
      %vm1307 = vcmp.eq.s32.totalorder %v1298, 1
      %vm1308 = vcmp.eq.s32.totalorder %v1299, 1
      %vm1309 = vcmp.eq.s32.totalorder %v1300, 1
      %vm1310 = vcmp.eq.s32.totalorder %v1301, 1
      %vm1311 = vcmp.eq.s32.totalorder %v1302, 1
      %vm1312 = vcmp.eq.s32.totalorder %v1303, 1
      %v1313 = vsel %vm1304, %v637, 0.0
      %v1314 = vsel %vm1305, %v638, 0.0
      %v1315 = vsel %vm1306, %v639, 0.0
      %v1316 = vsel %vm1307, %v640, 0.0
      %v1317 = vsel %vm1308, %v641, 0.0
      %v1318 = vsel %vm1309, %v642, 0.0
      %v1319 = vsel %vm1310, %v643, 0.0
      %v1320 = vsel %vm1311, %v644, 0.0
      %v1321 = vsel %vm1312, %v645, 0.0
      %v1322 = vpack.c.bf16 %v1313, %v1313
      %v1323 = vpack.c.bf16 %v1314, %v1314
      %v1324 = vpack.c.bf16 %v1315, %v1315
      %v1325 = vpack.c.bf16 %v1316, %v1316
      %v1326 = vpack.c.bf16 %v1317, %v1317
      %v1327 = vpack.c.bf16 %v1318, %v1318
      %v1328 = vpack.c.bf16 %v1319, %v1319
      %v1329 = vpack.c.bf16 %v1320, %v1320
      %v1330 = vpack.c.bf16 %v1321, %v1321
      %1331 = vst.msk [vmem:[#allocation2 + $0x8] sm:$0xf] %vm226, %v1322
      %1332 = vst.msk [vmem:[#allocation2 + $0xc] sm:$0xf] %vm226, %v1323
      %1333 = vst.msk [vmem:[#allocation2 + $0x10] sm:$0xf] %vm226, %v1324
      %1334 = vst.msk [vmem:[#allocation2 + $0x14] sm:$0xf] %vm226, %v1325
      %1335 = vst.msk [vmem:[#allocation2 + $0x18] sm:$0xf] %vm226, %v1326
      %1336 = vst.msk [vmem:[#allocation2 + $0x1c] sm:$0xf] %vm226, %v1327
      %1337 = vst.msk [vmem:[#allocation2 + $0x20] sm:$0xf] %vm226, %v1328
      %1338 = vst.msk [vmem:[#allocation2 + $0x24] sm:$0xf] %vm226, %v1329
      %1339 = vst.msk [vmem:[#allocation2 + $0x28] sm:$0xf] %vm226, %v1330
      %v1340 = vld [vmem:[#allocation2] sm:$0x8]
      %v1341 = vld [vmem:[#allocation2 + $0x4] sm:$0xf]
      %v1342 = vld [vmem:[#allocation2 + $0x8] sm:$0xf]
      %v1343 = vld [vmem:[#allocation2 + $0xc] sm:$0xf]
      %v1344 = vld [vmem:[#allocation2 + $0x10] sm:$0xf]
      %v1345 = vld [vmem:[#allocation2 + $0x14] sm:$0xf]
      %v1346 = vld [vmem:[#allocation2 + $0x18] sm:$0xf]
      %v1347 = vld [vmem:[#allocation2 + $0x1c] sm:$0xf]
      %v1348 = vld [vmem:[#allocation2 + $0x20] sm:$0xf]
      %v1349 = vld [vmem:[#allocation2 + $0x24] sm:$0x7]
      %v1350 = vld [vmem:[%s3] sm:$0xf]
      %v1351 = vld [vmem:[%s3 + $0x4] sm:$0xf]
      %v1352 = vld [vmem:[%s3 + $0x8] sm:$0xf]
      %v1353 = vld [vmem:[%s3 + $0xc] sm:$0xf]
      %v1354 = vld [vmem:[#allocation2 + $0x24] sm:$0xf]
      %s1355 = scalar_lea.vmem %s3, 16
      %v1356 = vld [vmem:[%s1355] sm:$0xf]
      %v1357 = vld [vmem:[%s1355 + $0x4] sm:$0xf]
      %v1358 = vld [vmem:[%s1355 + $0x8] sm:$0xf]
      %v1359 = vld [vmem:[%s1355 + $0xc] sm:$0xf]
      %v1370 = vunpack.c.l.b16 %v1340
      %v1371 = vunpack.c.l.b16 %v1341
      %v1372 = vunpack.c.l.b16 %v1342
      %v1373 = vunpack.c.l.b16 %v1343
      %v1374 = vunpack.c.l.b16 %v1344
      %v1375 = vunpack.c.l.b16 %v1345
      %v1376 = vunpack.c.l.b16 %v1346
      %v1377 = vunpack.c.l.b16 %v1347
      %v1378 = vunpack.c.l.b16 %v1348
      %v1379 = vunpack.c.l.b16 %v1354
      %v1380 = vpack.c.b16 %v1371, %v1370
      %v1381 = vpack.c.b16 %v1373, %v1372
      %v1382 = vpack.c.b16 %v1375, %v1374
      %v1383 = vpack.c.b16 %v1377, %v1376
      %v1384 = vpack.c.b16 %v1379, %v1378
      %vm1385 = vsmask.f32 4352
      %v1387 = vshrl.u32 %v1380, 16
      %v1389 = vrot.slane %v1387, 3
      %v1390 = vshll.u32 %v1380, 16
      %v1392 = vrot.slane %v1390, 4
      %v1393 = vor.u32 %v1389, %v1392
      %v1395 = vshrl.u32 %v1381, 16
      %v1397 = vrot.slane %v1395, 3
      %v1398 = vshll.u32 %v1381, 16
      %v1400 = vrot.slane %v1398, 4
      %v1401 = vor.u32 %v1397, %v1400
      %v1402 = vsel %vm1385, %v1393, %v1401
      %v1404 = vshrl.u32 %v1382, 16
      %v1406 = vrot.slane %v1404, 3
      %v1407 = vshll.u32 %v1382, 16
      %v1409 = vrot.slane %v1407, 4
      %v1410 = vor.u32 %v1406, %v1409
      %v1411 = vsel %vm1385, %v1401, %v1410
      %v1413 = vshrl.u32 %v1383, 16
      %v1415 = vrot.slane %v1413, 3
      %v1416 = vshll.u32 %v1383, 16
      %v1418 = vrot.slane %v1416, 4
      %v1419 = vor.u32 %v1415, %v1418
      %v1420 = vsel %vm1385, %v1410, %v1419
      %v1422 = vshrl.u32 %v1384, 16
      %v1424 = vrot.slane %v1422, 3
      %v1425 = vshll.u32 %v1384, 16
      %v1427 = vrot.slane %v1425, 4
      %v1428 = vor.u32 %v1424, %v1427
      %v1429 = vsel %vm1385, %v1419, %v1428
      %v1434 = vunpack.c.l.b16 %v1356
      %v1435 = vunpack.c.l.b16 %v1357
      %v1436 = vunpack.c.l.b16 %v1358
      %v1437 = vunpack.c.l.b16 %v1359
      %v1438 = vpack.c.b16 %v1435, %v1434
      %v1439 = vpack.c.b16 %v1437, %v1436
      %vm1442 = vcmask 261120
      %v1444 = vsel %vm1442, %v1402, 0
      %v1447 = vsel %vm1442, %v1411, 0
      %v1450 = vsel %vm1442, %v1420, 0
      %v1453 = vsel %vm1442, %v1429, 0
      %v1456 = vsel %vm1442, %v1428, 0
      %1458 = vmatpush.bf16.msra.mxu0 0
      %1459 = vmatpush.bf16.msra.mxu0 0
      %1460 = vmatpush.bf16.msra.mxu0 0
      %1461 = vmatpush.bf16.msra.mxu0 0
      %1462 = vmatpush.bf16.msra.mxu0 0
      %1463 = vmatpush.bf16.msra.mxu0 0
      %1464 = vmatpush.bf16.msra.mxu0 %v1439
      %1465 = vmatpush.bf16.msra.mxu0 %v1438
      %1466 = vmatmul.bf16.gmra.mxu0 %v1444
      %v1467 = vpop.f32.mrf.mxu0
      %v1468 = vadd.f32 0.0, %v1467
      %v1469 = vpop.f32.mrf.mxu0
      %v1470 = vadd.f32 0.0, %v1469
      %1471 = vmatmul.bf16.gmra.mxu0 %v1447
      %v1472 = vpop.f32.mrf.mxu0
      %v1473 = vadd.f32 0.0, %v1472
      %v1474 = vpop.f32.mrf.mxu0
      %v1475 = vadd.f32 0.0, %v1474
      %1476 = vmatmul.bf16.gmra.mxu0 %v1450
      %v1477 = vpop.f32.mrf.mxu0
      %v1478 = vadd.f32 0.0, %v1477
      %v1479 = vpop.f32.mrf.mxu0
      %v1480 = vadd.f32 0.0, %v1479
      %1481 = vmatmul.bf16.gmra.mxu0 %v1453
      %v1482 = vpop.f32.mrf.mxu0
      %v1483 = vadd.f32 0.0, %v1482
      %v1484 = vpop.f32.mrf.mxu0
      %v1485 = vadd.f32 0.0, %v1484
      %1486 = vmatmul.bf16.gmra.mxu0 %v1456
      %v1487 = vpop.f32.mrf.mxu0
      %v1488 = vadd.f32 0.0, %v1487
      %v1489 = vpop.f32.mrf.mxu0
      %1490 = vdwg.mxu0
      %v1492 = vunpack.c.l.b16 %v1349
      %v1493 = vpack.c.b16 %v1492, %v1378
      %vm1494 = vcmask 1044480
      %v1495 = vrot.slane %v1380, 3
      %v1496 = vrot.slane %v1381, 3
      %v1497 = vsel %vm1494, %v1495, %v1496
      %v1498 = vrot.slane %v1382, 3
      %v1499 = vsel %vm1494, %v1496, %v1498
      %v1500 = vrot.slane %v1383, 3
      %v1501 = vsel %vm1494, %v1498, %v1500
      %v1502 = vrot.slane %v1493, 3
      %v1503 = vsel %vm1494, %v1500, %v1502
      %v1508 = vunpack.c.l.b16 %v1350
      %v1509 = vunpack.c.l.b16 %v1351
      %v1510 = vunpack.c.l.b16 %v1352
      %v1511 = vunpack.c.l.b16 %v1353
      %v1512 = vpack.c.b16 %v1509, %v1508
      %v1513 = vpack.c.b16 %v1511, %v1510
      %v1517 = vsel %vm1442, %v1497, 0
      %v1520 = vsel %vm1442, %v1499, 0
      %v1523 = vsel %vm1442, %v1501, 0
      %v1526 = vsel %vm1442, %v1503, 0
      %v1529 = vsel %vm1442, %v1502, 0
      %1531 = vmatpush.bf16.msra.mxu0 0
      %1532 = vmatpush.bf16.msra.mxu0 0
      %1533 = vmatpush.bf16.msra.mxu0 0
      %1534 = vmatpush.bf16.msra.mxu0 0
      %1535 = vmatpush.bf16.msra.mxu0 0
      %1536 = vmatpush.bf16.msra.mxu0 0
      %1537 = vmatpush.bf16.msra.mxu0 %v1513
      %1538 = vmatpush.bf16.msra.mxu0 %v1512
      %1539 = vmatmul.bf16.gmra.mxu0 %v1517
      %v1540 = vpop.f32.mrf.mxu0
      %v1541 = vadd.f32 %v1468, %v1540
      %v1542 = vpop.f32.mrf.mxu0
      %v1543 = vadd.f32 %v1470, %v1542
      %1544 = vmatmul.bf16.gmra.mxu0 %v1520
      %v1545 = vpop.f32.mrf.mxu0
      %v1546 = vadd.f32 %v1473, %v1545
      %v1547 = vpop.f32.mrf.mxu0
      %v1548 = vadd.f32 %v1475, %v1547
      %1549 = vmatmul.bf16.gmra.mxu0 %v1523
      %v1550 = vpop.f32.mrf.mxu0
      %v1551 = vadd.f32 %v1478, %v1550
      %v1552 = vpop.f32.mrf.mxu0
      %v1553 = vadd.f32 %v1480, %v1552
      %1554 = vmatmul.bf16.gmra.mxu0 %v1526
      %v1555 = vpop.f32.mrf.mxu0
      %v1556 = vadd.f32 %v1483, %v1555
      %v1557 = vpop.f32.mrf.mxu0
      %v1558 = vadd.f32 %v1485, %v1557
      %1559 = vmatmul.bf16.gmra.mxu0 %v1529
      %v1560 = vpop.f32.mrf.mxu0
      %v1561 = vadd.f32 %v1488, %v1560
      %v1562 = vpop.f32.mrf.mxu0
      %1563 = vdwg.mxu0
      %s1564 = scalar_lea.vmem %s3, 32
      %v1565 = vld [vmem:[%s1564] sm:$0xf]
      %v1566 = vld [vmem:[%s1564 + $0x4] sm:$0xf]
      %v1567 = vld [vmem:[%s1564 + $0x8] sm:$0xf]
      %v1568 = vld [vmem:[%s1564 + $0xc] sm:$0xf]
      %v1569 = vpack.c.b16 %v1372, %v1371
      %v1570 = vpack.c.b16 %v1374, %v1373
      %v1571 = vpack.c.b16 %v1376, %v1375
      %v1572 = vpack.c.b16 %v1378, %v1377
      %v1573 = vpack.c.b16 %v1379, %v1379
      %v1578 = vunpack.c.l.b16 %v1565
      %v1579 = vunpack.c.l.b16 %v1566
      %v1580 = vunpack.c.l.b16 %v1567
      %v1581 = vunpack.c.l.b16 %v1568
      %v1582 = vpack.c.b16 %v1579, %v1578
      %v1583 = vpack.c.b16 %v1581, %v1580
      %v1587 = vsel %vm1442, %v1569, 0
      %v1590 = vsel %vm1442, %v1570, 0
      %v1593 = vsel %vm1442, %v1571, 0
      %v1596 = vsel %vm1442, %v1572, 0
      %v1599 = vsel %vm1442, %v1573, 0
      %1601 = vmatpush.bf16.msra.mxu0 0
      %1602 = vmatpush.bf16.msra.mxu0 0
      %1603 = vmatpush.bf16.msra.mxu0 0
      %1604 = vmatpush.bf16.msra.mxu0 0
      %1605 = vmatpush.bf16.msra.mxu0 0
      %1606 = vmatpush.bf16.msra.mxu0 0
      %1607 = vmatpush.bf16.msra.mxu0 %v1583
      %1608 = vmatpush.bf16.msra.mxu0 %v1582
      %1609 = vmatmul.bf16.gmra.mxu0 %v1587
      %v1610 = vpop.f32.mrf.mxu0
      %v1611 = vadd.f32 0.0, %v1610
      %v1612 = vpop.f32.mrf.mxu0
      %v1613 = vadd.f32 0.0, %v1612
      %1614 = vmatmul.bf16.gmra.mxu0 %v1590
      %v1615 = vpop.f32.mrf.mxu0
      %v1616 = vadd.f32 0.0, %v1615
      %v1617 = vpop.f32.mrf.mxu0
      %v1618 = vadd.f32 0.0, %v1617
      %1619 = vmatmul.bf16.gmra.mxu0 %v1593
      %v1620 = vpop.f32.mrf.mxu0
      %v1621 = vadd.f32 0.0, %v1620
      %v1622 = vpop.f32.mrf.mxu0
      %v1623 = vadd.f32 0.0, %v1622
      %1624 = vmatmul.bf16.gmra.mxu0 %v1596
      %v1625 = vpop.f32.mrf.mxu0
      %v1626 = vadd.f32 0.0, %v1625
      %v1627 = vpop.f32.mrf.mxu0
      %v1628 = vadd.f32 0.0, %v1627
      %1629 = vmatmul.bf16.gmra.mxu0 %v1599
      %v1630 = vpop.f32.mrf.mxu0
      %v1631 = vadd.f32 0.0, %v1630
      %v1632 = vpop.f32.mrf.mxu0
      %1633 = vdwg.mxu0
      %v1634 = vadd.f32 %v1541, %v1611
      %v1635 = vadd.f32 %v1543, %v1613
      %v1636 = vadd.f32 %v1546, %v1616
      %v1637 = vadd.f32 %v1548, %v1618
      %v1638 = vadd.f32 %v1551, %v1621
      %v1639 = vadd.f32 %v1553, %v1623
      %v1640 = vadd.f32 %v1556, %v1626
      %v1641 = vadd.f32 %v1558, %v1628
      %v1642 = vadd.f32 %v1561, %v1631
      %v1643 = vld [vmem:[#allocation2 + $0x4] sm:$0x8]
      %v1644 = vld [vmem:[#allocation2 + $0x8] sm:$0xf]
      %v1645 = vld [vmem:[#allocation2 + $0xc] sm:$0xf]
      %v1646 = vld [vmem:[#allocation2 + $0x10] sm:$0xf]
      %v1647 = vld [vmem:[#allocation2 + $0x14] sm:$0xf]
      %v1648 = vld [vmem:[#allocation2 + $0x18] sm:$0xf]
      %v1649 = vld [vmem:[#allocation2 + $0x1c] sm:$0xf]
      %v1650 = vld [vmem:[#allocation2 + $0x20] sm:$0xf]
      %v1651 = vld [vmem:[#allocation2 + $0x24] sm:$0xf]
      %v1652 = vld [vmem:[#allocation2 + $0x28] sm:$0xf]
      %s1653 = scalar_lea.vmem %s3, 48
      %v1654 = vld [vmem:[%s1653] sm:$0xf]
      %v1655 = vld [vmem:[%s1653 + $0x4] sm:$0xf]
      %v1656 = vld [vmem:[%s1653 + $0x8] sm:$0xf]
      %v1657 = vld [vmem:[%s1653 + $0xc] sm:$0xf]
      %v1668 = vunpack.c.l.b16 %v1643
      %v1669 = vunpack.c.l.b16 %v1644
      %v1670 = vunpack.c.l.b16 %v1645
      %v1671 = vunpack.c.l.b16 %v1646
      %v1672 = vunpack.c.l.b16 %v1647
      %v1673 = vunpack.c.l.b16 %v1648
      %v1674 = vunpack.c.l.b16 %v1649
      %v1675 = vunpack.c.l.b16 %v1650
      %v1676 = vunpack.c.l.b16 %v1651
      %v1677 = vunpack.c.l.b16 %v1652
      %v1678 = vpack.c.b16 %v1669, %v1668
      %v1679 = vpack.c.b16 %v1671, %v1670
      %v1680 = vpack.c.b16 %v1673, %v1672
      %v1681 = vpack.c.b16 %v1675, %v1674
      %v1682 = vpack.c.b16 %v1677, %v1676
      %v1684 = vshrl.u32 %v1678, 16
      %v1686 = vrot.slane %v1684, 3
      %v1687 = vshll.u32 %v1678, 16
      %v1689 = vrot.slane %v1687, 4
      %v1690 = vor.u32 %v1686, %v1689
      %v1692 = vshrl.u32 %v1679, 16
      %v1694 = vrot.slane %v1692, 3
      %v1695 = vshll.u32 %v1679, 16
      %v1697 = vrot.slane %v1695, 4
      %v1698 = vor.u32 %v1694, %v1697
      %v1699 = vsel %vm1385, %v1690, %v1698
      %v1701 = vshrl.u32 %v1680, 16
      %v1703 = vrot.slane %v1701, 3
      %v1704 = vshll.u32 %v1680, 16
      %v1706 = vrot.slane %v1704, 4
      %v1707 = vor.u32 %v1703, %v1706
      %v1708 = vsel %vm1385, %v1698, %v1707
      %v1710 = vshrl.u32 %v1681, 16
      %v1712 = vrot.slane %v1710, 3
      %v1713 = vshll.u32 %v1681, 16
      %v1715 = vrot.slane %v1713, 4
      %v1716 = vor.u32 %v1712, %v1715
      %v1717 = vsel %vm1385, %v1707, %v1716
      %v1719 = vshrl.u32 %v1682, 16
      %v1721 = vrot.slane %v1719, 3
      %v1722 = vshll.u32 %v1682, 16
      %v1724 = vrot.slane %v1722, 4
      %v1725 = vor.u32 %v1721, %v1724
      %v1726 = vsel %vm1385, %v1716, %v1725
      %v1731 = vunpack.c.l.b16 %v1654
      %v1732 = vunpack.c.l.b16 %v1655
      %v1733 = vunpack.c.l.b16 %v1656
      %v1734 = vunpack.c.l.b16 %v1657
      %v1735 = vpack.c.b16 %v1732, %v1731
      %v1736 = vpack.c.b16 %v1734, %v1733
      %v1740 = vsel %vm1442, %v1699, 0
      %v1743 = vsel %vm1442, %v1708, 0
      %v1746 = vsel %vm1442, %v1717, 0
      %v1749 = vsel %vm1442, %v1726, 0
      %v1752 = vsel %vm1442, %v1725, 0
      %1754 = vmatpush.bf16.msra.mxu0 0
      %1755 = vmatpush.bf16.msra.mxu0 0
      %1756 = vmatpush.bf16.msra.mxu0 0
      %1757 = vmatpush.bf16.msra.mxu0 0
      %1758 = vmatpush.bf16.msra.mxu0 0
      %1759 = vmatpush.bf16.msra.mxu0 0
      %1760 = vmatpush.bf16.msra.mxu0 %v1736
      %1761 = vmatpush.bf16.msra.mxu0 %v1735
      %1762 = vmatmul.bf16.gmra.mxu0 %v1740
      %v1763 = vpop.f32.mrf.mxu0
      %v1764 = vadd.f32 0.0, %v1763
      %v1765 = vpop.f32.mrf.mxu0
      %v1766 = vadd.f32 0.0, %v1765
      %1767 = vmatmul.bf16.gmra.mxu0 %v1743
      %v1768 = vpop.f32.mrf.mxu0
      %v1769 = vadd.f32 0.0, %v1768
      %v1770 = vpop.f32.mrf.mxu0
      %v1771 = vadd.f32 0.0, %v1770
      %1772 = vmatmul.bf16.gmra.mxu0 %v1746
      %v1773 = vpop.f32.mrf.mxu0
      %v1774 = vadd.f32 0.0, %v1773
      %v1775 = vpop.f32.mrf.mxu0
      %v1776 = vadd.f32 0.0, %v1775
      %1777 = vmatmul.bf16.gmra.mxu0 %v1749
      %v1778 = vpop.f32.mrf.mxu0
      %v1779 = vadd.f32 0.0, %v1778
      %v1780 = vpop.f32.mrf.mxu0
      %v1781 = vadd.f32 0.0, %v1780
      %1782 = vmatmul.bf16.gmra.mxu0 %v1752
      %v1783 = vpop.f32.mrf.mxu0
      %v1784 = vadd.f32 0.0, %v1783
      %v1785 = vpop.f32.mrf.mxu0
      %1786 = vdwg.mxu0
      %v1787 = vadd.f32 %v1634, %v1764
      %v1788 = vadd.f32 %v1635, %v1766
      %v1789 = vadd.f32 %v1636, %v1769
      %v1790 = vadd.f32 %v1637, %v1771
      %v1791 = vadd.f32 %v1638, %v1774
      %v1792 = vadd.f32 %v1639, %v1776
      %v1793 = vadd.f32 %v1640, %v1779
      %v1794 = vadd.f32 %v1641, %v1781
      %v1795 = vadd.f32 %v1642, %v1784
      %s1796 = scalar_lea.vmem %s3, 64
      %v1797 = vld [vmem:[%s1796] sm:$0xf]
      %v1798 = vld [vmem:[%s1796 + $0x4] sm:$0xf]
      %v1799 = vld [vmem:[%s1796 + $0x8] sm:$0xf]
      %v1800 = vld [vmem:[%s1796 + $0xc] sm:$0xf]
      %v1801 = vpack.c.b16 %v1670, %v1669
      %v1802 = vpack.c.b16 %v1672, %v1671
      %v1803 = vpack.c.b16 %v1674, %v1673
      %v1804 = vpack.c.b16 %v1676, %v1675
      %v1805 = vpack.c.b16 %v1677, %v1677
      %v1810 = vunpack.c.l.b16 %v1797
      %v1811 = vunpack.c.l.b16 %v1798
      %v1812 = vunpack.c.l.b16 %v1799
      %v1813 = vunpack.c.l.b16 %v1800
      %v1814 = vpack.c.b16 %v1811, %v1810
      %v1815 = vpack.c.b16 %v1813, %v1812
      %v1819 = vsel %vm1442, %v1801, 0
      %v1822 = vsel %vm1442, %v1802, 0
      %v1825 = vsel %vm1442, %v1803, 0
      %v1828 = vsel %vm1442, %v1804, 0
      %v1831 = vsel %vm1442, %v1805, 0
      %1833 = vmatpush.bf16.msra.mxu0 0
      %1834 = vmatpush.bf16.msra.mxu0 0
      %1835 = vmatpush.bf16.msra.mxu0 0
      %1836 = vmatpush.bf16.msra.mxu0 0
      %1837 = vmatpush.bf16.msra.mxu0 0
      %1838 = vmatpush.bf16.msra.mxu0 0
      %1839 = vmatpush.bf16.msra.mxu0 %v1815
      %1840 = vmatpush.bf16.msra.mxu0 %v1814
      %1841 = vmatmul.bf16.gmra.mxu0 %v1819
      %v1842 = vpop.f32.mrf.mxu0
      %v1843 = vadd.f32 0.0, %v1842
      %v1844 = vpop.f32.mrf.mxu0
      %v1845 = vadd.f32 0.0, %v1844
      %1846 = vmatmul.bf16.gmra.mxu0 %v1822
      %v1847 = vpop.f32.mrf.mxu0
      %v1848 = vadd.f32 0.0, %v1847
      %v1849 = vpop.f32.mrf.mxu0
      %v1850 = vadd.f32 0.0, %v1849
      %1851 = vmatmul.bf16.gmra.mxu0 %v1825
      %v1852 = vpop.f32.mrf.mxu0
      %v1853 = vadd.f32 0.0, %v1852
      %v1854 = vpop.f32.mrf.mxu0
      %v1855 = vadd.f32 0.0, %v1854
      %1856 = vmatmul.bf16.gmra.mxu0 %v1828
      %v1857 = vpop.f32.mrf.mxu0
      %v1858 = vadd.f32 0.0, %v1857
      %v1859 = vpop.f32.mrf.mxu0
      %v1860 = vadd.f32 0.0, %v1859
      %1861 = vmatmul.bf16.gmra.mxu0 %v1831
      %v1862 = vpop.f32.mrf.mxu0
      %v1863 = vadd.f32 0.0, %v1862
      %v1864 = vpop.f32.mrf.mxu0
      %1865 = vdwg.mxu0
      %v1866 = vadd.f32 %v1787, %v1843
      %v1867 = vadd.f32 %v1788, %v1845
      %v1868 = vadd.f32 %v1789, %v1848
      %v1869 = vadd.f32 %v1790, %v1850
      %v1870 = vadd.f32 %v1791, %v1853
      %v1871 = vadd.f32 %v1792, %v1855
      %v1872 = vadd.f32 %v1793, %v1858
      %v1873 = vadd.f32 %v1794, %v1860
      %v1874 = vadd.f32 %v1795, %v1863
      %v1875 = vld [vmem:[#allocation2 + $0x8] sm:$0xf]
      %v1876 = vld [vmem:[#allocation2 + $0xc] sm:$0xf]
      %v1877 = vld [vmem:[#allocation2 + $0x10] sm:$0xf]
      %v1878 = vld [vmem:[#allocation2 + $0x14] sm:$0xf]
      %v1879 = vld [vmem:[#allocation2 + $0x18] sm:$0xf]
      %v1880 = vld [vmem:[#allocation2 + $0x1c] sm:$0xf]
      %v1881 = vld [vmem:[#allocation2 + $0x20] sm:$0xf]
      %v1882 = vld [vmem:[#allocation2 + $0x24] sm:$0xf]
      %v1883 = vld [vmem:[#allocation2 + $0x28] sm:$0xf]
      %v1884 = vld [vmem:[#allocation2 + $0x2c] sm:$0x1]
      %s1885 = scalar_lea.vmem %s3, 80
      %v1886 = vld [vmem:[%s1885] sm:$0xf]
      %v1887 = vld [vmem:[%s1885 + $0x4] sm:$0xf]
      %v1888 = vld [vmem:[%s1885 + $0x8] sm:$0xf]
      %v1889 = vld [vmem:[%s1885 + $0xc] sm:$0xf]
      %v1900 = vunpack.c.l.b16 %v1875
      %v1901 = vunpack.c.l.b16 %v1876
      %v1902 = vunpack.c.l.b16 %v1877
      %v1903 = vunpack.c.l.b16 %v1878
      %v1904 = vunpack.c.l.b16 %v1879
      %v1905 = vunpack.c.l.b16 %v1880
      %v1906 = vunpack.c.l.b16 %v1881
      %v1907 = vunpack.c.l.b16 %v1882
      %v1908 = vunpack.c.l.b16 %v1883
      %v1909 = vunpack.c.l.b16 %v1884
      %v1910 = vpack.c.b16 %v1901, %v1900
      %v1911 = vpack.c.b16 %v1903, %v1902
      %v1912 = vpack.c.b16 %v1905, %v1904
      %v1913 = vpack.c.b16 %v1907, %v1906
      %v1914 = vpack.c.b16 %v1909, %v1908
      %v1916 = vshrl.u32 %v1910, 16
      %v1918 = vshll.u32 %v1910, 16
      %v1920 = vrot.slane %v1918, 1
      %v1921 = vor.u32 %v1916, %v1920
      %v1923 = vshll.u32 %v1911, 16
      %v1925 = vrot.slane %v1923, 1
      %v1926 = vsel %vm272, %v1921, %v1925
      %v1927 = vshrl.u32 %v1911, 16
      %v1929 = vor.u32 %v1927, %v1925
      %v1931 = vshll.u32 %v1912, 16
      %v1933 = vrot.slane %v1931, 1
      %v1934 = vsel %vm272, %v1929, %v1933
      %v1935 = vshrl.u32 %v1912, 16
      %v1937 = vor.u32 %v1935, %v1933
      %v1939 = vshll.u32 %v1913, 16
      %v1941 = vrot.slane %v1939, 1
      %v1942 = vsel %vm272, %v1937, %v1941
      %v1943 = vshrl.u32 %v1913, 16
      %v1945 = vor.u32 %v1943, %v1941
      %v1947 = vshll.u32 %v1914, 16
      %v1949 = vrot.slane %v1947, 1
      %v1950 = vsel %vm272, %v1945, %v1949
      %v1951 = vshrl.u32 %v1914, 16
      %v1953 = vor.u32 %v1951, %v1949
      %v1958 = vunpack.c.l.b16 %v1886
      %v1959 = vunpack.c.l.b16 %v1887
      %v1960 = vunpack.c.l.b16 %v1888
      %v1961 = vunpack.c.l.b16 %v1889
      %v1962 = vpack.c.b16 %v1959, %v1958
      %v1963 = vpack.c.b16 %v1961, %v1960
      %v1967 = vsel %vm1442, %v1926, 0
      %v1970 = vsel %vm1442, %v1934, 0
      %v1973 = vsel %vm1442, %v1942, 0
      %v1976 = vsel %vm1442, %v1950, 0
      %v1979 = vsel %vm1442, %v1953, 0
      %1981 = vmatpush.bf16.msra.mxu0 0
      %1982 = vmatpush.bf16.msra.mxu0 0
      %1983 = vmatpush.bf16.msra.mxu0 0
      %1984 = vmatpush.bf16.msra.mxu0 0
      %1985 = vmatpush.bf16.msra.mxu0 0
      %1986 = vmatpush.bf16.msra.mxu0 0
      %1987 = vmatpush.bf16.msra.mxu0 %v1963
      %1988 = vmatpush.bf16.msra.mxu0 %v1962
      %1989 = vmatmul.bf16.gmra.mxu0 %v1967
      %v1990 = vpop.f32.mrf.mxu0
      %v1991 = vadd.f32 0.0, %v1990
      %v1992 = vpop.f32.mrf.mxu0
      %v1993 = vadd.f32 0.0, %v1992
      %1994 = vmatmul.bf16.gmra.mxu0 %v1970
      %v1995 = vpop.f32.mrf.mxu0
      %v1996 = vadd.f32 0.0, %v1995
      %v1997 = vpop.f32.mrf.mxu0
      %v1998 = vadd.f32 0.0, %v1997
      %1999 = vmatmul.bf16.gmra.mxu0 %v1973
      %v2000 = vpop.f32.mrf.mxu0
      %v2001 = vadd.f32 0.0, %v2000
      %v2002 = vpop.f32.mrf.mxu0
      %v2003 = vadd.f32 0.0, %v2002
      %2004 = vmatmul.bf16.gmra.mxu0 %v1976
      %v2005 = vpop.f32.mrf.mxu0
      %v2006 = vadd.f32 0.0, %v2005
      %v2007 = vpop.f32.mrf.mxu0
      %v2008 = vadd.f32 0.0, %v2007
      %2009 = vmatmul.bf16.gmra.mxu0 %v1979
      %v2010 = vpop.f32.mrf.mxu0
      %v2011 = vadd.f32 0.0, %v2010
      %v2012 = vpop.f32.mrf.mxu0
      %2013 = vdwg.mxu0
      %v2014 = vadd.f32 %v1866, %v1991
      %v2015 = vadd.f32 %v1867, %v1993
      %v2016 = vadd.f32 %v1868, %v1996
      %v2017 = vadd.f32 %v1869, %v1998
      %v2018 = vadd.f32 %v1870, %v2001
      %v2019 = vadd.f32 %v1871, %v2003
      %v2020 = vadd.f32 %v1872, %v2006
      %v2021 = vadd.f32 %v1873, %v2008
      %v2022 = vadd.f32 %v1874, %v2011
      %v2023 = vld [vmem:[#allocation2 + $0x2c] sm:$0xf]
      %s2024 = scalar_lea.vmem %s3, 96
      %v2025 = vld [vmem:[%s2024] sm:$0xf]
      %v2026 = vld [vmem:[%s2024 + $0x4] sm:$0xf]
      %v2027 = vld [vmem:[%s2024 + $0x8] sm:$0xf]
      %v2028 = vld [vmem:[%s2024 + $0xc] sm:$0xf]
      %v2030 = vunpack.c.l.b16 %v2023
      %v2031 = vpack.c.b16 %v1902, %v1901
      %v2032 = vpack.c.b16 %v1904, %v1903
      %v2033 = vpack.c.b16 %v1906, %v1905
      %v2034 = vpack.c.b16 %v1908, %v1907
      %v2035 = vpack.c.b16 %v2030, %v2030
      %v2040 = vunpack.c.l.b16 %v2025
      %v2041 = vunpack.c.l.b16 %v2026
      %v2042 = vunpack.c.l.b16 %v2027
      %v2043 = vunpack.c.l.b16 %v2028
      %v2044 = vpack.c.b16 %v2041, %v2040
      %v2045 = vpack.c.b16 %v2043, %v2042
      %v2049 = vsel %vm1442, %v2031, 0
      %v2052 = vsel %vm1442, %v2032, 0
      %v2055 = vsel %vm1442, %v2033, 0
      %v2058 = vsel %vm1442, %v2034, 0
      %v2061 = vsel %vm1442, %v2035, 0
      %2063 = vmatpush.bf16.msra.mxu0 0
      %2064 = vmatpush.bf16.msra.mxu0 0
      %2065 = vmatpush.bf16.msra.mxu0 0
      %2066 = vmatpush.bf16.msra.mxu0 0
      %2067 = vmatpush.bf16.msra.mxu0 0
      %2068 = vmatpush.bf16.msra.mxu0 0
      %2069 = vmatpush.bf16.msra.mxu0 %v2045
      %2070 = vmatpush.bf16.msra.mxu0 %v2044
      %2071 = vmatmul.bf16.gmra.mxu0 %v2049
      %v2072 = vpop.f32.mrf.mxu0
      %v2073 = vadd.f32 0.0, %v2072
      %v2074 = vpop.f32.mrf.mxu0
      %v2075 = vadd.f32 0.0, %v2074
      %2076 = vmatmul.bf16.gmra.mxu0 %v2052
      %v2077 = vpop.f32.mrf.mxu0
      %v2078 = vadd.f32 0.0, %v2077
      %v2079 = vpop.f32.mrf.mxu0
      %v2080 = vadd.f32 0.0, %v2079
      %2081 = vmatmul.bf16.gmra.mxu0 %v2055
      %v2082 = vpop.f32.mrf.mxu0
      %v2083 = vadd.f32 0.0, %v2082
      %v2084 = vpop.f32.mrf.mxu0
      %v2085 = vadd.f32 0.0, %v2084
      %2086 = vmatmul.bf16.gmra.mxu0 %v2058
      %v2087 = vpop.f32.mrf.mxu0
      %v2088 = vadd.f32 0.0, %v2087
      %v2089 = vpop.f32.mrf.mxu0
      %v2090 = vadd.f32 0.0, %v2089
      %2091 = vmatmul.bf16.gmra.mxu0 %v2061
      %v2092 = vpop.f32.mrf.mxu0
      %v2093 = vadd.f32 0.0, %v2092
      %v2094 = vpop.f32.mrf.mxu0
      %2095 = vdwg.mxu0
      %v2096 = vadd.f32 %v2014, %v2073
      %v2097 = vadd.f32 %v2015, %v2075
      %v2098 = vadd.f32 %v2016, %v2078
      %v2099 = vadd.f32 %v2017, %v2080
      %v2100 = vadd.f32 %v2018, %v2083
      %v2101 = vadd.f32 %v2019, %v2085
      %v2102 = vadd.f32 %v2020, %v2088
      %v2103 = vadd.f32 %v2021, %v2090
      %v2104 = vadd.f32 %v2022, %v2093
      %v2105 = vld [vmem:[#allocation2 + $0xc] sm:$0xf]
      %v2106 = vld [vmem:[#allocation2 + $0x10] sm:$0xf]
      %v2107 = vld [vmem:[#allocation2 + $0x14] sm:$0xf]
      %v2108 = vld [vmem:[#allocation2 + $0x18] sm:$0xf]
      %v2109 = vld [vmem:[#allocation2 + $0x1c] sm:$0xf]
      %v2110 = vld [vmem:[#allocation2 + $0x20] sm:$0xf]
      %v2111 = vld [vmem:[#allocation2 + $0x24] sm:$0xf]
      %v2112 = vld [vmem:[#allocation2 + $0x28] sm:$0xf]
      %v2113 = vld [vmem:[#allocation2 + $0x2c] sm:$0xf]
      %v2114 = vld [vmem:[#allocation2 + $0x30] sm:$0x1]
      %s2115 = scalar_lea.vmem %s3, 112
      %v2116 = vld [vmem:[%s2115] sm:$0xf]
      %v2117 = vld [vmem:[%s2115 + $0x4] sm:$0xf]
      %v2118 = vld [vmem:[%s2115 + $0x8] sm:$0xf]
      %v2119 = vld [vmem:[%s2115 + $0xc] sm:$0xf]
      %v2130 = vunpack.c.l.b16 %v2105
      %v2131 = vunpack.c.l.b16 %v2106
      %v2132 = vunpack.c.l.b16 %v2107
      %v2133 = vunpack.c.l.b16 %v2108
      %v2134 = vunpack.c.l.b16 %v2109
      %v2135 = vunpack.c.l.b16 %v2110
      %v2136 = vunpack.c.l.b16 %v2111
      %v2137 = vunpack.c.l.b16 %v2112
      %v2138 = vunpack.c.l.b16 %v2113
      %v2139 = vunpack.c.l.b16 %v2114
      %v2140 = vpack.c.b16 %v2131, %v2130
      %v2141 = vpack.c.b16 %v2133, %v2132
      %v2142 = vpack.c.b16 %v2135, %v2134
      %v2143 = vpack.c.b16 %v2137, %v2136
      %v2144 = vpack.c.b16 %v2139, %v2138
      %v2146 = vshrl.u32 %v2140, 16
      %v2148 = vshll.u32 %v2140, 16
      %v2150 = vrot.slane %v2148, 1
      %v2151 = vor.u32 %v2146, %v2150
      %v2153 = vshll.u32 %v2141, 16
      %v2155 = vrot.slane %v2153, 1
      %v2156 = vsel %vm272, %v2151, %v2155
      %v2157 = vshrl.u32 %v2141, 16
      %v2159 = vor.u32 %v2157, %v2155
      %v2161 = vshll.u32 %v2142, 16
      %v2163 = vrot.slane %v2161, 1
      %v2164 = vsel %vm272, %v2159, %v2163
      %v2165 = vshrl.u32 %v2142, 16
      %v2167 = vor.u32 %v2165, %v2163
      %v2169 = vshll.u32 %v2143, 16
      %v2171 = vrot.slane %v2169, 1
      %v2172 = vsel %vm272, %v2167, %v2171
      %v2173 = vshrl.u32 %v2143, 16
      %v2175 = vor.u32 %v2173, %v2171
      %v2177 = vshll.u32 %v2144, 16
      %v2179 = vrot.slane %v2177, 1
      %v2180 = vsel %vm272, %v2175, %v2179
      %v2181 = vshrl.u32 %v2144, 16
      %v2183 = vor.u32 %v2181, %v2179
      %v2188 = vunpack.c.l.b16 %v2116
      %v2189 = vunpack.c.l.b16 %v2117
      %v2190 = vunpack.c.l.b16 %v2118
      %v2191 = vunpack.c.l.b16 %v2119
      %v2192 = vpack.c.b16 %v2189, %v2188
      %v2193 = vpack.c.b16 %v2191, %v2190
      %v2197 = vsel %vm1442, %v2156, 0
      %v2200 = vsel %vm1442, %v2164, 0
      %v2203 = vsel %vm1442, %v2172, 0
      %v2206 = vsel %vm1442, %v2180, 0
      %v2209 = vsel %vm1442, %v2183, 0
      %2211 = vmatpush.bf16.msra.mxu0 0
      %2212 = vmatpush.bf16.msra.mxu0 0
      %2213 = vmatpush.bf16.msra.mxu0 0
      %2214 = vmatpush.bf16.msra.mxu0 0
      %2215 = vmatpush.bf16.msra.mxu0 0
      %2216 = vmatpush.bf16.msra.mxu0 0
      %2217 = vmatpush.bf16.msra.mxu0 %v2193
      %2218 = vmatpush.bf16.msra.mxu0 %v2192
      %2219 = vmatmul.bf16.gmra.mxu0 %v2197
      %v2220 = vpop.f32.mrf.mxu0
      %v2221 = vadd.f32 0.0, %v2220
      %v2222 = vpop.f32.mrf.mxu0
      %v2223 = vadd.f32 0.0, %v2222
      %2224 = vmatmul.bf16.gmra.mxu0 %v2200
      %v2225 = vpop.f32.mrf.mxu0
      %v2226 = vadd.f32 0.0, %v2225
      %v2227 = vpop.f32.mrf.mxu0
      %v2228 = vadd.f32 0.0, %v2227
      %2229 = vmatmul.bf16.gmra.mxu0 %v2203
      %v2230 = vpop.f32.mrf.mxu0
      %v2231 = vadd.f32 0.0, %v2230
      %v2232 = vpop.f32.mrf.mxu0
      %v2233 = vadd.f32 0.0, %v2232
      %2234 = vmatmul.bf16.gmra.mxu0 %v2206
      %v2235 = vpop.f32.mrf.mxu0
      %v2236 = vadd.f32 0.0, %v2235
      %v2237 = vpop.f32.mrf.mxu0
      %v2238 = vadd.f32 0.0, %v2237
      %2239 = vmatmul.bf16.gmra.mxu0 %v2209
      %v2240 = vpop.f32.mrf.mxu0
      %v2241 = vadd.f32 0.0, %v2240
      %v2242 = vpop.f32.mrf.mxu0
      %2243 = vdwg.mxu0
      %v2244 = vadd.f32 %v2096, %v2221
      %v2245 = vadd.f32 %v2097, %v2223
      %v2246 = vadd.f32 %v2098, %v2226
      %v2247 = vadd.f32 %v2099, %v2228
      %v2248 = vadd.f32 %v2100, %v2231
      %v2249 = vadd.f32 %v2101, %v2233
      %v2250 = vadd.f32 %v2102, %v2236
      %v2251 = vadd.f32 %v2103, %v2238
      %v2252 = vadd.f32 %v2104, %v2241
      %v2253 = vld [vmem:[#allocation2 + $0xc] sm:$0xe]
      %s2254 = scalar_lea.vmem %s3, 128
      %v2255 = vld [vmem:[%s2254] sm:$0xf]
      %v2256 = vld [vmem:[%s2254 + $0x4] sm:$0xf]
      %v2257 = vld [vmem:[%s2254 + $0x8] sm:$0xf]
      %v2258 = vld [vmem:[%s2254 + $0xc] sm:$0xf]
      %v2260 = vunpack.c.l.b16 %v2253
      %v2261 = vpack.c.b16 %v2131, %v2260
      %v2262 = vrot.slane %v2261, 1
      %v2263 = vrot.slane %v2141, 1
      %v2264 = vsel %vm533, %v2262, %v2263
      %v2265 = vrot.slane %v2142, 1
      %v2266 = vsel %vm533, %v2263, %v2265
      %v2267 = vrot.slane %v2143, 1
      %v2268 = vsel %vm533, %v2265, %v2267
      %v2269 = vrot.slane %v2144, 1
      %v2270 = vsel %vm533, %v2267, %v2269
      %v2275 = vunpack.c.l.b16 %v2255
      %v2276 = vunpack.c.l.b16 %v2256
      %v2277 = vunpack.c.l.b16 %v2257
      %v2278 = vunpack.c.l.b16 %v2258
      %v2279 = vpack.c.b16 %v2276, %v2275
      %v2280 = vpack.c.b16 %v2278, %v2277
      %v2284 = vsel %vm1442, %v2264, 0
      %v2287 = vsel %vm1442, %v2266, 0
      %v2290 = vsel %vm1442, %v2268, 0
      %v2293 = vsel %vm1442, %v2270, 0
      %v2296 = vsel %vm1442, %v2269, 0
      %2298 = vmatpush.bf16.msra.mxu0 0
      %2299 = vmatpush.bf16.msra.mxu0 0
      %2300 = vmatpush.bf16.msra.mxu0 0
      %2301 = vmatpush.bf16.msra.mxu0 0
      %2302 = vmatpush.bf16.msra.mxu0 0
      %2303 = vmatpush.bf16.msra.mxu0 0
      %2304 = vmatpush.bf16.msra.mxu0 %v2280
      %2305 = vmatpush.bf16.msra.mxu0 %v2279
      %2306 = vmatmul.bf16.gmra.mxu0 %v2284
      %v2307 = vpop.f32.mrf.mxu0
      %v2308 = vadd.f32 0.0, %v2307
      %v2309 = vpop.f32.mrf.mxu0
      %v2310 = vadd.f32 0.0, %v2309
      %2311 = vmatmul.bf16.gmra.mxu0 %v2287
      %v2312 = vpop.f32.mrf.mxu0
      %v2313 = vadd.f32 0.0, %v2312
      %v2314 = vpop.f32.mrf.mxu0
      %v2315 = vadd.f32 0.0, %v2314
      %2316 = vmatmul.bf16.gmra.mxu0 %v2290
      %v2317 = vpop.f32.mrf.mxu0
      %v2318 = vadd.f32 0.0, %v2317
      %v2319 = vpop.f32.mrf.mxu0
      %v2320 = vadd.f32 0.0, %v2319
      %2321 = vmatmul.bf16.gmra.mxu0 %v2293
      %v2322 = vpop.f32.mrf.mxu0
      %v2323 = vadd.f32 0.0, %v2322
      %v2324 = vpop.f32.mrf.mxu0
      %v2325 = vadd.f32 0.0, %v2324
      %2326 = vmatmul.bf16.gmra.mxu0 %v2296
      %v2327 = vpop.f32.mrf.mxu0
      %v2328 = vadd.f32 0.0, %v2327
      %v2329 = vpop.f32.mrf.mxu0
      %2330 = vdwg.mxu0
      %v2331 = vadd.f32 %v2244, %v2308
      %v2332 = vadd.f32 %v2245, %v2310
      %v2333 = vadd.f32 %v2246, %v2313
      %v2334 = vadd.f32 %v2247, %v2315
      %v2335 = vadd.f32 %v2248, %v2318
      %v2336 = vadd.f32 %v2249, %v2320
      %v2337 = vadd.f32 %v2250, %v2323
      %v2338 = vadd.f32 %v2251, %v2325
      %v2339 = vadd.f32 %v2252, %v2328
      %v2340 = vld [vmem:[%s4] sm:$0x1]
      %v2342 = vperm.slane %v2340, 0
      %v2344 = vadd.f32 %v2331, %v2342
      %v2345 = vadd.f32 %v2332, %v2342
      %v2346 = vadd.f32 %v2333, %v2342
      %v2347 = vadd.f32 %v2334, %v2342
      %v2348 = vadd.f32 %v2335, %v2342
      %v2349 = vadd.f32 %v2336, %v2342
      %v2350 = vadd.f32 %v2337, %v2342
      %v2351 = vadd.f32 %v2338, %v2342
      %v2352 = vadd.f32 %v2339, %v2342
      %vm2353 = vcmp.ge.f32.partialorder %v2344, 0.0
      %vm2354 = vcmp.ge.f32.partialorder %v2345, 0.0
      %vm2355 = vcmp.ge.f32.partialorder %v2346, 0.0
      %vm2356 = vcmp.ge.f32.partialorder %v2347, 0.0
      %vm2357 = vcmp.ge.f32.partialorder %v2348, 0.0
      %vm2358 = vcmp.ge.f32.partialorder %v2349, 0.0
      %vm2359 = vcmp.ge.f32.partialorder %v2350, 0.0
      %vm2360 = vcmp.ge.f32.partialorder %v2351, 0.0
      %vm2361 = vcmp.ge.f32.partialorder %v2352, 0.0
      %v2362 = vmul.f32 %v2344, 0.1
      %v2363 = vmul.f32 %v2345, 0.1
      %v2364 = vmul.f32 %v2346, 0.1
      %v2365 = vmul.f32 %v2347, 0.1
      %v2366 = vmul.f32 %v2348, 0.1
      %v2367 = vmul.f32 %v2349, 0.1
      %v2368 = vmul.f32 %v2350, 0.1
      %v2369 = vmul.f32 %v2351, 0.1
      %v2370 = vmul.f32 %v2352, 0.1
      %v2371 = vsel %vm2353, %v2344, %v2362
      %v2372 = vsel %vm2354, %v2345, %v2363
      %v2373 = vsel %vm2355, %v2346, %v2364
      %v2374 = vsel %vm2356, %v2347, %v2365
      %v2375 = vsel %vm2357, %v2348, %v2366
      %v2376 = vsel %vm2358, %v2349, %v2367
      %v2377 = vsel %vm2359, %v2350, %v2368
      %v2378 = vsel %vm2360, %v2351, %v2369
      %v2379 = vsel %vm2361, %v2352, %v2370
      %2380 = vst.msk [vmem:[%s224] sm:$0xff] %vm1442, %v2371
      %2381 = vst.msk [vmem:[%s224 + $0x8] sm:$0xff] %vm1442, %v2372
      %2382 = vst.msk [vmem:[%s224 + $0x10] sm:$0xff] %vm1442, %v2373
      %2383 = vst.msk [vmem:[%s224 + $0x18] sm:$0xff] %vm1442, %v2374
      %2384 = vst.msk [vmem:[%s224 + $0x20] sm:$0xff] %vm1442, %v2375
      %2385 = vst.msk [vmem:[%s224 + $0x28] sm:$0xff] %vm1442, %v2376
      %2386 = vst.msk [vmem:[%s224 + $0x30] sm:$0xff] %vm1442, %v2377
      %2387 = vst.msk [vmem:[%s224 + $0x38] sm:$0xff] %vm1442, %v2378
      %2388 = vst.msk [vmem:[%s224 + $0x40] sm:$0xff] %vm1442, %v2379
      %p2389 = scmp.lt.s32.totalorder %s16, 1
      %s2390 = scalar_select %p2389, %s16, 1
      %s2391 = smul.addr %s2390, 9
      %s2392 = smul.addr %s2391, 8
      %s2393 = scalar_lea.vmem %s5, %s2392
      // Predicated region
      $region41: #{a_call__.2} parent=39 // pred_check
        %p2394 = pneg %p144
      $region42: #{a_call__.2} parent=39 // pred_check_branch
        %2396 = sbr.rel (%p2394) target = $region44
      $region43: #{a_call__.2} parent=39 // pred_region
        _
      $region44: #{a_call__.2} parent=39 // pred_fallthru
        _
    $region40: #{a_call__.2} parent=5 // pred_fallthru
      _
    %p2397 = scmp.le.s32.totalorder 2, %s11
    // Predicated region
    $region45: #{a_call__.2} parent=5 // pred_check
      %p2398 = pneg %p2397
    $region46: #{a_call__.2} parent=5 // pred_check_branch
      %2400 = sbr.rel (%p2398) target = $region48
    $region47: #{a_call__.2} parent=5 // pred_region
      %s2401 = ssub.s32 %s11, 2
      // Predicated region
      $region49: #{a_call__.2} parent=47 // pred_check
        %p2402 = pneg %p150
      $region50: #{a_call__.2} parent=47 // pred_check_branch
        %2404 = sbr.rel (%p2402) target = $region52
      $region51: #{a_call__.2} parent=47 // pred_region
        %p2405 = scmp.lt.s32.totalorder %s17, 1
        %s2406 = scalar_select %p2405, %s17, 1
        %s2407 = smul.addr %s2406, 9
        %s2408 = smul.addr %s2407, 8
        %s2409 = scalar_lea.vmem %s5, %s2408
      $region52: #{a_call__.2} parent=47 // pred_fallthru
        _
    $region48: #{a_call__.2} parent=5 // pred_fallthru
      _
  $region6: #{a_call__.2} parent=0 // loop_footer
    %s15 = sadd.s32 1, %s11
  $region7: #{a_call__.2} parent=0 // loop_footer_branch
    %10 = sbr.rel target = $region3
  $region8: #{a_call__.2} parent=0 // loop_exit
    _

// kernel: a_call__.3
$region0: #{a_call__.3}
  #allocation0 [shape = 'u32[]', space=smem, size = 0x4, offset = 0x4, fixed_abs, tag = 'smem constant byte address 0x4 - core index']
  #allocation1 [shape = 'u32[72,128]{1,0:T(1,128)}', space=vmem, size = 0x9000, scoped, tag = 'internal scratch']
  #allocation2 [shape = 'bf16[40,64]{1,0:T(8,128)(2,1)}', space=vmem, size = 0x2800, scoped, tag = 'scratch operand']
  %s0 = inlined_call_operand.vmem [shape: bf16[2,32,128], index: 0, kind: input, shape index: {}]
  %s1 = inlined_call_operand.vmem [shape: bf16[4,128,64], index: 1, kind: input, shape index: {}]
  %s2 = inlined_call_operand.vmem [shape: f32[1,64], index: 2, kind: input, shape index: {}]
  %s3 = inlined_call_operand.vmem [shape: bf16[9,64,64], index: 3, kind: input, shape index: {}]
  %s4 = inlined_call_operand.vmem [shape: f32[1,64], index: 4, kind: input, shape index: {}]
  %s5 = inlined_call_operand.vmem [shape: f32[2,1,20,64], index: 5, kind: output, shape index: {}]
  %s6 = sld [smem:[#allocation0]]
  $region53: #{a_call__.3} parent=0
    _
  %s8 = ssub.s32 1, %s6
  %s9 = scalar_select 0, %s8, %s6
  loop: start=0, step=1, limit=4
  $region2: #{a_call__.3} parent=0 // loop_pre_header
    _
  $region3: #{a_call__.3} parent=0 // loop_header
    %s11 = sphi 0, %s15
    %p12 = scmp.ge.s32.totalorder %s11, 4
    %s21 = sphi 0, %s23
    %s24 = sphi 0, %s21
    %s25 = sphi 0, %s24
    %s41 = sphi 0, %s25
    %s45 = sphi 0, %s45
    %s47 = sphi 0, %s45
    %s48 = sphi 0, %s47
    %s62 = sphi 0, %s48
    %s66 = sphi 0, %s66
    %s68 = sphi 0, %s66
    %s69 = sphi 0, %s68
    %s83 = sphi 0, %s69
    %s87 = sphi 0, %s87
    %s89 = sphi 0, %s87
    %s90 = sphi 0, %s89
    %s104 = sphi 0, %s90
    %s108 = sphi 0, %s108
    %s110 = sphi 0, %s108
    %s111 = sphi 0, %s110
    %s125 = sphi 0, %s111
    %s131 = sphi 0, %s133
    %s134 = sphi 0, %s131
    %s135 = sphi 0, %s134
    %s151 = sphi 0, %s135
  $region4: #{a_call__.3} parent=0 // loop_header_branch
    %14 = sbr.rel (%p12) target = $region8
  $region5: #{a_call__.3} parent=0 // loop_body
    %s16 = ssub.s32 %s11, 1
    %s17 = ssub.s32 %s11, 2
    %s18 = sadd.s32 %s11, 1
    %s19 = ssub.s32 %s11, %s18
    %p20 = scmp.eq.s32.totalorder %s19, 0
    %s22 = sadd.s32 %s21, 1
    %s23 = scalar_select %p20, %s21, %s22
    %p26 = pneg %p20
    %p27 = scmp.eq.s32.totalorder %s11, 1
    %p28 = por %p26, %p27
    %p29 = scmp.ne.s32.totalorder %s21, %s24
    %p30 = scmp.eq.s32.totalorder %s11, 0
    %p31 = por %p29, %p30
    %p32 = scmp.ne.s32.totalorder %s21, %s24
    %p33 = scmp.eq.s32.totalorder %s16, 1
    %p34 = por %p32, %p33
    %p35 = scmp.ne.s32.totalorder %s24, %s25
    %p36 = scmp.eq.s32.totalorder %s16, 0
    %p37 = por %p35, %p36
    %p38 = scmp.ne.s32.totalorder %s24, %s25
    %p39 = scmp.eq.s32.totalorder %s17, 1
    %p40 = por %p38, %p39
    %p42 = scmp.ne.s32.totalorder %s25, %s41
    %p43 = scmp.eq.s32.totalorder %s17, 0
    %p44 = por %p42, %p43
    %s46 = sadd.s32 %s45, 1
    %p49 = scmp.eq.s32.totalorder %s11, 1
    %p50 = scmp.ne.s32.totalorder %s45, %s47
    %p51 = scmp.eq.s32.totalorder %s11, 0
    %p52 = por %p50, %p51
    %p53 = scmp.ne.s32.totalorder %s45, %s47
    %p54 = scmp.eq.s32.totalorder %s16, 1
    %p55 = por %p53, %p54
    %p56 = scmp.ne.s32.totalorder %s47, %s48
    %p57 = scmp.eq.s32.totalorder %s16, 0
    %p58 = por %p56, %p57
    %p59 = scmp.ne.s32.totalorder %s47, %s48
    %p60 = scmp.eq.s32.totalorder %s17, 1
    %p61 = por %p59, %p60
    %p63 = scmp.ne.s32.totalorder %s48, %s62
    %p64 = scmp.eq.s32.totalorder %s17, 0
    %p65 = por %p63, %p64
    %s67 = sadd.s32 %s66, 1
    %p70 = scmp.eq.s32.totalorder %s11, 1
    %p71 = scmp.ne.s32.totalorder %s66, %s68
    %p72 = scmp.eq.s32.totalorder %s11, 0
    %p73 = por %p71, %p72
    %p74 = scmp.ne.s32.totalorder %s66, %s68
    %p75 = scmp.eq.s32.totalorder %s16, 1
    %p76 = por %p74, %p75
    %p77 = scmp.ne.s32.totalorder %s68, %s69
    %p78 = scmp.eq.s32.totalorder %s16, 0
    %p79 = por %p77, %p78
    %p80 = scmp.ne.s32.totalorder %s68, %s69
    %p81 = scmp.eq.s32.totalorder %s17, 1
    %p82 = por %p80, %p81
    %p84 = scmp.ne.s32.totalorder %s69, %s83
    %p85 = scmp.eq.s32.totalorder %s17, 0
    %p86 = por %p84, %p85
    %s88 = sadd.s32 %s87, 1
    %p91 = scmp.eq.s32.totalorder %s11, 1
    %p92 = scmp.ne.s32.totalorder %s87, %s89
    %p93 = scmp.eq.s32.totalorder %s11, 0
    %p94 = por %p92, %p93
    %p95 = scmp.ne.s32.totalorder %s87, %s89
    %p96 = scmp.eq.s32.totalorder %s16, 1
    %p97 = por %p95, %p96
    %p98 = scmp.ne.s32.totalorder %s89, %s90
    %p99 = scmp.eq.s32.totalorder %s16, 0
    %p100 = por %p98, %p99
    %p101 = scmp.ne.s32.totalorder %s89, %s90
    %p102 = scmp.eq.s32.totalorder %s17, 1
    %p103 = por %p101, %p102
    %p105 = scmp.ne.s32.totalorder %s90, %s104
    %p106 = scmp.eq.s32.totalorder %s17, 0
    %p107 = por %p105, %p106
    %s109 = sadd.s32 %s108, 1
    %p112 = scmp.eq.s32.totalorder %s11, 1
    %p113 = scmp.ne.s32.totalorder %s108, %s110
    %p114 = scmp.eq.s32.totalorder %s11, 0
    %p115 = por %p113, %p114
    %p116 = scmp.ne.s32.totalorder %s108, %s110
    %p117 = scmp.eq.s32.totalorder %s16, 1
    %p118 = por %p116, %p117
    %p119 = scmp.ne.s32.totalorder %s110, %s111
    %p120 = scmp.eq.s32.totalorder %s16, 0
    %p121 = por %p119, %p120
    %p122 = scmp.ne.s32.totalorder %s110, %s111
    %p123 = scmp.eq.s32.totalorder %s17, 1
    %p124 = por %p122, %p123
    %p126 = scmp.ne.s32.totalorder %s111, %s125
    %p127 = scmp.eq.s32.totalorder %s17, 0
    %p128 = por %p126, %p127
    %s129 = ssub.s32 %s11, %s18
    %p130 = scmp.eq.s32.totalorder %s129, 0
    %s132 = sadd.s32 %s131, 1
    %s133 = scalar_select %p130, %s131, %s132
    %p136 = pneg %p130
    %p137 = scmp.eq.s32.totalorder %s11, 1
    %p138 = por %p136, %p137
    %p139 = scmp.ne.s32.totalorder %s131, %s134
    %p140 = scmp.eq.s32.totalorder %s11, 0
    %p141 = por %p139, %p140
    %p142 = scmp.ne.s32.totalorder %s131, %s134
    %p143 = scmp.eq.s32.totalorder %s16, 1
    %p144 = por %p142, %p143
    %p145 = scmp.ne.s32.totalorder %s134, %s135
    %p146 = scmp.eq.s32.totalorder %s16, 0
    %p147 = por %p145, %p146
    %p148 = scmp.ne.s32.totalorder %s134, %s135
    %p149 = scmp.eq.s32.totalorder %s17, 1
    %p150 = por %p148, %p149
    %p152 = scmp.ne.s32.totalorder %s135, %s151
    %p153 = scmp.eq.s32.totalorder %s17, 0
    %p154 = por %p152, %p153
    %p155 = scmp.le.s32.totalorder 1, %s11
    %p156 = scmp.lt.s32.totalorder %s11, 3
    %p157 = pnand %p155, %p156
    %p158 = pneg %p157
    // Predicated region
    $region9: #{a_call__.3} parent=5 // pred_check
      _
    $region10: #{a_call__.3} parent=5 // pred_check_branch
      %160 = sbr.rel (%p157) target = $region12
    $region11: #{a_call__.3} parent=5 // pred_region
      %s161 = ssub.s32 %s11, 1
      // Predicated region
      $region13: #{a_call__.3} parent=11 // pred_check
        %p162 = pneg %p58
      $region14: #{a_call__.3} parent=11 // pred_check_branch
        %164 = sbr.rel (%p162) target = $region16
      $region15: #{a_call__.3} parent=11 // pred_region
        _
      $region16: #{a_call__.3} parent=11 // pred_fallthru
        _
      // Predicated region
      $region17: #{a_call__.3} parent=11 // pred_check
        %p165 = pneg %p79
      $region18: #{a_call__.3} parent=11 // pred_check_branch
        %167 = sbr.rel (%p165) target = $region20
      $region19: #{a_call__.3} parent=11 // pred_region
        _
      $region20: #{a_call__.3} parent=11 // pred_fallthru
        _
      // Predicated region
      $region21: #{a_call__.3} parent=11 // pred_check
        %p168 = pneg %p100
      $region22: #{a_call__.3} parent=11 // pred_check_branch
        %170 = sbr.rel (%p168) target = $region24
      $region23: #{a_call__.3} parent=11 // pred_region
        _
      $region24: #{a_call__.3} parent=11 // pred_fallthru
        _
      // Predicated region
      $region25: #{a_call__.3} parent=11 // pred_check
        %p171 = pneg %p121
      $region26: #{a_call__.3} parent=11 // pred_check_branch
        %173 = sbr.rel (%p171) target = $region28
      $region27: #{a_call__.3} parent=11 // pred_region
        _
      $region28: #{a_call__.3} parent=11 // pred_fallthru
        _
    $region12: #{a_call__.3} parent=5 // pred_fallthru
      _
    %p174 = scmp.lt.s32.totalorder %s11, 2
    // Predicated region
    $region29: #{a_call__.3} parent=5 // pred_check
      %p175 = pneg %p174
    $region30: #{a_call__.3} parent=5 // pred_check_branch
      %177 = sbr.rel (%p175) target = $region32
    $region31: #{a_call__.3} parent=5 // pred_region
      // Predicated region
      $region33: #{a_call__.3} parent=31 // pred_check
        %p178 = pneg %p31
      $region34: #{a_call__.3} parent=31 // pred_check_branch
        %180 = sbr.rel (%p178) target = $region36
      $region35: #{a_call__.3} parent=31 // pred_region
        %p181 = scmp.lt.s32.totalorder %s11, 1
        %s182 = scalar_select %p181, %s11, 1
        %s183 = smul.addr %s182, 4
        %s184 = smul.addr %s183, 4
        %s185 = scalar_lea.vmem %s0, %s184
      $region36: #{a_call__.3} parent=31 // pred_fallthru
        _
    $region32: #{a_call__.3} parent=5 // pred_fallthru
      _
    %p186 = scmp.le.s32.totalorder 1, %s11
    %p187 = scmp.lt.s32.totalorder %s11, 3
    %p188 = pnand %p186, %p187
    %p189 = pneg %p188
    // Predicated region
    $region37: #{a_call__.3} parent=5 // pred_check
      _
    $region38: #{a_call__.3} parent=5 // pred_check_branch
      %191 = sbr.rel (%p188) target = $region40
    $region39: #{a_call__.3} parent=5 // pred_region
      %s192 = ssub.s32 %s11, 1
      %p193 = scmp.lt.s32.totalorder %s16, 1
      %s194 = scalar_select %p193, %s16, 1
      %s195 = smul.addr %s194, 4
      %s196 = smul.addr %s195, 4
      %s197 = scalar_lea.vmem %s0, %s196
      %p198 = pneg %p37
      %p199 = pneg %p34
      %p200 = pneg %p58
      %p201 = pneg %p55
      %p202 = pneg %p79
      %p203 = pneg %p76
      %p204 = pneg %p100
      %p205 = pneg %p97
      %p206 = pneg %p121
      %p207 = pneg %p118
      %p208 = pneg %p147
      %p209 = pneg %p144
      %p210 = scmp.lt.s32.totalorder %s16, 1
      %s211 = scalar_select %p210, %s16, 1
      %s212 = smul.addr %s211, 3
      %s213 = smul.addr %s212, 8
      %s214 = scalar_lea.vmem %s5, %s213
      %p215 = scmp.lt.s32.totalorder %s16, 1
      %s216 = scalar_select %p215, %s16, 1
      %s217 = smul.addr %s216, 4
      %s218 = smul.addr %s217, 4
      %s219 = scalar_lea.vmem %s0, %s218
      %p220 = scmp.lt.s32.totalorder %s16, 1
      %s221 = scalar_select %p220, %s16, 1
      %s222 = smul.addr %s221, 3
      %s223 = smul.addr %s222, 8
      %s224 = scalar_lea.vmem %s5, %s223
      %vm226 = vcmask 519168
      %227 = vst.msk [vmem:[#allocation2] sm:$0xf] %vm226, 0
      %228 = vst.msk [vmem:[#allocation2 + $0xc] sm:$0xf] %vm226, 0
      %229 = vst.msk [vmem:[#allocation2 + $0x10] sm:$0xf] %vm226, 0
      %v230 = vld [vmem:[%s219] sm:$0xf]
      %v231 = vld [vmem:[%s219 + $0x4] sm:$0xf]
      %v232 = vld [vmem:[%s219 + $0x8] sm:$0xf]
      %v233 = vld [vmem:[%s219 + $0xc] sm:$0xf]
      %v234 = vld [vmem:[%s1] sm:$0xf]
      %v235 = vld [vmem:[%s1 + $0x4] sm:$0xf]
      %v236 = vld [vmem:[%s1 + $0x8] sm:$0xf]
      %v237 = vld [vmem:[%s1 + $0xc] sm:$0xf]
      %v238 = vld [vmem:[%s1 + $0x10] sm:$0xf]
      %v239 = vld [vmem:[%s1 + $0x14] sm:$0xf]
      %v240 = vld [vmem:[%s1 + $0x18] sm:$0xf]
      %v241 = vld [vmem:[%s1 + $0x1c] sm:$0xf]
      %v242 = vld [vmem:[%s1 + $0x20] sm:$0xf]
      %v243 = vld [vmem:[%s1 + $0x24] sm:$0xf]
      %v244 = vld [vmem:[%s1 + $0x28] sm:$0xf]
      %v245 = vld [vmem:[%s1 + $0x2c] sm:$0xf]
      %v246 = vld [vmem:[%s1 + $0x30] sm:$0xf]
      %v247 = vld [vmem:[%s1 + $0x34] sm:$0xf]
      %v248 = vld [vmem:[%s1 + $0x38] sm:$0xf]
      %v249 = vld [vmem:[%s1 + $0x3c] sm:$0xf]
      %s250 = scalar_lea.vmem %s1, 64
      %v251 = vld [vmem:[%s250] sm:$0xf]
      %v252 = vld [vmem:[%s250 + $0x4] sm:$0xf]
      %v253 = vld [vmem:[%s250 + $0x8] sm:$0xf]
      %v254 = vld [vmem:[%s250 + $0xc] sm:$0xf]
      %v255 = vld [vmem:[%s250 + $0x10] sm:$0xf]
      %v256 = vld [vmem:[%s250 + $0x14] sm:$0xf]
      %v257 = vld [vmem:[%s250 + $0x18] sm:$0xf]
      %v258 = vld [vmem:[%s250 + $0x1c] sm:$0xf]
      %v259 = vld [vmem:[%s250 + $0x20] sm:$0xf]
      %v260 = vld [vmem:[%s250 + $0x24] sm:$0xf]
      %v261 = vld [vmem:[%s250 + $0x28] sm:$0xf]
      %v262 = vld [vmem:[%s250 + $0x2c] sm:$0xf]
      %v263 = vld [vmem:[%s250 + $0x30] sm:$0xf]
      %v264 = vld [vmem:[%s250 + $0x34] sm:$0xf]
      %v265 = vld [vmem:[%s250 + $0x38] sm:$0xf]
      %v266 = vld [vmem:[%s250 + $0x3c] sm:$0xf]
      %v270 = vunpack.c.l.b16 %v230
      %v271 = vunpack.c.l.b16 %v231
      %v272 = vunpack.c.l.b16 %v232
      %v273 = vpack.c.b16 %v271, %v270
      %v274 = vpack.c.b16 %v272, %v272
      %vm275 = vsmask.f32 7424
      %v277 = vshrl.u32 %v273, 16
      %v279 = vshll.u32 %v273, 16
      %v281 = vrot.slane %v279, 1
      %v282 = vor.u32 %v277, %v281
      %v284 = vshll.u32 %v274, 16
      %v286 = vrot.slane %v284, 1
      %v287 = vsel %vm275, %v282, %v286
      %v288 = vshrl.u32 %v274, 16
      %v290 = vor.u32 %v288, %v286
      %v309 = vunpack.c.l.b16 %v251
      %v310 = vunpack.c.l.b16 %v252
      %v311 = vunpack.c.l.b16 %v253
      %v312 = vunpack.c.l.b16 %v254
      %v313 = vunpack.c.l.b16 %v255
      %v314 = vunpack.c.l.b16 %v256
      %v315 = vunpack.c.l.b16 %v257
      %v316 = vunpack.c.l.b16 %v258
      %v317 = vunpack.c.l.b16 %v259
      %v318 = vunpack.c.l.b16 %v260
      %v319 = vunpack.c.l.b16 %v261
      %v320 = vunpack.c.l.b16 %v262
      %v321 = vunpack.c.l.b16 %v263
      %v322 = vunpack.c.l.b16 %v264
      %v323 = vunpack.c.l.b16 %v265
      %v324 = vunpack.c.l.b16 %v266
      %v325 = vpack.c.b16 %v310, %v309
      %v326 = vpack.c.b16 %v312, %v311
      %v327 = vpack.c.b16 %v314, %v313
      %v328 = vpack.c.b16 %v316, %v315
      %v329 = vpack.c.b16 %v318, %v317
      %v330 = vpack.c.b16 %v320, %v319
      %v331 = vpack.c.b16 %v322, %v321
      %v332 = vpack.c.b16 %v324, %v323
      %341 = vmatpush.bf16.msra.mxu0 %v332
      %342 = vmatpush.bf16.msra.mxu0 %v331
      %343 = vmatpush.bf16.msra.mxu0 %v330
      %344 = vmatpush.bf16.msra.mxu0 %v329
      %345 = vmatpush.bf16.msra.mxu0 %v328
      %346 = vmatpush.bf16.msra.mxu0 %v327
      %347 = vmatpush.bf16.msra.mxu0 %v326
      %348 = vmatpush.bf16.msra.mxu0 %v325
      %349 = vmatmul.bf16.gmra.mxu0 %v287
      %v350 = vpop.f32.mrf.mxu0
      %v351 = vadd.f32 0.0, %v350
      %v352 = vpop.f32.mrf.mxu0
      %v353 = vadd.f32 0.0, %v352
      %354 = vmatmul.bf16.gmra.mxu0 %v290
      %v355 = vpop.f32.mrf.mxu0
      %v356 = vadd.f32 0.0, %v355
      %v357 = vpop.f32.mrf.mxu0
      %358 = vdwg.mxu0
      %v377 = vunpack.c.l.b16 %v234
      %v378 = vunpack.c.l.b16 %v235
      %v379 = vunpack.c.l.b16 %v236
      %v380 = vunpack.c.l.b16 %v237
      %v381 = vunpack.c.l.b16 %v238
      %v382 = vunpack.c.l.b16 %v239
      %v383 = vunpack.c.l.b16 %v240
      %v384 = vunpack.c.l.b16 %v241
      %v385 = vunpack.c.l.b16 %v242
      %v386 = vunpack.c.l.b16 %v243
      %v387 = vunpack.c.l.b16 %v244
      %v388 = vunpack.c.l.b16 %v245
      %v389 = vunpack.c.l.b16 %v246
      %v390 = vunpack.c.l.b16 %v247
      %v391 = vunpack.c.l.b16 %v248
      %v392 = vunpack.c.l.b16 %v249
      %v393 = vpack.c.b16 %v378, %v377
      %v394 = vpack.c.b16 %v380, %v379
      %v395 = vpack.c.b16 %v382, %v381
      %v396 = vpack.c.b16 %v384, %v383
      %v397 = vpack.c.b16 %v386, %v385
      %v398 = vpack.c.b16 %v388, %v387
      %v399 = vpack.c.b16 %v390, %v389
      %v400 = vpack.c.b16 %v392, %v391
      %409 = vmatpush.bf16.msra.mxu0 %v400
      %410 = vmatpush.bf16.msra.mxu0 %v399
      %411 = vmatpush.bf16.msra.mxu0 %v398
      %412 = vmatpush.bf16.msra.mxu0 %v397
      %413 = vmatpush.bf16.msra.mxu0 %v396
      %414 = vmatpush.bf16.msra.mxu0 %v395
      %415 = vmatpush.bf16.msra.mxu0 %v394
      %416 = vmatpush.bf16.msra.mxu0 %v393
      %417 = vmatmul.bf16.gmra.mxu0 %v273
      %v418 = vpop.f32.mrf.mxu0
      %v419 = vadd.f32 %v351, %v418
      %v420 = vpop.f32.mrf.mxu0
      %v421 = vadd.f32 %v353, %v420
      %422 = vmatmul.bf16.gmra.mxu0 %v274
      %v423 = vpop.f32.mrf.mxu0
      %v424 = vadd.f32 %v356, %v423
      %v425 = vpop.f32.mrf.mxu0
      %426 = vdwg.mxu0
      %s427 = scalar_lea.vmem %s1, 128
      %v428 = vld [vmem:[%s427] sm:$0xf]
      %v429 = vld [vmem:[%s427 + $0x4] sm:$0xf]
      %v430 = vld [vmem:[%s427 + $0x8] sm:$0xf]
      %v431 = vld [vmem:[%s427 + $0xc] sm:$0xf]
      %v432 = vld [vmem:[%s427 + $0x10] sm:$0xf]
      %v433 = vld [vmem:[%s427 + $0x14] sm:$0xf]
      %v434 = vld [vmem:[%s427 + $0x18] sm:$0xf]
      %v435 = vld [vmem:[%s427 + $0x1c] sm:$0xf]
      %v436 = vld [vmem:[%s427 + $0x20] sm:$0xf]
      %v437 = vld [vmem:[%s427 + $0x24] sm:$0xf]
      %v438 = vld [vmem:[%s427 + $0x28] sm:$0xf]
      %v439 = vld [vmem:[%s427 + $0x2c] sm:$0xf]
      %v440 = vld [vmem:[%s427 + $0x30] sm:$0xf]
      %v441 = vld [vmem:[%s427 + $0x34] sm:$0xf]
      %v442 = vld [vmem:[%s427 + $0x38] sm:$0xf]
      %v443 = vld [vmem:[%s427 + $0x3c] sm:$0xf]
      %v445 = vunpack.c.l.b16 %v233
      %v446 = vpack.c.b16 %v445, %v272
      %vm447 = vsmask.f32 5376
      %v448 = vrot.slane %v277, 2
      %v449 = vrot.slane %v279, 3
      %v450 = vor.u32 %v448, %v449
      %v452 = vshrl.u32 %v446, 16
      %v454 = vrot.slane %v452, 2
      %v455 = vshll.u32 %v446, 16
      %v457 = vrot.slane %v455, 3
      %v458 = vor.u32 %v454, %v457
      %v459 = vsel %vm447, %v450, %v458
      %v478 = vunpack.c.l.b16 %v428
      %v479 = vunpack.c.l.b16 %v429
      %v480 = vunpack.c.l.b16 %v430
      %v481 = vunpack.c.l.b16 %v431
      %v482 = vunpack.c.l.b16 %v432
      %v483 = vunpack.c.l.b16 %v433
      %v484 = vunpack.c.l.b16 %v434
      %v485 = vunpack.c.l.b16 %v435
      %v486 = vunpack.c.l.b16 %v436
      %v487 = vunpack.c.l.b16 %v437
      %v488 = vunpack.c.l.b16 %v438
      %v489 = vunpack.c.l.b16 %v439
      %v490 = vunpack.c.l.b16 %v440
      %v491 = vunpack.c.l.b16 %v441
      %v492 = vunpack.c.l.b16 %v442
      %v493 = vunpack.c.l.b16 %v443
      %v494 = vpack.c.b16 %v479, %v478
      %v495 = vpack.c.b16 %v481, %v480
      %v496 = vpack.c.b16 %v483, %v482
      %v497 = vpack.c.b16 %v485, %v484
      %v498 = vpack.c.b16 %v487, %v486
      %v499 = vpack.c.b16 %v489, %v488
      %v500 = vpack.c.b16 %v491, %v490
      %v501 = vpack.c.b16 %v493, %v492
      %510 = vmatpush.bf16.msra.mxu0 %v501
      %511 = vmatpush.bf16.msra.mxu0 %v500
      %512 = vmatpush.bf16.msra.mxu0 %v499
      %513 = vmatpush.bf16.msra.mxu0 %v498
      %514 = vmatpush.bf16.msra.mxu0 %v497
      %515 = vmatpush.bf16.msra.mxu0 %v496
      %516 = vmatpush.bf16.msra.mxu0 %v495
      %517 = vmatpush.bf16.msra.mxu0 %v494
      %518 = vmatmul.bf16.gmra.mxu0 %v459
      %v519 = vpop.f32.mrf.mxu0
      %v520 = vadd.f32 0.0, %v519
      %v521 = vpop.f32.mrf.mxu0
      %v522 = vadd.f32 0.0, %v521
      %523 = vmatmul.bf16.gmra.mxu0 %v458
      %v524 = vpop.f32.mrf.mxu0
      %v525 = vadd.f32 0.0, %v524
      %v526 = vpop.f32.mrf.mxu0
      %527 = vdwg.mxu0
      %v528 = vadd.f32 %v419, %v520
      %v529 = vadd.f32 %v421, %v522
      %v530 = vadd.f32 %v424, %v525
      %s531 = scalar_lea.vmem %s1, 192
      %v532 = vld [vmem:[%s531] sm:$0xf]
      %v533 = vld [vmem:[%s531 + $0x4] sm:$0xf]
      %v534 = vld [vmem:[%s531 + $0x8] sm:$0xf]
      %v535 = vld [vmem:[%s531 + $0xc] sm:$0xf]
      %v536 = vld [vmem:[%s531 + $0x10] sm:$0xf]
      %v537 = vld [vmem:[%s531 + $0x14] sm:$0xf]
      %v538 = vld [vmem:[%s531 + $0x18] sm:$0xf]
      %v539 = vld [vmem:[%s531 + $0x1c] sm:$0xf]
      %v540 = vld [vmem:[%s531 + $0x20] sm:$0xf]
      %v541 = vld [vmem:[%s531 + $0x24] sm:$0xf]
      %v542 = vld [vmem:[%s531 + $0x28] sm:$0xf]
      %v543 = vld [vmem:[%s531 + $0x2c] sm:$0xf]
      %v544 = vld [vmem:[%s531 + $0x30] sm:$0xf]
      %v545 = vld [vmem:[%s531 + $0x34] sm:$0xf]
      %v546 = vld [vmem:[%s531 + $0x38] sm:$0xf]
      %v547 = vld [vmem:[%s531 + $0x3c] sm:$0xf]
      %vm548 = vcmask 1044480
      %v549 = vrot.slane %v273, 3
      %v550 = vrot.slane %v446, 3
      %v551 = vsel %vm548, %v549, %v550
      %v570 = vunpack.c.l.b16 %v532
      %v571 = vunpack.c.l.b16 %v533
      %v572 = vunpack.c.l.b16 %v534
      %v573 = vunpack.c.l.b16 %v535
      %v574 = vunpack.c.l.b16 %v536
      %v575 = vunpack.c.l.b16 %v537
      %v576 = vunpack.c.l.b16 %v538
      %v577 = vunpack.c.l.b16 %v539
      %v578 = vunpack.c.l.b16 %v540
      %v579 = vunpack.c.l.b16 %v541
      %v580 = vunpack.c.l.b16 %v542
      %v581 = vunpack.c.l.b16 %v543
      %v582 = vunpack.c.l.b16 %v544
      %v583 = vunpack.c.l.b16 %v545
      %v584 = vunpack.c.l.b16 %v546
      %v585 = vunpack.c.l.b16 %v547
      %v586 = vpack.c.b16 %v571, %v570
      %v587 = vpack.c.b16 %v573, %v572
      %v588 = vpack.c.b16 %v575, %v574
      %v589 = vpack.c.b16 %v577, %v576
      %v590 = vpack.c.b16 %v579, %v578
      %v591 = vpack.c.b16 %v581, %v580
      %v592 = vpack.c.b16 %v583, %v582
      %v593 = vpack.c.b16 %v585, %v584
      %602 = vmatpush.bf16.msra.mxu0 %v593
      %603 = vmatpush.bf16.msra.mxu0 %v592
      %604 = vmatpush.bf16.msra.mxu0 %v591
      %605 = vmatpush.bf16.msra.mxu0 %v590
      %606 = vmatpush.bf16.msra.mxu0 %v589
      %607 = vmatpush.bf16.msra.mxu0 %v588
      %608 = vmatpush.bf16.msra.mxu0 %v587
      %609 = vmatpush.bf16.msra.mxu0 %v586
      %610 = vmatmul.bf16.gmra.mxu0 %v551
      %v611 = vpop.f32.mrf.mxu0
      %v612 = vadd.f32 0.0, %v611
      %v613 = vpop.f32.mrf.mxu0
      %v614 = vadd.f32 0.0, %v613
      %615 = vmatmul.bf16.gmra.mxu0 %v550
      %v616 = vpop.f32.mrf.mxu0
      %v617 = vadd.f32 0.0, %v616
      %v618 = vpop.f32.mrf.mxu0
      %619 = vdwg.mxu0
      %v620 = vadd.f32 %v528, %v612
      %v621 = vadd.f32 %v529, %v614
      %v622 = vadd.f32 %v530, %v617
      %v623 = vld [vmem:[%s2] sm:$0x1]
      %v625 = vperm.slane %v623, 0
      %v627 = vadd.f32 %v620, %v625
      %v628 = vadd.f32 %v621, %v625
      %v629 = vadd.f32 %v622, %v625
      %vm630 = vcmp.ge.f32.partialorder %v627, 0.0
      %vm631 = vcmp.ge.f32.partialorder %v628, 0.0
      %vm632 = vcmp.ge.f32.partialorder %v629, 0.0
      %v633 = vmul.f32 %v627, 0.1
      %v634 = vmul.f32 %v628, 0.1
      %v635 = vmul.f32 %v629, 0.1
      %v636 = vsel %vm630, %v627, %v633
      %v637 = vsel %vm631, %v628, %v634
      %v638 = vsel %vm632, %v629, %v635
      %v639 = vlaneseq
      %v640 = vshrl.u32 %v639, 7
      %v641 = vadd.s32 %v640, 8
      %v642 = vadd.s32 %v640, 16
      %vm643 = vcmp.lt.s32.totalorder %v640, 0
      %v644 = vsub.s32 0, %v640
      %v645 = vsel %vm643, %v644, %v640
      %v646 = vshrl.u32 %v645, 5
      %v647 = vand.u32 %v645, 31
      %v648 = vsub.s32 0, %v647
      %v649 = vsel %vm643, %v648, %v647
      %vm650 = vcmp.lt.s32.totalorder %v641, 0
      %v651 = vsub.s32 0, %v641
      %v652 = vsel %vm650, %v651, %v641
      %v653 = vshrl.u32 %v652, 5
      %v654 = vand.u32 %v652, 31
      %v655 = vsub.s32 0, %v654
      %v656 = vsel %vm650, %v655, %v654
      %vm657 = vcmp.lt.s32.totalorder %v642, 0
      %v658 = vsub.s32 0, %v642
      %v659 = vsel %vm657, %v658, %v642
      %v660 = vshrl.u32 %v659, 5
      %v661 = vand.u32 %v659, 31
      %v662 = vsub.s32 0, %v661
      %v663 = vsel %vm657, %v662, %v661
      %vm664 = vcmp.ne.s32.totalorder %v649, 0
      %vm665 = vcmp.ne.s32.totalorder %v656, 0
      %vm666 = vcmp.ne.s32.totalorder %v663, 0
      %vm667 = vcmp.lt.s32.totalorder %v649, 0
      %vm668 = vcmp.lt.s32.totalorder %v656, 0
      %vm669 = vcmp.lt.s32.totalorder %v663, 0
      %vm670 = vmand %vm667, %vm664
      %vm671 = vmand %vm668, %vm665
      %vm672 = vmand %vm669, %vm666
      %v673 = vadd.s32 %v649, 32
      %v674 = vadd.s32 %v656, 32
      %v675 = vadd.s32 %v663, 32
      %v676 = vsel %vm670, %v673, %v649
      %v677 = vsel %vm671, %v674, %v656
      %v678 = vsel %vm672, %v675, %v663
      %vm679 = vcmp.lt.s32.totalorder %v676, 20
      %vm680 = vcmp.lt.s32.totalorder %v677, 20
      %vm681 = vcmp.lt.s32.totalorder %v678, 20
      %vm682 = vcmp.lt.s32.totalorder %v676, 0
      %v683 = vsub.s32 0, %v676
      %v684 = vsel %vm682, %v683, %v676
      %v685 = vand.u32 %v684, 65535
      %v686 = vshrl.u32 %v684, 16
      %v688 = vmul.u32 %v685, 52429
      %v689 = vmul.u32 %v685, 52428
      %v690 = vmul.u32 %v686, 52429
      %v691 = vmul.u32 %v686, 52428
      %v692 = vshll.u32 %v689, 16
      %v693 = vshrl.u32 %v689, 16
      %v694 = vshll.u32 %v690, 16
      %v695 = vshrl.u32 %v690, 16
      %vm696 = vc.u32 %v688, %v692
      %v697 = vsel %vm696, 1, 0
      %v698 = vadd.s32 %v688, %v692
      %v699 = vadd.s32 %v691, %v697
      %vm700 = vc.u32 %v698, %v694
      %v701 = vsel %vm700, 1, 0
      %v702 = vadd.s32 %v698, %v694
      %v703 = vadd.s32 %v699, %v701
      %v704 = vadd.s32 %v703, %v693
      %v705 = vadd.s32 %v704, %v695
      %v706 = vshrl.u32 %v705, 2
      %v707 = vmul.u32 %v706, 5
      %v708 = vsub.s32 %v684, %v707
      %v709 = vsub.s32 0, %v708
      %v710 = vsel %vm682, %v709, %v708
      %vm711 = vcmp.lt.s32.totalorder %v677, 0
      %v712 = vsub.s32 0, %v677
      %v713 = vsel %vm711, %v712, %v677
      %v714 = vand.u32 %v713, 65535
      %v715 = vshrl.u32 %v713, 16
      %v717 = vmul.u32 %v714, 52429
      %v718 = vmul.u32 %v714, 52428
      %v719 = vmul.u32 %v715, 52429
      %v720 = vmul.u32 %v715, 52428
      %v721 = vshll.u32 %v718, 16
      %v722 = vshrl.u32 %v718, 16
      %v723 = vshll.u32 %v719, 16
      %v724 = vshrl.u32 %v719, 16
      %vm725 = vc.u32 %v717, %v721
      %v726 = vsel %vm725, 1, 0
      %v727 = vadd.s32 %v717, %v721
      %v728 = vadd.s32 %v720, %v726
      %vm729 = vc.u32 %v727, %v723
      %v730 = vsel %vm729, 1, 0
      %v731 = vadd.s32 %v727, %v723
      %v732 = vadd.s32 %v728, %v730
      %v733 = vadd.s32 %v732, %v722
      %v734 = vadd.s32 %v733, %v724
      %v735 = vshrl.u32 %v734, 2
      %v736 = vmul.u32 %v735, 5
      %v737 = vsub.s32 %v713, %v736
      %v738 = vsub.s32 0, %v737
      %v739 = vsel %vm711, %v738, %v737
      %vm740 = vcmp.lt.s32.totalorder %v678, 0
      %v741 = vsub.s32 0, %v678
      %v742 = vsel %vm740, %v741, %v678
      %v743 = vand.u32 %v742, 65535
      %v744 = vshrl.u32 %v742, 16
      %v746 = vmul.u32 %v743, 52429
      %v747 = vmul.u32 %v743, 52428
      %v748 = vmul.u32 %v744, 52429
      %v749 = vmul.u32 %v744, 52428
      %v750 = vshll.u32 %v747, 16
      %v751 = vshrl.u32 %v747, 16
      %v752 = vshll.u32 %v748, 16
      %v753 = vshrl.u32 %v748, 16
      %vm754 = vc.u32 %v746, %v750
      %v755 = vsel %vm754, 1, 0
      %v756 = vadd.s32 %v746, %v750
      %v757 = vadd.s32 %v749, %v755
      %vm758 = vc.u32 %v756, %v752
      %v759 = vsel %vm758, 1, 0
      %v760 = vadd.s32 %v756, %v752
      %v761 = vadd.s32 %v757, %v759
      %v762 = vadd.s32 %v761, %v751
      %v763 = vadd.s32 %v762, %v753
      %v764 = vshrl.u32 %v763, 2
      %v765 = vmul.u32 %v764, 5
      %v766 = vsub.s32 %v742, %v765
      %v767 = vsub.s32 0, %v766
      %v768 = vsel %vm740, %v767, %v766
      %vm769 = vcmp.ne.s32.totalorder %v710, 0
      %vm770 = vcmp.ne.s32.totalorder %v739, 0
      %vm771 = vcmp.ne.s32.totalorder %v768, 0
      %vm772 = vcmp.lt.s32.totalorder %v710, 0
      %vm773 = vcmp.lt.s32.totalorder %v739, 0
      %vm774 = vcmp.lt.s32.totalorder %v768, 0
      %vm775 = vmand %vm772, %vm769
      %vm776 = vmand %vm773, %vm770
      %vm777 = vmand %vm774, %vm771
      %v778 = vadd.s32 %v710, 5
      %v779 = vadd.s32 %v739, 5
      %v780 = vadd.s32 %v768, 5
      %v781 = vsel %vm775, %v778, %v710
      %v782 = vsel %vm776, %v779, %v739
      %v783 = vsel %vm777, %v780, %v768
      %vm784 = vcmp.ne.s32.totalorder %v781, 4
      %vm785 = vcmp.ne.s32.totalorder %v782, 4
      %vm786 = vcmp.ne.s32.totalorder %v783, 4
      %vm787 = vmand %vm679, %vm784
      %vm788 = vmand %vm680, %vm785
      %vm789 = vmand %vm681, %vm786
      %v790 = vsel %vm787, 1, 0
      %v791 = vsel %vm788, 1, 0
      %v792 = vsel %vm789, 1, 0
      %vm793 = vcmp.eq.s32.totalorder %v790, 1
      %vm794 = vcmp.eq.s32.totalorder %v791, 1
      %vm795 = vcmp.eq.s32.totalorder %v792, 1
      %v796 = vsel %vm793, %v636, 0.0
      %v797 = vsel %vm794, %v637, 0.0
      %v798 = vsel %vm795, %v638, 0.0
      %v799 = vpack.c.bf16 %v796, %v796
      %v800 = vpack.c.bf16 %v797, %v797
      %v801 = vpack.c.bf16 %v798, %v798
      %802 = vst.msk [vmem:[#allocation2 + $0x4] sm:$0xf] %vm226, %v799
      %803 = vst.msk [vmem:[#allocation2 + $0x8] sm:$0xf] %vm226, %v800
      %vm804 = vcmask 517120
      %805 = vst.msk [vmem:[#allocation2 + $0xc] sm:$0x3] %vm804, %v801
      %v806 = vld [vmem:[#allocation2] sm:$0xe]
      %v807 = vld [vmem:[#allocation2 + $0x4] sm:$0xf]
      %v808 = vld [vmem:[#allocation2 + $0x8] sm:$0x7]
      %v809 = vld [vmem:[%s3] sm:$0xf]
      %v810 = vld [vmem:[%s3 + $0x4] sm:$0xf]
      %v811 = vld [vmem:[%s3 + $0x8] sm:$0xf]
      %v812 = vld [vmem:[%s3 + $0xc] sm:$0xf]
      %v813 = vld [vmem:[%s3 + $0x10] sm:$0xf]
      %v814 = vld [vmem:[%s3 + $0x14] sm:$0xf]
      %v815 = vld [vmem:[%s3 + $0x18] sm:$0xf]
      %v816 = vld [vmem:[%s3 + $0x1c] sm:$0xf]
      %v817 = vld [vmem:[#allocation2 + $0x8] sm:$0xf]
      %s818 = scalar_lea.vmem %s3, 32
      %v819 = vld [vmem:[%s818] sm:$0xf]
      %v820 = vld [vmem:[%s818 + $0x4] sm:$0xf]
      %v821 = vld [vmem:[%s818 + $0x8] sm:$0xf]
      %v822 = vld [vmem:[%s818 + $0xc] sm:$0xf]
      %v823 = vld [vmem:[%s818 + $0x10] sm:$0xf]
      %v824 = vld [vmem:[%s818 + $0x14] sm:$0xf]
      %v825 = vld [vmem:[%s818 + $0x18] sm:$0xf]
      %v826 = vld [vmem:[%s818 + $0x1c] sm:$0xf]
      %v830 = vunpack.c.l.b16 %v806
      %v831 = vunpack.c.l.b16 %v807
      %v832 = vunpack.c.l.b16 %v817
      %v833 = vpack.c.b16 %v831, %v830
      %v834 = vpack.c.b16 %v832, %v832
      %vm835 = vsmask.f32 6400
      %v837 = vshrl.u32 %v833, 16
      %v839 = vrot.slane %v837, 1
      %v840 = vshll.u32 %v833, 16
      %v842 = vrot.slane %v840, 2
      %v843 = vor.u32 %v839, %v842
      %v845 = vshrl.u32 %v834, 16
      %v847 = vrot.slane %v845, 1
      %v848 = vshll.u32 %v834, 16
      %v850 = vrot.slane %v848, 2
      %v851 = vor.u32 %v847, %v850
      %v852 = vsel %vm835, %v843, %v851
      %v861 = vunpack.c.l.b16 %v819
      %v862 = vunpack.c.l.b16 %v820
      %v863 = vunpack.c.l.b16 %v821
      %v864 = vunpack.c.l.b16 %v822
      %v865 = vunpack.c.l.b16 %v823
      %v866 = vunpack.c.l.b16 %v824
      %v867 = vunpack.c.l.b16 %v825
      %v868 = vunpack.c.l.b16 %v826
      %v869 = vpack.c.b16 %v862, %v861
      %v870 = vpack.c.b16 %v864, %v863
      %v871 = vpack.c.b16 %v866, %v865
      %v872 = vpack.c.b16 %v868, %v867
      %vm877 = vcmask 523264
      %v879 = vsel %vm877, %v852, 0
      %v882 = vsel %vm877, %v851, 0
      %884 = vmatpush.bf16.msra.mxu0 0
      %885 = vmatpush.bf16.msra.mxu0 0
      %886 = vmatpush.bf16.msra.mxu0 0
      %887 = vmatpush.bf16.msra.mxu0 0
      %888 = vmatpush.bf16.msra.mxu0 %v872
      %889 = vmatpush.bf16.msra.mxu0 %v871
      %890 = vmatpush.bf16.msra.mxu0 %v870
      %891 = vmatpush.bf16.msra.mxu0 %v869
      %892 = vmatmul.bf16.gmra.mxu0 %v879
      %v893 = vpop.f32.mrf.mxu0
      %v894 = vadd.f32 0.0, %v893
      %v895 = vpop.f32.mrf.mxu0
      %v896 = vadd.f32 0.0, %v895
      %897 = vmatmul.bf16.gmra.mxu0 %v882
      %v898 = vpop.f32.mrf.mxu0
      %v899 = vadd.f32 0.0, %v898
      %v900 = vpop.f32.mrf.mxu0
      %901 = vdwg.mxu0
      %v903 = vunpack.c.l.b16 %v808
      %v904 = vpack.c.b16 %v903, %v903
      %vm905 = vcmask 1046528
      %v906 = vrot.slane %v833, 1
      %v907 = vrot.slane %v904, 1
      %v908 = vsel %vm905, %v906, %v907
      %v917 = vunpack.c.l.b16 %v809
      %v918 = vunpack.c.l.b16 %v810
      %v919 = vunpack.c.l.b16 %v811
      %v920 = vunpack.c.l.b16 %v812
      %v921 = vunpack.c.l.b16 %v813
      %v922 = vunpack.c.l.b16 %v814
      %v923 = vunpack.c.l.b16 %v815
      %v924 = vunpack.c.l.b16 %v816
      %v925 = vpack.c.b16 %v918, %v917
      %v926 = vpack.c.b16 %v920, %v919
      %v927 = vpack.c.b16 %v922, %v921
      %v928 = vpack.c.b16 %v924, %v923
      %v934 = vsel %vm877, %v908, 0
      %v937 = vsel %vm877, %v907, 0
      %939 = vmatpush.bf16.msra.mxu0 0
      %940 = vmatpush.bf16.msra.mxu0 0
      %941 = vmatpush.bf16.msra.mxu0 0
      %942 = vmatpush.bf16.msra.mxu0 0
      %943 = vmatpush.bf16.msra.mxu0 %v928
      %944 = vmatpush.bf16.msra.mxu0 %v927
      %945 = vmatpush.bf16.msra.mxu0 %v926
      %946 = vmatpush.bf16.msra.mxu0 %v925
      %947 = vmatmul.bf16.gmra.mxu0 %v934
      %v948 = vpop.f32.mrf.mxu0
      %v949 = vadd.f32 %v894, %v948
      %v950 = vpop.f32.mrf.mxu0
      %v951 = vadd.f32 %v896, %v950
      %952 = vmatmul.bf16.gmra.mxu0 %v937
      %v953 = vpop.f32.mrf.mxu0
      %v954 = vadd.f32 %v899, %v953
      %v955 = vpop.f32.mrf.mxu0
      %956 = vdwg.mxu0
      %v957 = vld [vmem:[#allocation2] sm:$0xc]
      %s958 = scalar_lea.vmem %s3, 64
      %v959 = vld [vmem:[%s958] sm:$0xf]
      %v960 = vld [vmem:[%s958 + $0x4] sm:$0xf]
      %v961 = vld [vmem:[%s958 + $0x8] sm:$0xf]
      %v962 = vld [vmem:[%s958 + $0xc] sm:$0xf]
      %v963 = vld [vmem:[%s958 + $0x10] sm:$0xf]
      %v964 = vld [vmem:[%s958 + $0x14] sm:$0xf]
      %v965 = vld [vmem:[%s958 + $0x18] sm:$0xf]
      %v966 = vld [vmem:[%s958 + $0x1c] sm:$0xf]
      %v968 = vunpack.c.l.b16 %v957
      %v969 = vpack.c.b16 %v831, %v968
      %vm970 = vcmask 1045504
      %v971 = vrot.slane %v969, 2
      %v972 = vrot.slane %v834, 2
      %v973 = vsel %vm970, %v971, %v972
      %v982 = vunpack.c.l.b16 %v959
      %v983 = vunpack.c.l.b16 %v960
      %v984 = vunpack.c.l.b16 %v961
      %v985 = vunpack.c.l.b16 %v962
      %v986 = vunpack.c.l.b16 %v963
      %v987 = vunpack.c.l.b16 %v964
      %v988 = vunpack.c.l.b16 %v965
      %v989 = vunpack.c.l.b16 %v966
      %v990 = vpack.c.b16 %v983, %v982
      %v991 = vpack.c.b16 %v985, %v984
      %v992 = vpack.c.b16 %v987, %v986
      %v993 = vpack.c.b16 %v989, %v988
      %v999 = vsel %vm877, %v973, 0
      %v1002 = vsel %vm877, %v972, 0
      %1004 = vmatpush.bf16.msra.mxu0 0
      %1005 = vmatpush.bf16.msra.mxu0 0
      %1006 = vmatpush.bf16.msra.mxu0 0
      %1007 = vmatpush.bf16.msra.mxu0 0
      %1008 = vmatpush.bf16.msra.mxu0 %v993
      %1009 = vmatpush.bf16.msra.mxu0 %v992
      %1010 = vmatpush.bf16.msra.mxu0 %v991
      %1011 = vmatpush.bf16.msra.mxu0 %v990
      %1012 = vmatmul.bf16.gmra.mxu0 %v999
      %v1013 = vpop.f32.mrf.mxu0
      %v1014 = vadd.f32 0.0, %v1013
      %v1015 = vpop.f32.mrf.mxu0
      %v1016 = vadd.f32 0.0, %v1015
      %1017 = vmatmul.bf16.gmra.mxu0 %v1002
      %v1018 = vpop.f32.mrf.mxu0
      %v1019 = vadd.f32 0.0, %v1018
      %v1020 = vpop.f32.mrf.mxu0
      %1021 = vdwg.mxu0
      %v1022 = vadd.f32 %v949, %v1014
      %v1023 = vadd.f32 %v951, %v1016
      %v1024 = vadd.f32 %v954, %v1019
      %v1025 = vld [vmem:[#allocation2] sm:$0x8]
      %v1026 = vld [vmem:[#allocation2 + $0x4] sm:$0xf]
      %v1027 = vld [vmem:[#allocation2 + $0x8] sm:$0xf]
      %v1028 = vld [vmem:[#allocation2 + $0xc] sm:$0x3]
      %s1029 = scalar_lea.vmem %s3, 96
      %v1030 = vld [vmem:[%s1029] sm:$0xf]
      %v1031 = vld [vmem:[%s1029 + $0x4] sm:$0xf]
      %v1032 = vld [vmem:[%s1029 + $0x8] sm:$0xf]
      %v1033 = vld [vmem:[%s1029 + $0xc] sm:$0xf]
      %v1034 = vld [vmem:[%s1029 + $0x10] sm:$0xf]
      %v1035 = vld [vmem:[%s1029 + $0x14] sm:$0xf]
      %v1036 = vld [vmem:[%s1029 + $0x18] sm:$0xf]
      %v1037 = vld [vmem:[%s1029 + $0x1c] sm:$0xf]
      %v1042 = vunpack.c.l.b16 %v1025
      %v1043 = vunpack.c.l.b16 %v1026
      %v1044 = vunpack.c.l.b16 %v1027
      %v1045 = vunpack.c.l.b16 %v1028
      %v1046 = vpack.c.b16 %v1043, %v1042
      %v1047 = vpack.c.b16 %v1045, %v1044
      %vm1048 = vsmask.f32 4352
      %v1050 = vshrl.u32 %v1046, 16
      %v1052 = vrot.slane %v1050, 3
      %v1053 = vshll.u32 %v1046, 16
      %v1055 = vrot.slane %v1053, 4
      %v1056 = vor.u32 %v1052, %v1055
      %v1058 = vshrl.u32 %v1047, 16
      %v1060 = vrot.slane %v1058, 3
      %v1061 = vshll.u32 %v1047, 16
      %v1063 = vrot.slane %v1061, 4
      %v1064 = vor.u32 %v1060, %v1063
      %v1065 = vsel %vm1048, %v1056, %v1064
      %v1074 = vunpack.c.l.b16 %v1030
      %v1075 = vunpack.c.l.b16 %v1031
      %v1076 = vunpack.c.l.b16 %v1032
      %v1077 = vunpack.c.l.b16 %v1033
      %v1078 = vunpack.c.l.b16 %v1034
      %v1079 = vunpack.c.l.b16 %v1035
      %v1080 = vunpack.c.l.b16 %v1036
      %v1081 = vunpack.c.l.b16 %v1037
      %v1082 = vpack.c.b16 %v1075, %v1074
      %v1083 = vpack.c.b16 %v1077, %v1076
      %v1084 = vpack.c.b16 %v1079, %v1078
      %v1085 = vpack.c.b16 %v1081, %v1080
      %v1091 = vsel %vm877, %v1065, 0
      %v1094 = vsel %vm877, %v1064, 0
      %1096 = vmatpush.bf16.msra.mxu0 0
      %1097 = vmatpush.bf16.msra.mxu0 0
      %1098 = vmatpush.bf16.msra.mxu0 0
      %1099 = vmatpush.bf16.msra.mxu0 0
      %1100 = vmatpush.bf16.msra.mxu0 %v1085
      %1101 = vmatpush.bf16.msra.mxu0 %v1084
      %1102 = vmatpush.bf16.msra.mxu0 %v1083
      %1103 = vmatpush.bf16.msra.mxu0 %v1082
      %1104 = vmatmul.bf16.gmra.mxu0 %v1091
      %v1105 = vpop.f32.mrf.mxu0
      %v1106 = vadd.f32 0.0, %v1105
      %v1107 = vpop.f32.mrf.mxu0
      %v1108 = vadd.f32 0.0, %v1107
      %1109 = vmatmul.bf16.gmra.mxu0 %v1094
      %v1110 = vpop.f32.mrf.mxu0
      %v1111 = vadd.f32 0.0, %v1110
      %v1112 = vpop.f32.mrf.mxu0
      %1113 = vdwg.mxu0
      %v1114 = vadd.f32 %v1022, %v1106
      %v1115 = vadd.f32 %v1023, %v1108
      %v1116 = vadd.f32 %v1024, %v1111
      %s1117 = scalar_lea.vmem %s3, 128
      %v1118 = vld [vmem:[%s1117] sm:$0xf]
      %v1119 = vld [vmem:[%s1117 + $0x4] sm:$0xf]
      %v1120 = vld [vmem:[%s1117 + $0x8] sm:$0xf]
      %v1121 = vld [vmem:[%s1117 + $0xc] sm:$0xf]
      %v1122 = vld [vmem:[%s1117 + $0x10] sm:$0xf]
      %v1123 = vld [vmem:[%s1117 + $0x14] sm:$0xf]
      %v1124 = vld [vmem:[%s1117 + $0x18] sm:$0xf]
      %v1125 = vld [vmem:[%s1117 + $0x1c] sm:$0xf]
      %v1126 = vpack.c.b16 %v1044, %v1043
      %v1127 = vpack.c.b16 %v1045, %v1045
      %v1136 = vunpack.c.l.b16 %v1118
      %v1137 = vunpack.c.l.b16 %v1119
      %v1138 = vunpack.c.l.b16 %v1120
      %v1139 = vunpack.c.l.b16 %v1121
      %v1140 = vunpack.c.l.b16 %v1122
      %v1141 = vunpack.c.l.b16 %v1123
      %v1142 = vunpack.c.l.b16 %v1124
      %v1143 = vunpack.c.l.b16 %v1125
      %v1144 = vpack.c.b16 %v1137, %v1136
      %v1145 = vpack.c.b16 %v1139, %v1138
      %v1146 = vpack.c.b16 %v1141, %v1140
      %v1147 = vpack.c.b16 %v1143, %v1142
      %v1153 = vsel %vm877, %v1126, 0
      %v1156 = vsel %vm877, %v1127, 0
      %1158 = vmatpush.bf16.msra.mxu0 0
      %1159 = vmatpush.bf16.msra.mxu0 0
      %1160 = vmatpush.bf16.msra.mxu0 0
      %1161 = vmatpush.bf16.msra.mxu0 0
      %1162 = vmatpush.bf16.msra.mxu0 %v1147
      %1163 = vmatpush.bf16.msra.mxu0 %v1146
      %1164 = vmatpush.bf16.msra.mxu0 %v1145
      %1165 = vmatpush.bf16.msra.mxu0 %v1144
      %1166 = vmatmul.bf16.gmra.mxu0 %v1153
      %v1167 = vpop.f32.mrf.mxu0
      %v1168 = vadd.f32 0.0, %v1167
      %v1169 = vpop.f32.mrf.mxu0
      %v1170 = vadd.f32 0.0, %v1169
      %1171 = vmatmul.bf16.gmra.mxu0 %v1156
      %v1172 = vpop.f32.mrf.mxu0
      %v1173 = vadd.f32 0.0, %v1172
      %v1174 = vpop.f32.mrf.mxu0
      %1175 = vdwg.mxu0
      %v1176 = vadd.f32 %v1114, %v1168
      %v1177 = vadd.f32 %v1115, %v1170
      %v1178 = vadd.f32 %v1116, %v1173
      %v1179 = vld [vmem:[#allocation2 + $0xc] sm:$0x7]
      %s1180 = scalar_lea.vmem %s3, 160
      %v1181 = vld [vmem:[%s1180] sm:$0xf]
      %v1182 = vld [vmem:[%s1180 + $0x4] sm:$0xf]
      %v1183 = vld [vmem:[%s1180 + $0x8] sm:$0xf]
      %v1184 = vld [vmem:[%s1180 + $0xc] sm:$0xf]
      %v1185 = vld [vmem:[%s1180 + $0x10] sm:$0xf]
      %v1186 = vld [vmem:[%s1180 + $0x14] sm:$0xf]
      %v1187 = vld [vmem:[%s1180 + $0x18] sm:$0xf]
      %v1188 = vld [vmem:[%s1180 + $0x1c] sm:$0xf]
      %v1190 = vunpack.c.l.b16 %v1179
      %v1191 = vpack.c.b16 %v1190, %v1190
      %v1192 = vshrl.u32 %v1126, 16
      %v1194 = vshll.u32 %v1126, 16
      %v1196 = vrot.slane %v1194, 1
      %v1197 = vor.u32 %v1192, %v1196
      %v1199 = vshll.u32 %v1191, 16
      %v1201 = vrot.slane %v1199, 1
      %v1202 = vsel %vm275, %v1197, %v1201
      %v1203 = vshrl.u32 %v1191, 16
      %v1205 = vor.u32 %v1203, %v1201
      %v1214 = vunpack.c.l.b16 %v1181
      %v1215 = vunpack.c.l.b16 %v1182
      %v1216 = vunpack.c.l.b16 %v1183
      %v1217 = vunpack.c.l.b16 %v1184
      %v1218 = vunpack.c.l.b16 %v1185
      %v1219 = vunpack.c.l.b16 %v1186
      %v1220 = vunpack.c.l.b16 %v1187
      %v1221 = vunpack.c.l.b16 %v1188
      %v1222 = vpack.c.b16 %v1215, %v1214
      %v1223 = vpack.c.b16 %v1217, %v1216
      %v1224 = vpack.c.b16 %v1219, %v1218
      %v1225 = vpack.c.b16 %v1221, %v1220
      %v1231 = vsel %vm877, %v1202, 0
      %v1234 = vsel %vm877, %v1205, 0
      %1236 = vmatpush.bf16.msra.mxu0 0
      %1237 = vmatpush.bf16.msra.mxu0 0
      %1238 = vmatpush.bf16.msra.mxu0 0
      %1239 = vmatpush.bf16.msra.mxu0 0
      %1240 = vmatpush.bf16.msra.mxu0 %v1225
      %1241 = vmatpush.bf16.msra.mxu0 %v1224
      %1242 = vmatpush.bf16.msra.mxu0 %v1223
      %1243 = vmatpush.bf16.msra.mxu0 %v1222
      %1244 = vmatmul.bf16.gmra.mxu0 %v1231
      %v1245 = vpop.f32.mrf.mxu0
      %v1246 = vadd.f32 0.0, %v1245
      %v1247 = vpop.f32.mrf.mxu0
      %v1248 = vadd.f32 0.0, %v1247
      %1249 = vmatmul.bf16.gmra.mxu0 %v1234
      %v1250 = vpop.f32.mrf.mxu0
      %v1251 = vadd.f32 0.0, %v1250
      %v1252 = vpop.f32.mrf.mxu0
      %1253 = vdwg.mxu0
      %v1254 = vadd.f32 %v1176, %v1246
      %v1255 = vadd.f32 %v1177, %v1248
      %v1256 = vadd.f32 %v1178, %v1251
      %v1257 = vld [vmem:[#allocation2 + $0x4] sm:$0xc]
      %v1258 = vld [vmem:[#allocation2 + $0xc] sm:$0xf]
      %s1259 = scalar_lea.vmem %s3, 192
      %v1260 = vld [vmem:[%s1259] sm:$0xf]
      %v1261 = vld [vmem:[%s1259 + $0x4] sm:$0xf]
      %v1262 = vld [vmem:[%s1259 + $0x8] sm:$0xf]
      %v1263 = vld [vmem:[%s1259 + $0xc] sm:$0xf]
      %v1264 = vld [vmem:[%s1259 + $0x10] sm:$0xf]
      %v1265 = vld [vmem:[%s1259 + $0x14] sm:$0xf]
      %v1266 = vld [vmem:[%s1259 + $0x18] sm:$0xf]
      %v1267 = vld [vmem:[%s1259 + $0x1c] sm:$0xf]
      %v1270 = vunpack.c.l.b16 %v1257
      %v1271 = vunpack.c.l.b16 %v1258
      %v1272 = vpack.c.b16 %v1044, %v1270
      %v1273 = vpack.c.b16 %v1271, %v1271
      %v1274 = vrot.slane %v1272, 2
      %v1275 = vrot.slane %v1273, 2
      %v1276 = vsel %vm970, %v1274, %v1275
      %v1285 = vunpack.c.l.b16 %v1260
      %v1286 = vunpack.c.l.b16 %v1261
      %v1287 = vunpack.c.l.b16 %v1262
      %v1288 = vunpack.c.l.b16 %v1263
      %v1289 = vunpack.c.l.b16 %v1264
      %v1290 = vunpack.c.l.b16 %v1265
      %v1291 = vunpack.c.l.b16 %v1266
      %v1292 = vunpack.c.l.b16 %v1267
      %v1293 = vpack.c.b16 %v1286, %v1285
      %v1294 = vpack.c.b16 %v1288, %v1287
      %v1295 = vpack.c.b16 %v1290, %v1289
      %v1296 = vpack.c.b16 %v1292, %v1291
      %v1302 = vsel %vm877, %v1276, 0
      %v1305 = vsel %vm877, %v1275, 0
      %1307 = vmatpush.bf16.msra.mxu0 0
      %1308 = vmatpush.bf16.msra.mxu0 0
      %1309 = vmatpush.bf16.msra.mxu0 0
      %1310 = vmatpush.bf16.msra.mxu0 0
      %1311 = vmatpush.bf16.msra.mxu0 %v1296
      %1312 = vmatpush.bf16.msra.mxu0 %v1295
      %1313 = vmatpush.bf16.msra.mxu0 %v1294
      %1314 = vmatpush.bf16.msra.mxu0 %v1293
      %1315 = vmatmul.bf16.gmra.mxu0 %v1302
      %v1316 = vpop.f32.mrf.mxu0
      %v1317 = vadd.f32 0.0, %v1316
      %v1318 = vpop.f32.mrf.mxu0
      %v1319 = vadd.f32 0.0, %v1318
      %1320 = vmatmul.bf16.gmra.mxu0 %v1305
      %v1321 = vpop.f32.mrf.mxu0
      %v1322 = vadd.f32 0.0, %v1321
      %v1323 = vpop.f32.mrf.mxu0
      %1324 = vdwg.mxu0
      %v1325 = vadd.f32 %v1254, %v1317
      %v1326 = vadd.f32 %v1255, %v1319
      %v1327 = vadd.f32 %v1256, %v1322
      %v1328 = vld [vmem:[#allocation2 + $0x4] sm:$0xc]
      %v1329 = vld [vmem:[#allocation2 + $0x8] sm:$0xf]
      %v1330 = vld [vmem:[#allocation2 + $0xc] sm:$0xf]
      %v1331 = vld [vmem:[#allocation2 + $0x10] sm:$0x1]
      %s1332 = scalar_lea.vmem %s3, 224
      %v1333 = vld [vmem:[%s1332] sm:$0xf]
      %v1334 = vld [vmem:[%s1332 + $0x4] sm:$0xf]
      %v1335 = vld [vmem:[%s1332 + $0x8] sm:$0xf]
      %v1336 = vld [vmem:[%s1332 + $0xc] sm:$0xf]
      %v1337 = vld [vmem:[%s1332 + $0x10] sm:$0xf]
      %v1338 = vld [vmem:[%s1332 + $0x14] sm:$0xf]
      %v1339 = vld [vmem:[%s1332 + $0x18] sm:$0xf]
      %v1340 = vld [vmem:[%s1332 + $0x1c] sm:$0xf]
      %v1345 = vunpack.c.l.b16 %v1328
      %v1346 = vunpack.c.l.b16 %v1329
      %v1347 = vunpack.c.l.b16 %v1330
      %v1348 = vunpack.c.l.b16 %v1331
      %v1349 = vpack.c.b16 %v1346, %v1345
      %v1350 = vpack.c.b16 %v1348, %v1347
      %v1352 = vshrl.u32 %v1349, 16
      %v1354 = vrot.slane %v1352, 2
      %v1355 = vshll.u32 %v1349, 16
      %v1357 = vrot.slane %v1355, 3
      %v1358 = vor.u32 %v1354, %v1357
      %v1360 = vshrl.u32 %v1350, 16
      %v1362 = vrot.slane %v1360, 2
      %v1363 = vshll.u32 %v1350, 16
      %v1365 = vrot.slane %v1363, 3
      %v1366 = vor.u32 %v1362, %v1365
      %v1367 = vsel %vm447, %v1358, %v1366
      %v1376 = vunpack.c.l.b16 %v1333
      %v1377 = vunpack.c.l.b16 %v1334
      %v1378 = vunpack.c.l.b16 %v1335
      %v1379 = vunpack.c.l.b16 %v1336
      %v1380 = vunpack.c.l.b16 %v1337
      %v1381 = vunpack.c.l.b16 %v1338
      %v1382 = vunpack.c.l.b16 %v1339
      %v1383 = vunpack.c.l.b16 %v1340
      %v1384 = vpack.c.b16 %v1377, %v1376
      %v1385 = vpack.c.b16 %v1379, %v1378
      %v1386 = vpack.c.b16 %v1381, %v1380
      %v1387 = vpack.c.b16 %v1383, %v1382
      %v1393 = vsel %vm877, %v1367, 0
      %v1396 = vsel %vm877, %v1366, 0
      %1398 = vmatpush.bf16.msra.mxu0 0
      %1399 = vmatpush.bf16.msra.mxu0 0
      %1400 = vmatpush.bf16.msra.mxu0 0
      %1401 = vmatpush.bf16.msra.mxu0 0
      %1402 = vmatpush.bf16.msra.mxu0 %v1387
      %1403 = vmatpush.bf16.msra.mxu0 %v1386
      %1404 = vmatpush.bf16.msra.mxu0 %v1385
      %1405 = vmatpush.bf16.msra.mxu0 %v1384
      %1406 = vmatmul.bf16.gmra.mxu0 %v1393
      %v1407 = vpop.f32.mrf.mxu0
      %v1408 = vadd.f32 0.0, %v1407
      %v1409 = vpop.f32.mrf.mxu0
      %v1410 = vadd.f32 0.0, %v1409
      %1411 = vmatmul.bf16.gmra.mxu0 %v1396
      %v1412 = vpop.f32.mrf.mxu0
      %v1413 = vadd.f32 0.0, %v1412
      %v1414 = vpop.f32.mrf.mxu0
      %1415 = vdwg.mxu0
      %v1416 = vadd.f32 %v1325, %v1408
      %v1417 = vadd.f32 %v1326, %v1410
      %v1418 = vadd.f32 %v1327, %v1413
      %v1419 = vld [vmem:[#allocation2 + $0x4] sm:$0x8]
      %s1420 = scalar_lea.vmem %s3, 256
      %v1421 = vld [vmem:[%s1420] sm:$0xf]
      %v1422 = vld [vmem:[%s1420 + $0x4] sm:$0xf]
      %v1423 = vld [vmem:[%s1420 + $0x8] sm:$0xf]
      %v1424 = vld [vmem:[%s1420 + $0xc] sm:$0xf]
      %v1425 = vld [vmem:[%s1420 + $0x10] sm:$0xf]
      %v1426 = vld [vmem:[%s1420 + $0x14] sm:$0xf]
      %v1427 = vld [vmem:[%s1420 + $0x18] sm:$0xf]
      %v1428 = vld [vmem:[%s1420 + $0x1c] sm:$0xf]
      %v1430 = vunpack.c.l.b16 %v1419
      %v1431 = vpack.c.b16 %v1346, %v1430
      %v1432 = vrot.slane %v1431, 3
      %v1433 = vrot.slane %v1350, 3
      %v1434 = vsel %vm548, %v1432, %v1433
      %v1443 = vunpack.c.l.b16 %v1421
      %v1444 = vunpack.c.l.b16 %v1422
      %v1445 = vunpack.c.l.b16 %v1423
      %v1446 = vunpack.c.l.b16 %v1424
      %v1447 = vunpack.c.l.b16 %v1425
      %v1448 = vunpack.c.l.b16 %v1426
      %v1449 = vunpack.c.l.b16 %v1427
      %v1450 = vunpack.c.l.b16 %v1428
      %v1451 = vpack.c.b16 %v1444, %v1443
      %v1452 = vpack.c.b16 %v1446, %v1445
      %v1453 = vpack.c.b16 %v1448, %v1447
      %v1454 = vpack.c.b16 %v1450, %v1449
      %v1460 = vsel %vm877, %v1434, 0
      %v1463 = vsel %vm877, %v1433, 0
      %1465 = vmatpush.bf16.msra.mxu0 0
      %1466 = vmatpush.bf16.msra.mxu0 0
      %1467 = vmatpush.bf16.msra.mxu0 0
      %1468 = vmatpush.bf16.msra.mxu0 0
      %1469 = vmatpush.bf16.msra.mxu0 %v1454
      %1470 = vmatpush.bf16.msra.mxu0 %v1453
      %1471 = vmatpush.bf16.msra.mxu0 %v1452
      %1472 = vmatpush.bf16.msra.mxu0 %v1451
      %1473 = vmatmul.bf16.gmra.mxu0 %v1460
      %v1474 = vpop.f32.mrf.mxu0
      %v1475 = vadd.f32 0.0, %v1474
      %v1476 = vpop.f32.mrf.mxu0
      %v1477 = vadd.f32 0.0, %v1476
      %1478 = vmatmul.bf16.gmra.mxu0 %v1463
      %v1479 = vpop.f32.mrf.mxu0
      %v1480 = vadd.f32 0.0, %v1479
      %v1481 = vpop.f32.mrf.mxu0
      %1482 = vdwg.mxu0
      %v1483 = vadd.f32 %v1416, %v1475
      %v1484 = vadd.f32 %v1417, %v1477
      %v1485 = vadd.f32 %v1418, %v1480
      %v1486 = vld [vmem:[%s4] sm:$0x1]
      %v1488 = vperm.slane %v1486, 0
      %v1490 = vadd.f32 %v1483, %v1488
      %v1491 = vadd.f32 %v1484, %v1488
      %v1492 = vadd.f32 %v1485, %v1488
      %vm1493 = vcmp.ge.f32.partialorder %v1490, 0.0
      %vm1494 = vcmp.ge.f32.partialorder %v1491, 0.0
      %vm1495 = vcmp.ge.f32.partialorder %v1492, 0.0
      %v1496 = vmul.f32 %v1490, 0.1
      %v1497 = vmul.f32 %v1491, 0.1
      %v1498 = vmul.f32 %v1492, 0.1
      %v1499 = vsel %vm1493, %v1490, %v1496
      %v1500 = vsel %vm1494, %v1491, %v1497
      %v1501 = vsel %vm1495, %v1492, %v1498
      %1502 = vst.msk [vmem:[%s224] sm:$0xff] %vm877, %v1499
      %1503 = vst.msk [vmem:[%s224 + $0x8] sm:$0xff] %vm877, %v1500
      %1504 = vst.msk [vmem:[%s224 + $0x10] sm:$0xf] %vm226, %v1501
      %p1505 = scmp.lt.s32.totalorder %s16, 1
      %s1506 = scalar_select %p1505, %s16, 1
      %s1507 = smul.addr %s1506, 3
      %s1508 = smul.addr %s1507, 8
      %s1509 = scalar_lea.vmem %s5, %s1508
      // Predicated region
      $region41: #{a_call__.3} parent=39 // pred_check
        %p1510 = pneg %p144
      $region42: #{a_call__.3} parent=39 // pred_check_branch
        %1512 = sbr.rel (%p1510) target = $region44
      $region43: #{a_call__.3} parent=39 // pred_region
        _
      $region44: #{a_call__.3} parent=39 // pred_fallthru
        _
    $region40: #{a_call__.3} parent=5 // pred_fallthru
      _
    %p1513 = scmp.le.s32.totalorder 2, %s11
    // Predicated region
    $region45: #{a_call__.3} parent=5 // pred_check
      %p1514 = pneg %p1513
    $region46: #{a_call__.3} parent=5 // pred_check_branch
      %1516 = sbr.rel (%p1514) target = $region48
    $region47: #{a_call__.3} parent=5 // pred_region
      %s1517 = ssub.s32 %s11, 2
      // Predicated region
      $region49: #{a_call__.3} parent=47 // pred_check
        %p1518 = pneg %p150
      $region50: #{a_call__.3} parent=47 // pred_check_branch
        %1520 = sbr.rel (%p1518) target = $region52
      $region51: #{a_call__.3} parent=47 // pred_region
        %p1521 = scmp.lt.s32.totalorder %s17, 1
        %s1522 = scalar_select %p1521, %s17, 1
        %s1523 = smul.addr %s1522, 3
        %s1524 = smul.addr %s1523, 8
        %s1525 = scalar_lea.vmem %s5, %s1524
      $region52: #{a_call__.3} parent=47 // pred_fallthru
        _
    $region48: #{a_call__.3} parent=5 // pred_fallthru
      _
  $region6: #{a_call__.3} parent=0 // loop_footer
    %s15 = sadd.s32 1, %s11
  $region7: #{a_call__.3} parent=0 // loop_footer_branch
    %10 = sbr.rel target = $region3
  $region8: #{a_call__.3} parent=0 // loop_exit
    _

</llo_original>
